<compile_context>
chip_gen: v7x
topology: tpu7x:2x2x1
jax: 0.10.0
libtpu: 0.0.40
codegen_flags: <defaults>
</compile_context>

<pallas_src>
import functools
import math

import jax
import jax.numpy as jnp
from jax.experimental import pallas as pl
from jax.experimental.pallas import tpu as pltpu

_LN_EPS = 1e-5      # PyTorch nn.LayerNorm default
_MASK_NEG = -1e30   # same additive mask value as the PyTorch reference (fp32-safe)


def _layernorm(x, gamma, beta):
    mu = jnp.mean(x, axis=-1, keepdims=True)
    var = jnp.mean(jnp.square(x - mu), axis=-1, keepdims=True)
    return (x - mu) * jax.lax.rsqrt(var + _LN_EPS) * gamma + beta


# ----------------------------- Pallas kernels ------------------------------

def conv_block_kernel(*refs, K, add_pos):
    # Fused [pos add] + LayerNorm + Conv1d(K, 'same') + ReLU + residual.
    # x:(1,L,H)  pos:(1,L,H)  gamma/beta:(1,H)  w:(K*H,H) im2col-packed  cb:(1,H)
    if add_pos:
        x_ref, pos_ref, g_ref, b_ref, w_ref, cb_ref, o_ref = refs
    else:
        x_ref, g_ref, b_ref, w_ref, cb_ref, o_ref = refs
    x = x_ref[0].astype(jnp.float32)                        # (L, H)
    if add_pos:
        x = x + pos_ref[0].astype(jnp.float32)
    res = x                                                 # residual = post-pos input
    xn = _layernorm(x, g_ref[...].astype(jnp.float32), b_ref[...].astype(jnp.float32))

    L, H = xn.shape
    pad = K // 2
    if pad > 0:
        zeros = jnp.zeros((pad, H), jnp.float32)
        xp = jnp.concatenate([zeros, xn, zeros], axis=0)    # (L + K - 1, H)
    else:
        xp = xn
    # im2col: K shifted views stacked along lanes -> single full-width matmul
    # with contraction dim K*H instead of K separate H-wide matmuls.
    cols = jnp.concatenate([xp[k:k + L, :] for k in range(K)], axis=-1)   # (L, K*H)
    y = jnp.dot(cols, w_ref[...].astype(jnp.float32),
                preferred_element_type=jnp.float32) + cb_ref[...].astype(jnp.float32)
    y = jnp.maximum(y, 0.0)
    o_ref[0] = (y + res).astype(o_ref.dtype)


def mha_block_kernel(x_ref, neg_ref, g_ref, b_ref, wq_ref, wk_ref, wv_ref,
                     bq_ref, bk_ref, bv_ref, wo_ref, bo_ref, o_ref,
                     *, nheads, scale):
    # Fused LayerNorm + multi-head self-attention + residual, one batch row per
    # grid step.  Q/K/V and output projections are packed over heads (full
    # (L,H)x(H,H) matmuls); softmax is batched over heads on a stacked
    # (nheads*L, L) score slab.  The per-head score/PV matmuls stay as small 2-D
    # dots (head_dim = H/nheads is tiny) to keep lowering simple and robust.
    x = x_ref[0].astype(jnp.float32)                        # (L, H)
    res = x
    L, H = x.shape
    d = H // nheads
    xn = _layernorm(x, g_ref[...].astype(jnp.float32), b_ref[...].astype(jnp.float32))

    q = (jnp.dot(xn, wq_ref[...], preferred_element_type=jnp.float32)
         + bq_ref[...]) * scale                             # (L, H), heads packed on lanes
    k = jnp.dot(xn, wk_ref[...], preferred_element_type=jnp.float32) + bk_ref[...]
    v = jnp.dot(xn, wv_ref[...], preferred_element_type=jnp.float32) + bv_ref[...]

    neg = neg_ref[0].astype(jnp.float32)                    # (1, L) additive key mask

    # per-head scores, stacked head-major along sublanes -> one batched softmax
    scores = []
    for h in range(nheads):
        sl = slice(h * d, (h + 1) * d)
        s_h = jax.lax.dot_general(q[:, sl], k[:, sl], (((1,), (1,)), ((), ())),
                                  preferred_element_type=jnp.float32)   # (L, L)
        scores.append(s_h)
    s = jnp.concatenate(scores, axis=0)                     # (nheads*L, L)
    s = s + neg
    s = s - jnp.max(s, axis=-1, keepdims=True)
    p = jnp.exp(s)
    p = p * pl.reciprocal(jnp.sum(p, axis=-1, keepdims=True), approx=True)

    heads = [jnp.dot(p[h * L:(h + 1) * L, :], v[:, h * d:(h + 1) * d],
                     preferred_element_type=jnp.float32)    # (L, d)
             for h in range(nheads)]
    o = jnp.concatenate(heads, axis=-1)                     # (L, H), head-major lanes

    out = jnp.dot(o, wo_ref[...], preferred_element_type=jnp.float32) + bo_ref[...]
    o_ref[0] = (out + res).astype(o_ref.dtype)


def ffn_block_kernel(x_ref, g_ref, b_ref, w1_ref, b1_ref, w2_ref, b2_ref, o_ref):
    # Fused LayerNorm + FFN_1 (1x1 conv + ReLU) + FFN_2 (1x1 conv + ReLU) + residual.
    # NOTE: both FFN_1 and FFN_2 are ResizeConv(activation=True) in the PyTorch
    # reference, so ReLU is applied after each projection.
    x = x_ref[0].astype(jnp.float32)                        # (L, H)
    res = x
    xn = _layernorm(x, g_ref[...].astype(jnp.float32), b_ref[...].astype(jnp.float32))
    h1 = jnp.maximum(jnp.dot(xn, w1_ref[...], preferred_element_type=jnp.float32)
                     + b1_ref[...], 0.0)
    h2 = jnp.maximum(jnp.dot(h1, w2_ref[...], preferred_element_type=jnp.float32)
                     + b2_ref[...], 0.0)
    o_ref[0] = (h2 + res).astype(o_ref.dtype)


# ----------------------------- Pallas wrappers ------------------------------

_PARALLEL_BATCH = pltpu.CompilerParams(dimension_semantics=("parallel",))


def _batch_spec(L, H):
    return pl.BlockSpec((1, L, H), lambda b: (b, 0, 0))


def _resident_spec(shape):
    # Constant index_map: block stays resident across the batch grid.
    n = len(shape)
    return pl.BlockSpec(shape, lambda b: (0,) * n)


def conv_block(x, pos, gamma, beta, w2d, cb, *, K, add_pos):
    B, L, H = x.shape
    kernel = functools.partial(conv_block_kernel, K=K, add_pos=add_pos)
    args = [x]
    in_specs = [_batch_spec(L, H)]
    if add_pos:
        args.append(pos)
        in_specs.append(pl.BlockSpec((1, L, H), lambda b: (0, 0, 0)))
    args += [gamma, beta, w2d, cb]
    in_specs += [_resident_spec(a.shape) for a in (gamma, beta, w2d, cb)]
    return pl.pallas_call(
        kernel,
        out_shape=jax.ShapeDtypeStruct((B, L, H), x.dtype),
        grid=(B,),
        in_specs=in_specs,
        out_specs=_batch_spec(L, H),
        compiler_params=_PARALLEL_BATCH,
    )(*args)


def mha_block(x, maskneg, p, *, nheads):
    B, L, H = x.shape
    d = H // nheads
    kernel = functools.partial(mha_block_kernel, nheads=nheads,
                               scale=1.0 / math.sqrt(d))
    weights = [p["norm1_g"], p["norm1_b"], p["wq"], p["wk"], p["wv"],
               p["bq"], p["bk"], p["bv"], p["wo"], p["bo"]]
    return pl.pallas_call(
        kernel,
        out_shape=jax.ShapeDtypeStruct((B, L, H), x.dtype),
        grid=(B,),
        in_specs=[_batch_spec(L, H),
                  pl.BlockSpec((1, 1, L), lambda b: (b, 0, 0))]
                 + [_resident_spec(w.shape) for w in weights],
        out_specs=_batch_spec(L, H),
        compiler_params=_PARALLEL_BATCH,
    )(x, maskneg, *weights)


def ffn_block(x, p):
    B, L, H = x.shape
    weights = [p["norm2_g"], p["norm2_b"], p["ffn1_w"], p["ffn1_b"],
               p["ffn2_w"], p["ffn2_b"]]
    return pl.pallas_call(
        ffn_block_kernel,
        out_shape=jax.ShapeDtypeStruct((B, L, H), x.dtype),
        grid=(B,),
        in_specs=[_batch_spec(L, H)] + [_resident_spec(w.shape) for w in weights],
        out_specs=_batch_spec(L, H),
        compiler_params=_PARALLEL_BATCH,
    )(x, *weights)


# ----------------------------- Model glue -----------------------------------

def timing_signal(length, channels, min_timescale=1.0, max_timescale=10000.0):
    position = jnp.arange(length, dtype=jnp.float32)
    num_timescales = channels // 2
    log_inc = math.log(float(max_timescale) / float(min_timescale)) / (num_timescales - 1)
    inv = min_timescale * jnp.exp(
        jnp.arange(num_timescales, dtype=jnp.float32) * -log_inc)
    scaled = position[:, None] * inv[None, :]
    signal = jnp.concatenate([jnp.sin(scaled), jnp.cos(scaled)], axis=1)
    signal = jnp.pad(signal, ((0, 0), (0, channels % 2)))
    return signal.reshape(1, length, channels)


def init_params(key, hidden, kernel_size, number_convs, nheads):
    std = 0.1
    keys = jax.random.split(key, 2 * number_convs + 12)
    it = iter(keys)
    p = {}
    # conv stack: weight stored im2col-packed as (K*H, H); bias (1, H)
    p["conv_w"] = [(jax.random.normal(next(it), (kernel_size, hidden, hidden),
                                      jnp.float32) * std
                    ).reshape(kernel_size * hidden, hidden)
                   for _ in range(number_convs)]
    p["conv_b"] = [jax.random.normal(next(it), (1, hidden), jnp.float32) * std
                   for _ in range(number_convs)]
    p["conv_ln_g"] = [jnp.ones((1, hidden), jnp.float32) for _ in range(number_convs)]
    p["conv_ln_b"] = [jnp.zeros((1, hidden), jnp.float32) for _ in range(number_convs)]
    # attention: heads packed along the output dim (head-major chunks of d = H/nheads)
    p["wq"] = jax.random.normal(next(it), (hidden, hidden), jnp.float32) * std
    p["wk"] = jax.random.normal(next(it), (hidden, hidden), jnp.float32) * std
    p["wv"] = jax.random.normal(next(it), (hidden, hidden), jnp.float32) * std
    p["bq"] = jax.random.normal(next(it), (1, hidden), jnp.float32) * std
    p["bk"] = jax.random.normal(next(it), (1, hidden), jnp.float32) * std
    p["bv"] = jax.random.normal(next(it), (1, hidden), jnp.float32) * std
    p["wo"] = jax.random.normal(next(it), (hidden, hidden), jnp.float32) * std
    p["bo"] = jax.random.normal(next(it), (1, hidden), jnp.float32) * std
    p["norm1_g"] = jnp.ones((1, hidden), jnp.float32)
    p["norm1_b"] = jnp.zeros((1, hidden), jnp.float32)
    # FFN (1x1 convs with bias + ReLU)
    p["ffn1_w"] = jax.random.normal(next(it), (hidden, hidden), jnp.float32) * std
    p["ffn1_b"] = jax.random.normal(next(it), (1, hidden), jnp.float32) * std
    p["ffn2_w"] = jax.random.normal(next(it), (hidden, hidden), jnp.float32) * std
    p["ffn2_b"] = jax.random.normal(next(it), (1, hidden), jnp.float32) * std
    p["norm2_g"] = jnp.ones((1, hidden), jnp.float32)
    p["norm2_b"] = jnp.zeros((1, hidden), jnp.float32)
    return p


def encoder_block_forward(x, key_padding_mask, pos_signal, params,
                          *, kernel_size, number_convs, nheads):
    B, L, H = x.shape
    # additive key-padding mask: True -> large negative (fp32-safe)
    maskneg = jnp.where(key_padding_mask, _MASK_NEG, 0.0).astype(jnp.float32)
    maskneg = maskneg.reshape(B, 1, L)

    if number_convs == 0:                                  # positional encoding fallback
        x = x + pos_signal.astype(x.dtype)

    # conv blocks (pos add fused into the first block; dropout = identity)
    for i in range(number_convs):
        x = conv_block(x, pos_signal,
                       params["conv_ln_g"][i], params["conv_ln_b"][i],
                       params["conv_w"][i], params["conv_b"][i],
                       K=kernel_size, add_pos=(i == 0))

    # self-attention block (LayerNorm fused)
    x = mha_block(x, maskneg, params, nheads=nheads)

    # FFN block (LayerNorm fused)
    x = ffn_block(x, params)
    return x


# ----------------------------- Main ------------------------------------------

if __name__ == "__main__":
    B, L, H = 2, 8, 32
    number_convs = 2
    kernel_size = 5
    nheads = 8

    key = jax.random.PRNGKey(0)
    k_x, k_p = jax.random.split(key)
    x = jax.random.normal(k_x, (B, L, H), jnp.float32)

    # key_padding_mask: True = masked (ignored) key positions
    mask = jnp.zeros((B, L), dtype=bool)
    mask = mask.at[1, L - 3:].set(True)

    params = init_params(k_p, H, kernel_size, number_convs, nheads)
    # timing signal hoisted out of the jitted forward (static for fixed L, H)
    pos = timing_signal(L, H)

    fwd = jax.jit(functools.partial(encoder_block_forward,
                                    kernel_size=kernel_size,
                                    number_convs=number_convs,
                                    nheads=nheads))
    out = fwd(x, mask, pos, params)
    out = jax.block_until_ready(out)

    assert out.shape == (B, L, H)
    assert bool(jnp.all(jnp.isfinite(out)))
    print("KERNEL_OK")
</pallas_src>

<mosaic_0001>
module attributes {stable_mosaic.version = 11 : i64} {
  func.func @conv_block_kernel(%arg0: i32, %arg1: memref<1x8x32xf32, #tpu.memory_space<vmem>>, %arg2: memref<1x32xf32, #tpu.memory_space<vmem>>, %arg3: memref<1x32xf32, #tpu.memory_space<vmem>>, %arg4: memref<160x32xf32, #tpu.memory_space<vmem>>, %arg5: memref<1x32xf32, #tpu.memory_space<vmem>>, %arg6: memref<1x8x32xf32, #tpu.memory_space<vmem>>) attributes {dimension_semantics = [#tpu.dimension_semantics<parallel>], iteration_bounds = array<i64: 2>, scalar_prefetch = 0 : i64, scratch_operands = 0 : i64, tpu.core_type = #tpu.core_type<tc>, window_params = [{transform_indices = @transform_0, window_bounds = array<i64: 1, 8, 32>}, {pipeline_mode = #tpu.pipeline_mode<synchronous>, transform_indices = @transform_1, window_bounds = array<i64: 1, 32>}, {pipeline_mode = #tpu.pipeline_mode<synchronous>, transform_indices = @transform_2, window_bounds = array<i64: 1, 32>}, {pipeline_mode = #tpu.pipeline_mode<synchronous>, transform_indices = @transform_3, window_bounds = array<i64: 160, 32>}, {pipeline_mode = #tpu.pipeline_mode<synchronous>, transform_indices = @transform_4, window_bounds = array<i64: 1, 32>}, {transform_indices = @transform_5, window_bounds = array<i64: 1, 8, 32>}]} {
    %c0 = arith.constant 0 : index
    %c0_0 = arith.constant 0 : index
    %c0_1 = arith.constant 0 : index
    %0 = vector.load %arg1[%c0, %c0_0, %c0_1] : memref<1x8x32xf32, #tpu.memory_space<vmem>>, vector<1x8x32xf32>
    %1 = vector.shape_cast %0 : vector<1x8x32xf32> to vector<8x32xf32>
    %c0_2 = arith.constant 0 : index
    %c0_3 = arith.constant 0 : index
    %2 = vector.load %arg2[%c0_2, %c0_3] : memref<1x32xf32, #tpu.memory_space<vmem>>, vector<1x32xf32>
    %c0_4 = arith.constant 0 : index
    %c0_5 = arith.constant 0 : index
    %3 = vector.load %arg3[%c0_4, %c0_5] : memref<1x32xf32, #tpu.memory_space<vmem>>, vector<1x32xf32>
    %cst = arith.constant dense<0.000000e+00> : vector<8xf32>
    %4 = vector.multi_reduction <add>, %1, %cst [1] : vector<8x32xf32> to vector<8xf32>
    %5 = vector.shape_cast %4 : vector<8xf32> to vector<8x1xf32>
    %cst_6 = arith.constant 3.200000e+01 : f32
    %6 = vector.broadcast %cst_6 : f32 to vector<8x1xf32>
    %7 = arith.divf %5, %6 : vector<8x1xf32>
    %8 = vector.broadcast %7 : vector<8x1xf32> to vector<8x32xf32>
    %9 = arith.subf %1, %8 : vector<8x32xf32>
    %10 = arith.mulf %9, %9 : vector<8x32xf32>
    %cst_7 = arith.constant dense<0.000000e+00> : vector<8xf32>
    %11 = vector.multi_reduction <add>, %10, %cst_7 [1] : vector<8x32xf32> to vector<8xf32>
    %12 = vector.shape_cast %11 : vector<8xf32> to vector<8x1xf32>
    %cst_8 = arith.constant 3.200000e+01 : f32
    %13 = vector.broadcast %cst_8 : f32 to vector<8x1xf32>
    %14 = arith.divf %12, %13 : vector<8x1xf32>
    %15 = vector.broadcast %7 : vector<8x1xf32> to vector<8x32xf32>
    %16 = arith.subf %1, %15 : vector<8x32xf32>
    %cst_9 = arith.constant 9.99999974E-6 : f32
    %17 = vector.broadcast %cst_9 : f32 to vector<8x1xf32>
    %18 = arith.addf %14, %17 : vector<8x1xf32>
    %19 = math.rsqrt %18 : vector<8x1xf32>
    %20 = vector.broadcast %19 : vector<8x1xf32> to vector<8x32xf32>
    %21 = arith.mulf %16, %20 : vector<8x32xf32>
    %22 = vector.broadcast %2 : vector<1x32xf32> to vector<8x32xf32>
    %23 = arith.mulf %21, %22 : vector<8x32xf32>
    %24 = vector.broadcast %3 : vector<1x32xf32> to vector<8x32xf32>
    %25 = arith.addf %23, %24 : vector<8x32xf32>
    %cst_10 = arith.constant 0.000000e+00 : f32
    %26 = vector.broadcast %cst_10 : f32 to vector<2x32xf32>
    %27 = tpu.concatenate %26, %25, %26 in 0 : vector<2x32xf32>, vector<8x32xf32>, vector<2x32xf32> -> vector<12x32xf32>
    %28 = vector.extract_strided_slice %27 {offsets = [0, 0], sizes = [8, 32], strides = [1, 1]} : vector<12x32xf32> to vector<8x32xf32>
    %29 = vector.extract_strided_slice %27 {offsets = [1, 0], sizes = [8, 32], strides = [1, 1]} : vector<12x32xf32> to vector<8x32xf32>
    %30 = vector.extract_strided_slice %27 {offsets = [2, 0], sizes = [8, 32], strides = [1, 1]} : vector<12x32xf32> to vector<8x32xf32>
    %31 = vector.extract_strided_slice %27 {offsets = [3, 0], sizes = [8, 32], strides = [1, 1]} : vector<12x32xf32> to vector<8x32xf32>
    %32 = vector.extract_strided_slice %27 {offsets = [4, 0], sizes = [8, 32], strides = [1, 1]} : vector<12x32xf32> to vector<8x32xf32>
    %33 = tpu.concatenate %28, %29, %30, %31, %32 in 1 : vector<8x32xf32>, vector<8x32xf32>, vector<8x32xf32>, vector<8x32xf32>, vector<8x32xf32> -> vector<8x160xf32>
    %c0_11 = arith.constant 0 : index
    %c0_12 = arith.constant 0 : index
    %34 = vector.load %arg4[%c0_11, %c0_12] : memref<160x32xf32, #tpu.memory_space<vmem>>, vector<160x32xf32>
    %cst_13 = arith.constant dense<0.000000e+00> : vector<8x32xf32>
    %35 = tpu.matmul %33, %34, %cst_13 {dimension_numbers = #tpu.dot_dimension_numbers<[1], [0], [0], [1], [0, 0, 1, 1], [], []>} : vector<8x160xf32>, vector<160x32xf32>, vector<8x32xf32> -> vector<8x32xf32>
    %c0_14 = arith.constant 0 : index
    %c0_15 = arith.constant 0 : index
    %36 = vector.load %arg5[%c0_14, %c0_15] : memref<1x32xf32, #tpu.memory_space<vmem>>, vector<1x32xf32>
    %37 = vector.broadcast %36 : vector<1x32xf32> to vector<8x32xf32>
    %38 = arith.addf %35, %37 : vector<8x32xf32>
    %cst_16 = arith.constant 0.000000e+00 : f32
    %39 = vector.broadcast %cst_16 : f32 to vector<8x32xf32>
    %40 = arith.maximumf %38, %39 : vector<8x32xf32>
    %41 = arith.addf %40, %1 : vector<8x32xf32>
    %c0_17 = arith.constant 0 : index
    %c0_18 = arith.constant 0 : index
    %c0_19 = arith.constant 0 : index
    %42 = vector.load %arg6[%c0_17, %c0_18, %c0_19] : memref<1x8x32xf32, #tpu.memory_space<vmem>>, vector<1x8x32xf32>
    %43 = vector.shape_cast %42 : vector<1x8x32xf32> to vector<8x32xf32>
    %44 = vector.shape_cast %41 : vector<8x32xf32> to vector<1x8x32xf32>
    tpu.vector_store %arg6[%c0_17, %c0_18, %c0_19], %44 {strides = array<i32>} : memref<1x8x32xf32, #tpu.memory_space<vmem>>, vector<1x8x32xf32>,
    return
  }
  func.func @transform_0(%arg0: i32) -> (i32, i32, i32) {
    %c0_i32 = arith.constant 0 : i32
    %c0_i32_0 = arith.constant 0 : i32
    %c0_i32_1 = arith.constant 0 : i32
    return %arg0, %c0_i32, %c0_i32_0 : i32, i32, i32
  }
  func.func @transform_1(%arg0: i32) -> (i32, i32) {
    %c0_i32 = arith.constant 0 : i32
    %c0_i32_0 = arith.constant 0 : i32
    %c0_i32_1 = arith.constant 0 : i32
    return %c0_i32, %c0_i32_0 : i32, i32
  }
  func.func @transform_2(%arg0: i32) -> (i32, i32) {
    %c0_i32 = arith.constant 0 : i32
    %c0_i32_0 = arith.constant 0 : i32
    %c0_i32_1 = arith.constant 0 : i32
    return %c0_i32, %c0_i32_0 : i32, i32
  }
  func.func @transform_3(%arg0: i32) -> (i32, i32) {
    %c0_i32 = arith.constant 0 : i32
    %c0_i32_0 = arith.constant 0 : i32
    %c0_i32_1 = arith.constant 0 : i32
    return %c0_i32, %c0_i32_0 : i32, i32
  }
  func.func @transform_4(%arg0: i32) -> (i32, i32) {
    %c0_i32 = arith.constant 0 : i32
    %c0_i32_0 = arith.constant 0 : i32
    %c0_i32_1 = arith.constant 0 : i32
    return %c0_i32, %c0_i32_0 : i32, i32
  }
  func.func @transform_5(%arg0: i32) -> (i32, i32, i32) {
    %c0_i32 = arith.constant 0 : i32
    %c0_i32_0 = arith.constant 0 : i32
    %c0_i32_1 = arith.constant 0 : i32
    return %arg0, %c0_i32, %c0_i32_0 : i32, i32, i32
  }
}

module attributes {stable_mosaic.version = 11 : i64} {
  func.func @conv_block_kernel(%arg0: i32, %arg1: memref<1x8x32xf32, #tpu.memory_space<vmem>>, %arg2: memref<1x8x32xf32, #tpu.memory_space<vmem>>, %arg3: memref<1x32xf32, #tpu.memory_space<vmem>>, %arg4: memref<1x32xf32, #tpu.memory_space<vmem>>, %arg5: memref<160x32xf32, #tpu.memory_space<vmem>>, %arg6: memref<1x32xf32, #tpu.memory_space<vmem>>, %arg7: memref<1x8x32xf32, #tpu.memory_space<vmem>>) attributes {dimension_semantics = [#tpu.dimension_semantics<parallel>], iteration_bounds = array<i64: 2>, scalar_prefetch = 0 : i64, scratch_operands = 0 : i64, tpu.core_type = #tpu.core_type<tc>, window_params = [{transform_indices = @transform_0, window_bounds = array<i64: 1, 8, 32>}, {pipeline_mode = #tpu.pipeline_mode<synchronous>, transform_indices = @transform_1, window_bounds = array<i64: 1, 8, 32>}, {pipeline_mode = #tpu.pipeline_mode<synchronous>, transform_indices = @transform_2, window_bounds = array<i64: 1, 32>}, {pipeline_mode = #tpu.pipeline_mode<synchronous>, transform_indices = @transform_3, window_bounds = array<i64: 1, 32>}, {pipeline_mode = #tpu.pipeline_mode<synchronous>, transform_indices = @transform_4, window_bounds = array<i64: 160, 32>}, {pipeline_mode = #tpu.pipeline_mode<synchronous>, transform_indices = @transform_5, window_bounds = array<i64: 1, 32>}, {transform_indices = @transform_6, window_bounds = array<i64: 1, 8, 32>}]} {
    %c0 = arith.constant 0 : index
    %c0_0 = arith.constant 0 : index
    %c0_1 = arith.constant 0 : index
    %0 = vector.load %arg1[%c0, %c0_0, %c0_1] : memref<1x8x32xf32, #tpu.memory_space<vmem>>, vector<1x8x32xf32>
    %1 = vector.shape_cast %0 : vector<1x8x32xf32> to vector<8x32xf32>
    %c0_2 = arith.constant 0 : index
    %c0_3 = arith.constant 0 : index
    %c0_4 = arith.constant 0 : index
    %2 = vector.load %arg2[%c0_2, %c0_3, %c0_4] : memref<1x8x32xf32, #tpu.memory_space<vmem>>, vector<1x8x32xf32>
    %3 = vector.shape_cast %2 : vector<1x8x32xf32> to vector<8x32xf32>
    %4 = arith.addf %1, %3 : vector<8x32xf32>
    %c0_5 = arith.constant 0 : index
    %c0_6 = arith.constant 0 : index
    %5 = vector.load %arg3[%c0_5, %c0_6] : memref<1x32xf32, #tpu.memory_space<vmem>>, vector<1x32xf32>
    %c0_7 = arith.constant 0 : index
    %c0_8 = arith.constant 0 : index
    %6 = vector.load %arg4[%c0_7, %c0_8] : memref<1x32xf32, #tpu.memory_space<vmem>>, vector<1x32xf32>
    %cst = arith.constant dense<0.000000e+00> : vector<8xf32>
    %7 = vector.multi_reduction <add>, %4, %cst [1] : vector<8x32xf32> to vector<8xf32>
    %8 = vector.shape_cast %7 : vector<8xf32> to vector<8x1xf32>
    %cst_9 = arith.constant 3.200000e+01 : f32
    %9 = vector.broadcast %cst_9 : f32 to vector<8x1xf32>
    %10 = arith.divf %8, %9 : vector<8x1xf32>
    %11 = vector.broadcast %10 : vector<8x1xf32> to vector<8x32xf32>
    %12 = arith.subf %4, %11 : vector<8x32xf32>
    %13 = arith.mulf %12, %12 : vector<8x32xf32>
    %cst_10 = arith.constant dense<0.000000e+00> : vector<8xf32>
    %14 = vector.multi_reduction <add>, %13, %cst_10 [1] : vector<8x32xf32> to vector<8xf32>
    %15 = vector.shape_cast %14 : vector<8xf32> to vector<8x1xf32>
    %cst_11 = arith.constant 3.200000e+01 : f32
    %16 = vector.broadcast %cst_11 : f32 to vector<8x1xf32>
    %17 = arith.divf %15, %16 : vector<8x1xf32>
    %18 = vector.broadcast %10 : vector<8x1xf32> to vector<8x32xf32>
    %19 = arith.subf %4, %18 : vector<8x32xf32>
    %cst_12 = arith.constant 9.99999974E-6 : f32
    %20 = vector.broadcast %cst_12 : f32 to vector<8x1xf32>
    %21 = arith.addf %17, %20 : vector<8x1xf32>
    %22 = math.rsqrt %21 : vector<8x1xf32>
    %23 = vector.broadcast %22 : vector<8x1xf32> to vector<8x32xf32>
    %24 = arith.mulf %19, %23 : vector<8x32xf32>
    %25 = vector.broadcast %5 : vector<1x32xf32> to vector<8x32xf32>
    %26 = arith.mulf %24, %25 : vector<8x32xf32>
    %27 = vector.broadcast %6 : vector<1x32xf32> to vector<8x32xf32>
    %28 = arith.addf %26, %27 : vector<8x32xf32>
    %cst_13 = arith.constant 0.000000e+00 : f32
    %29 = vector.broadcast %cst_13 : f32 to vector<2x32xf32>
    %30 = tpu.concatenate %29, %28, %29 in 0 : vector<2x32xf32>, vector<8x32xf32>, vector<2x32xf32> -> vector<12x32xf32>
    %31 = vector.extract_strided_slice %30 {offsets = [0, 0], sizes = [8, 32], strides = [1, 1]} : vector<12x32xf32> to vector<8x32xf32>
    %32 = vector.extract_strided_slice %30 {offsets = [1, 0], sizes = [8, 32], strides = [1, 1]} : vector<12x32xf32> to vector<8x32xf32>
    %33 = vector.extract_strided_slice %30 {offsets = [2, 0], sizes = [8, 32], strides = [1, 1]} : vector<12x32xf32> to vector<8x32xf32>
    %34 = vector.extract_strided_slice %30 {offsets = [3, 0], sizes = [8, 32], strides = [1, 1]} : vector<12x32xf32> to vector<8x32xf32>
    %35 = vector.extract_strided_slice %30 {offsets = [4, 0], sizes = [8, 32], strides = [1, 1]} : vector<12x32xf32> to vector<8x32xf32>
    %36 = tpu.concatenate %31, %32, %33, %34, %35 in 1 : vector<8x32xf32>, vector<8x32xf32>, vector<8x32xf32>, vector<8x32xf32>, vector<8x32xf32> -> vector<8x160xf32>
    %c0_14 = arith.constant 0 : index
    %c0_15 = arith.constant 0 : index
    %37 = vector.load %arg5[%c0_14, %c0_15] : memref<160x32xf32, #tpu.memory_space<vmem>>, vector<160x32xf32>
    %cst_16 = arith.constant dense<0.000000e+00> : vector<8x32xf32>
    %38 = tpu.matmul %36, %37, %cst_16 {dimension_numbers = #tpu.dot_dimension_numbers<[1], [0], [0], [1], [0, 0, 1, 1], [], []>} : vector<8x160xf32>, vector<160x32xf32>, vector<8x32xf32> -> vector<8x32xf32>
    %c0_17 = arith.constant 0 : index
    %c0_18 = arith.constant 0 : index
    %39 = vector.load %arg6[%c0_17, %c0_18] : memref<1x32xf32, #tpu.memory_space<vmem>>, vector<1x32xf32>
    %40 = vector.broadcast %39 : vector<1x32xf32> to vector<8x32xf32>
    %41 = arith.addf %38, %40 : vector<8x32xf32>
    %cst_19 = arith.constant 0.000000e+00 : f32
    %42 = vector.broadcast %cst_19 : f32 to vector<8x32xf32>
    %43 = arith.maximumf %41, %42 : vector<8x32xf32>
    %44 = arith.addf %43, %4 : vector<8x32xf32>
    %c0_20 = arith.constant 0 : index
    %c0_21 = arith.constant 0 : index
    %c0_22 = arith.constant 0 : index
    %45 = vector.load %arg7[%c0_20, %c0_21, %c0_22] : memref<1x8x32xf32, #tpu.memory_space<vmem>>, vector<1x8x32xf32>
    %46 = vector.shape_cast %45 : vector<1x8x32xf32> to vector<8x32xf32>
    %47 = vector.shape_cast %44 : vector<8x32xf32> to vector<1x8x32xf32>
    tpu.vector_store %arg7[%c0_20, %c0_21, %c0_22], %47 {strides = array<i32>} : memref<1x8x32xf32, #tpu.memory_space<vmem>>, vector<1x8x32xf32>,
    return
  }
  func.func @transform_0(%arg0: i32) -> (i32, i32, i32) {
    %c0_i32 = arith.constant 0 : i32
    %c0_i32_0 = arith.constant 0 : i32
    %c0_i32_1 = arith.constant 0 : i32
    return %arg0, %c0_i32, %c0_i32_0 : i32, i32, i32
  }
  func.func @transform_1(%arg0: i32) -> (i32, i32, i32) {
    %c0_i32 = arith.constant 0 : i32
    %c0_i32_0 = arith.constant 0 : i32
    %c0_i32_1 = arith.constant 0 : i32
    %c0_i32_2 = arith.constant 0 : i32
    return %c0_i32, %c0_i32_0, %c0_i32_1 : i32, i32, i32
  }
  func.func @transform_2(%arg0: i32) -> (i32, i32) {
    %c0_i32 = arith.constant 0 : i32
    %c0_i32_0 = arith.constant 0 : i32
    %c0_i32_1 = arith.constant 0 : i32
    return %c0_i32, %c0_i32_0 : i32, i32
  }
  func.func @transform_3(%arg0: i32) -> (i32, i32) {
    %c0_i32 = arith.constant 0 : i32
    %c0_i32_0 = arith.constant 0 : i32
    %c0_i32_1 = arith.constant 0 : i32
    return %c0_i32, %c0_i32_0 : i32, i32
  }
  func.func @transform_4(%arg0: i32) -> (i32, i32) {
    %c0_i32 = arith.constant 0 : i32
    %c0_i32_0 = arith.constant 0 : i32
    %c0_i32_1 = arith.constant 0 : i32
    return %c0_i32, %c0_i32_0 : i32, i32
  }
  func.func @transform_5(%arg0: i32) -> (i32, i32) {
    %c0_i32 = arith.constant 0 : i32
    %c0_i32_0 = arith.constant 0 : i32
    %c0_i32_1 = arith.constant 0 : i32
    return %c0_i32, %c0_i32_0 : i32, i32
  }
  func.func @transform_6(%arg0: i32) -> (i32, i32, i32) {
    %c0_i32 = arith.constant 0 : i32
    %c0_i32_0 = arith.constant 0 : i32
    %c0_i32_1 = arith.constant 0 : i32
    return %arg0, %c0_i32, %c0_i32_0 : i32, i32, i32
  }
}

module attributes {stable_mosaic.version = 11 : i64} {
  func.func @mha_block_kernel(%arg0: i32, %arg1: memref<1x8x32xf32, #tpu.memory_space<vmem>>, %arg2: memref<1x1x8xf32, #tpu.memory_space<vmem>>, %arg3: memref<1x32xf32, #tpu.memory_space<vmem>>, %arg4: memref<1x32xf32, #tpu.memory_space<vmem>>, %arg5: memref<32x32xf32, #tpu.memory_space<vmem>>, %arg6: memref<32x32xf32, #tpu.memory_space<vmem>>, %arg7: memref<32x32xf32, #tpu.memory_space<vmem>>, %arg8: memref<1x32xf32, #tpu.memory_space<vmem>>, %arg9: memref<1x32xf32, #tpu.memory_space<vmem>>, %arg10: memref<1x32xf32, #tpu.memory_space<vmem>>, %arg11: memref<32x32xf32, #tpu.memory_space<vmem>>, %arg12: memref<1x32xf32, #tpu.memory_space<vmem>>, %arg13: memref<1x8x32xf32, #tpu.memory_space<vmem>>) attributes {dimension_semantics = [#tpu.dimension_semantics<parallel>], iteration_bounds = array<i64: 2>, scalar_prefetch = 0 : i64, scratch_operands = 0 : i64, tpu.core_type = #tpu.core_type<tc>, window_params = [{transform_indices = @transform_0, window_bounds = array<i64: 1, 8, 32>}, {transform_indices = @transform_1, window_bounds = array<i64: 1, 1, 8>}, {pipeline_mode = #tpu.pipeline_mode<synchronous>, transform_indices = @transform_2, window_bounds = array<i64: 1, 32>}, {pipeline_mode = #tpu.pipeline_mode<synchronous>, transform_indices = @transform_3, window_bounds = array<i64: 1, 32>}, {pipeline_mode = #tpu.pipeline_mode<synchronous>, transform_indices = @transform_4, window_bounds = array<i64: 32, 32>}, {pipeline_mode = #tpu.pipeline_mode<synchronous>, transform_indices = @transform_5, window_bounds = array<i64: 32, 32>}, {pipeline_mode = #tpu.pipeline_mode<synchronous>, transform_indices = @transform_6, window_bounds = array<i64: 32, 32>}, {pipeline_mode = #tpu.pipeline_mode<synchronous>, transform_indices = @transform_7, window_bounds = array<i64: 1, 32>}, {pipeline_mode = #tpu.pipeline_mode<synchronous>, transform_indices = @transform_8, window_bounds = array<i64: 1, 32>}, {pipeline_mode = #tpu.pipeline_mode<synchronous>, transform_indices = @transform_9, window_bounds = array<i64: 1, 32>}, {pipeline_mode = #tpu.pipeline_mode<synchronous>, transform_indices = @transform_10, window_bounds = array<i64: 32, 32>}, {pipeline_mode = #tpu.pipeline_mode<synchronous>, transform_indices = @transform_11, window_bounds = array<i64: 1, 32>}, {transform_indices = @transform_12, window_bounds = array<i64: 1, 8, 32>}]} {
    %c0 = arith.constant 0 : index
    %c0_0 = arith.constant 0 : index
    %c0_1 = arith.constant 0 : index
    %0 = vector.load %arg1[%c0, %c0_0, %c0_1] : memref<1x8x32xf32, #tpu.memory_space<vmem>>, vector<1x8x32xf32>
    %1 = vector.shape_cast %0 : vector<1x8x32xf32> to vector<8x32xf32>
    %c0_2 = arith.constant 0 : index
    %c0_3 = arith.constant 0 : index
    %2 = vector.load %arg3[%c0_2, %c0_3] : memref<1x32xf32, #tpu.memory_space<vmem>>, vector<1x32xf32>
    %c0_4 = arith.constant 0 : index
    %c0_5 = arith.constant 0 : index
    %3 = vector.load %arg4[%c0_4, %c0_5] : memref<1x32xf32, #tpu.memory_space<vmem>>, vector<1x32xf32>
    %cst = arith.constant dense<0.000000e+00> : vector<8xf32>
    %4 = vector.multi_reduction <add>, %1, %cst [1] : vector<8x32xf32> to vector<8xf32>
    %5 = vector.shape_cast %4 : vector<8xf32> to vector<8x1xf32>
    %cst_6 = arith.constant 3.200000e+01 : f32
    %6 = vector.broadcast %cst_6 : f32 to vector<8x1xf32>
    %7 = arith.divf %5, %6 : vector<8x1xf32>
    %8 = vector.broadcast %7 : vector<8x1xf32> to vector<8x32xf32>
    %9 = arith.subf %1, %8 : vector<8x32xf32>
    %10 = arith.mulf %9, %9 : vector<8x32xf32>
    %cst_7 = arith.constant dense<0.000000e+00> : vector<8xf32>
    %11 = vector.multi_reduction <add>, %10, %cst_7 [1] : vector<8x32xf32> to vector<8xf32>
    %12 = vector.shape_cast %11 : vector<8xf32> to vector<8x1xf32>
    %cst_8 = arith.constant 3.200000e+01 : f32
    %13 = vector.broadcast %cst_8 : f32 to vector<8x1xf32>
    %14 = arith.divf %12, %13 : vector<8x1xf32>
    %15 = vector.broadcast %7 : vector<8x1xf32> to vector<8x32xf32>
    %16 = arith.subf %1, %15 : vector<8x32xf32>
    %cst_9 = arith.constant 9.99999974E-6 : f32
    %17 = vector.broadcast %cst_9 : f32 to vector<8x1xf32>
    %18 = arith.addf %14, %17 : vector<8x1xf32>
    %19 = math.rsqrt %18 : vector<8x1xf32>
    %20 = vector.broadcast %19 : vector<8x1xf32> to vector<8x32xf32>
    %21 = arith.mulf %16, %20 : vector<8x32xf32>
    %22 = vector.broadcast %2 : vector<1x32xf32> to vector<8x32xf32>
    %23 = arith.mulf %21, %22 : vector<8x32xf32>
    %24 = vector.broadcast %3 : vector<1x32xf32> to vector<8x32xf32>
    %25 = arith.addf %23, %24 : vector<8x32xf32>
    %c0_10 = arith.constant 0 : index
    %c0_11 = arith.constant 0 : index
    %26 = vector.load %arg5[%c0_10, %c0_11] : memref<32x32xf32, #tpu.memory_space<vmem>>, vector<32x32xf32>
    %cst_12 = arith.constant dense<0.000000e+00> : vector<8x32xf32>
    %27 = tpu.matmul %25, %26, %cst_12 {dimension_numbers = #tpu.dot_dimension_numbers<[1], [0], [0], [1], [0, 0, 1, 1], [], []>} : vector<8x32xf32>, vector<32x32xf32>, vector<8x32xf32> -> vector<8x32xf32>
    %c0_13 = arith.constant 0 : index
    %c0_14 = arith.constant 0 : index
    %28 = vector.load %arg8[%c0_13, %c0_14] : memref<1x32xf32, #tpu.memory_space<vmem>>, vector<1x32xf32>
    %29 = vector.broadcast %28 : vector<1x32xf32> to vector<8x32xf32>
    %30 = arith.addf %27, %29 : vector<8x32xf32>
    %cst_15 = arith.constant 5.000000e-01 : f32
    %31 = vector.broadcast %cst_15 : f32 to vector<8x32xf32>
    %32 = arith.mulf %30, %31 : vector<8x32xf32>
    %c0_16 = arith.constant 0 : index
    %c0_17 = arith.constant 0 : index
    %33 = vector.load %arg6[%c0_16, %c0_17] : memref<32x32xf32, #tpu.memory_space<vmem>>, vector<32x32xf32>
    %cst_18 = arith.constant dense<0.000000e+00> : vector<8x32xf32>
    %34 = tpu.matmul %25, %33, %cst_18 {dimension_numbers = #tpu.dot_dimension_numbers<[1], [0], [0], [1], [0, 0, 1, 1], [], []>} : vector<8x32xf32>, vector<32x32xf32>, vector<8x32xf32> -> vector<8x32xf32>
    %c0_19 = arith.constant 0 : index
    %c0_20 = arith.constant 0 : index
    %35 = vector.load %arg9[%c0_19, %c0_20] : memref<1x32xf32, #tpu.memory_space<vmem>>, vector<1x32xf32>
    %36 = vector.broadcast %35 : vector<1x32xf32> to vector<8x32xf32>
    %37 = arith.addf %34, %36 : vector<8x32xf32>
    %c0_21 = arith.constant 0 : index
    %c0_22 = arith.constant 0 : index
    %38 = vector.load %arg7[%c0_21, %c0_22] : memref<32x32xf32, #tpu.memory_space<vmem>>, vector<32x32xf32>
    %cst_23 = arith.constant dense<0.000000e+00> : vector<8x32xf32>
    %39 = tpu.matmul %25, %38, %cst_23 {dimension_numbers = #tpu.dot_dimension_numbers<[1], [0], [0], [1], [0, 0, 1, 1], [], []>} : vector<8x32xf32>, vector<32x32xf32>, vector<8x32xf32> -> vector<8x32xf32>
    %c0_24 = arith.constant 0 : index
    %c0_25 = arith.constant 0 : index
    %40 = vector.load %arg10[%c0_24, %c0_25] : memref<1x32xf32, #tpu.memory_space<vmem>>, vector<1x32xf32>
    %41 = vector.broadcast %40 : vector<1x32xf32> to vector<8x32xf32>
    %42 = arith.addf %39, %41 : vector<8x32xf32>
    %c0_26 = arith.constant 0 : index
    %c0_27 = arith.constant 0 : index
    %c0_28 = arith.constant 0 : index
    %43 = vector.load %arg2[%c0_26, %c0_27, %c0_28] : memref<1x1x8xf32, #tpu.memory_space<vmem>>, vector<1x1x8xf32>
    %44 = vector.shape_cast %43 : vector<1x1x8xf32> to vector<1x8xf32>
    %45 = vector.extract_strided_slice %32 {offsets = [0, 0], sizes = [8, 4], strides = [1, 1]} : vector<8x32xf32> to vector<8x4xf32>
    %46 = vector.extract_strided_slice %37 {offsets = [0, 0], sizes = [8, 4], strides = [1, 1]} : vector<8x32xf32> to vector<8x4xf32>
    %cst_29 = arith.constant dense<0.000000e+00> : vector<8x8xf32>
    %47 = tpu.matmul %45, %46, %cst_29 {dimension_numbers = #tpu.dot_dimension_numbers<[1], [1], [0], [0], [0, 0, 1, 0], [], []>} : vector<8x4xf32>, vector<8x4xf32>, vector<8x8xf32> -> vector<8x8xf32>
    %48 = vector.extract_strided_slice %32 {offsets = [0, 4], sizes = [8, 4], strides = [1, 1]} : vector<8x32xf32> to vector<8x4xf32>
    %49 = vector.extract_strided_slice %37 {offsets = [0, 4], sizes = [8, 4], strides = [1, 1]} : vector<8x32xf32> to vector<8x4xf32>
    %cst_30 = arith.constant dense<0.000000e+00> : vector<8x8xf32>
    %50 = tpu.matmul %48, %49, %cst_30 {dimension_numbers = #tpu.dot_dimension_numbers<[1], [1], [0], [0], [0, 0, 1, 0], [], []>} : vector<8x4xf32>, vector<8x4xf32>, vector<8x8xf32> -> vector<8x8xf32>
    %51 = vector.extract_strided_slice %32 {offsets = [0, 8], sizes = [8, 4], strides = [1, 1]} : vector<8x32xf32> to vector<8x4xf32>
    %52 = vector.extract_strided_slice %37 {offsets = [0, 8], sizes = [8, 4], strides = [1, 1]} : vector<8x32xf32> to vector<8x4xf32>
    %cst_31 = arith.constant dense<0.000000e+00> : vector<8x8xf32>
    %53 = tpu.matmul %51, %52, %cst_31 {dimension_numbers = #tpu.dot_dimension_numbers<[1], [1], [0], [0], [0, 0, 1, 0], [], []>} : vector<8x4xf32>, vector<8x4xf32>, vector<8x8xf32> -> vector<8x8xf32>
    %54 = vector.extract_strided_slice %32 {offsets = [0, 12], sizes = [8, 4], strides = [1, 1]} : vector<8x32xf32> to vector<8x4xf32>
    %55 = vector.extract_strided_slice %37 {offsets = [0, 12], sizes = [8, 4], strides = [1, 1]} : vector<8x32xf32> to vector<8x4xf32>
    %cst_32 = arith.constant dense<0.000000e+00> : vector<8x8xf32>
    %56 = tpu.matmul %54, %55, %cst_32 {dimension_numbers = #tpu.dot_dimension_numbers<[1], [1], [0], [0], [0, 0, 1, 0], [], []>} : vector<8x4xf32>, vector<8x4xf32>, vector<8x8xf32> -> vector<8x8xf32>
    %57 = vector.extract_strided_slice %32 {offsets = [0, 16], sizes = [8, 4], strides = [1, 1]} : vector<8x32xf32> to vector<8x4xf32>
    %58 = vector.extract_strided_slice %37 {offsets = [0, 16], sizes = [8, 4], strides = [1, 1]} : vector<8x32xf32> to vector<8x4xf32>
    %cst_33 = arith.constant dense<0.000000e+00> : vector<8x8xf32>
    %59 = tpu.matmul %57, %58, %cst_33 {dimension_numbers = #tpu.dot_dimension_numbers<[1], [1], [0], [0], [0, 0, 1, 0], [], []>} : vector<8x4xf32>, vector<8x4xf32>, vector<8x8xf32> -> vector<8x8xf32>
    %60 = vector.extract_strided_slice %32 {offsets = [0, 20], sizes = [8, 4], strides = [1, 1]} : vector<8x32xf32> to vector<8x4xf32>
    %61 = vector.extract_strided_slice %37 {offsets = [0, 20], sizes = [8, 4], strides = [1, 1]} : vector<8x32xf32> to vector<8x4xf32>
    %cst_34 = arith.constant dense<0.000000e+00> : vector<8x8xf32>
    %62 = tpu.matmul %60, %61, %cst_34 {dimension_numbers = #tpu.dot_dimension_numbers<[1], [1], [0], [0], [0, 0, 1, 0], [], []>} : vector<8x4xf32>, vector<8x4xf32>, vector<8x8xf32> -> vector<8x8xf32>
    %63 = vector.extract_strided_slice %32 {offsets = [0, 24], sizes = [8, 4], strides = [1, 1]} : vector<8x32xf32> to vector<8x4xf32>
    %64 = vector.extract_strided_slice %37 {offsets = [0, 24], sizes = [8, 4], strides = [1, 1]} : vector<8x32xf32> to vector<8x4xf32>
    %cst_35 = arith.constant dense<0.000000e+00> : vector<8x8xf32>
    %65 = tpu.matmul %63, %64, %cst_35 {dimension_numbers = #tpu.dot_dimension_numbers<[1], [1], [0], [0], [0, 0, 1, 0], [], []>} : vector<8x4xf32>, vector<8x4xf32>, vector<8x8xf32> -> vector<8x8xf32>
    %66 = vector.extract_strided_slice %32 {offsets = [0, 28], sizes = [8, 4], strides = [1, 1]} : vector<8x32xf32> to vector<8x4xf32>
    %67 = vector.extract_strided_slice %37 {offsets = [0, 28], sizes = [8, 4], strides = [1, 1]} : vector<8x32xf32> to vector<8x4xf32>
    %cst_36 = arith.constant dense<0.000000e+00> : vector<8x8xf32>
    %68 = tpu.matmul %66, %67, %cst_36 {dimension_numbers = #tpu.dot_dimension_numbers<[1], [1], [0], [0], [0, 0, 1, 0], [], []>} : vector<8x4xf32>, vector<8x4xf32>, vector<8x8xf32> -> vector<8x8xf32>
    %69 = tpu.concatenate %47, %50, %53, %56, %59, %62, %65, %68 in 0 : vector<8x8xf32>, vector<8x8xf32>, vector<8x8xf32>, vector<8x8xf32>, vector<8x8xf32>, vector<8x8xf32>, vector<8x8xf32>, vector<8x8xf32> -> vector<64x8xf32>
    %70 = vector.broadcast %44 : vector<1x8xf32> to vector<64x8xf32>
    %71 = arith.addf %69, %70 : vector<64x8xf32>
    %cst_37 = arith.constant dense<0xFF800000> : vector<64xf32>
    %72 = vector.multi_reduction <maximumf>, %71, %cst_37 [1] : vector<64x8xf32> to vector<64xf32>
    %73 = vector.shape_cast %72 : vector<64xf32> to vector<64x1xf32>
    %74 = vector.broadcast %73 : vector<64x1xf32> to vector<64x8xf32>
    %75 = arith.subf %71, %74 : vector<64x8xf32>
    %76 = math.exp %75 : vector<64x8xf32>
    %cst_38 = arith.constant dense<0.000000e+00> : vector<64xf32>
    %77 = vector.multi_reduction <add>, %76, %cst_38 [1] : vector<64x8xf32> to vector<64xf32>
    %78 = vector.shape_cast %77 : vector<64xf32> to vector<64x1xf32>
    %79 = tpu.reciprocal %78 {approx = true} : vector<64x1xf32> -> vector<64x1xf32>
    %80 = vector.broadcast %79 : vector<64x1xf32> to vector<64x8xf32>
    %81 = arith.mulf %76, %80 : vector<64x8xf32>
    %82 = vector.extract_strided_slice %81 {offsets = [0, 0], sizes = [8, 8], strides = [1, 1]} : vector<64x8xf32> to vector<8x8xf32>
    %83 = vector.extract_strided_slice %42 {offsets = [0, 0], sizes = [8, 4], strides = [1, 1]} : vector<8x32xf32> to vector<8x4xf32>
    %cst_39 = arith.constant dense<0.000000e+00> : vector<8x4xf32>
    %84 = tpu.matmul %82, %83, %cst_39 {dimension_numbers = #tpu.dot_dimension_numbers<[1], [0], [0], [1], [0, 0, 1, 1], [], []>} : vector<8x8xf32>, vector<8x4xf32>, vector<8x4xf32> -> vector<8x4xf32>
    %85 = vector.extract_strided_slice %81 {offsets = [8, 0], sizes = [8, 8], strides = [1, 1]} : vector<64x8xf32> to vector<8x8xf32>
    %86 = vector.extract_strided_slice %42 {offsets = [0, 4], sizes = [8, 4], strides = [1, 1]} : vector<8x32xf32> to vector<8x4xf32>
    %cst_40 = arith.constant dense<0.000000e+00> : vector<8x4xf32>
    %87 = tpu.matmul %85, %86, %cst_40 {dimension_numbers = #tpu.dot_dimension_numbers<[1], [0], [0], [1], [0, 0, 1, 1], [], []>} : vector<8x8xf32>, vector<8x4xf32>, vector<8x4xf32> -> vector<8x4xf32>
    %88 = vector.extract_strided_slice %81 {offsets = [16, 0], sizes = [8, 8], strides = [1, 1]} : vector<64x8xf32> to vector<8x8xf32>
    %89 = vector.extract_strided_slice %42 {offsets = [0, 8], sizes = [8, 4], strides = [1, 1]} : vector<8x32xf32> to vector<8x4xf32>
    %cst_41 = arith.constant dense<0.000000e+00> : vector<8x4xf32>
    %90 = tpu.matmul %88, %89, %cst_41 {dimension_numbers = #tpu.dot_dimension_numbers<[1], [0], [0], [1], [0, 0, 1, 1], [], []>} : vector<8x8xf32>, vector<8x4xf32>, vector<8x4xf32> -> vector<8x4xf32>
    %91 = vector.extract_strided_slice %81 {offsets = [24, 0], sizes = [8, 8], strides = [1, 1]} : vector<64x8xf32> to vector<8x8xf32>
    %92 = vector.extract_strided_slice %42 {offsets = [0, 12], sizes = [8, 4], strides = [1, 1]} : vector<8x32xf32> to vector<8x4xf32>
    %cst_42 = arith.constant dense<0.000000e+00> : vector<8x4xf32>
    %93 = tpu.matmul %91, %92, %cst_42 {dimension_numbers = #tpu.dot_dimension_numbers<[1], [0], [0], [1], [0, 0, 1, 1], [], []>} : vector<8x8xf32>, vector<8x4xf32>, vector<8x4xf32> -> vector<8x4xf32>
    %94 = vector.extract_strided_slice %81 {offsets = [32, 0], sizes = [8, 8], strides = [1, 1]} : vector<64x8xf32> to vector<8x8xf32>
    %95 = vector.extract_strided_slice %42 {offsets = [0, 16], sizes = [8, 4], strides = [1, 1]} : vector<8x32xf32> to vector<8x4xf32>
    %cst_43 = arith.constant dense<0.000000e+00> : vector<8x4xf32>
    %96 = tpu.matmul %94, %95, %cst_43 {dimension_numbers = #tpu.dot_dimension_numbers<[1], [0], [0], [1], [0, 0, 1, 1], [], []>} : vector<8x8xf32>, vector<8x4xf32>, vector<8x4xf32> -> vector<8x4xf32>
    %97 = vector.extract_strided_slice %81 {offsets = [40, 0], sizes = [8, 8], strides = [1, 1]} : vector<64x8xf32> to vector<8x8xf32>
    %98 = vector.extract_strided_slice %42 {offsets = [0, 20], sizes = [8, 4], strides = [1, 1]} : vector<8x32xf32> to vector<8x4xf32>
    %cst_44 = arith.constant dense<0.000000e+00> : vector<8x4xf32>
    %99 = tpu.matmul %97, %98, %cst_44 {dimension_numbers = #tpu.dot_dimension_numbers<[1], [0], [0], [1], [0, 0, 1, 1], [], []>} : vector<8x8xf32>, vector<8x4xf32>, vector<8x4xf32> -> vector<8x4xf32>
    %100 = vector.extract_strided_slice %81 {offsets = [48, 0], sizes = [8, 8], strides = [1, 1]} : vector<64x8xf32> to vector<8x8xf32>
    %101 = vector.extract_strided_slice %42 {offsets = [0, 24], sizes = [8, 4], strides = [1, 1]} : vector<8x32xf32> to vector<8x4xf32>
    %cst_45 = arith.constant dense<0.000000e+00> : vector<8x4xf32>
    %102 = tpu.matmul %100, %101, %cst_45 {dimension_numbers = #tpu.dot_dimension_numbers<[1], [0], [0], [1], [0, 0, 1, 1], [], []>} : vector<8x8xf32>, vector<8x4xf32>, vector<8x4xf32> -> vector<8x4xf32>
    %103 = vector.extract_strided_slice %81 {offsets = [56, 0], sizes = [8, 8], strides = [1, 1]} : vector<64x8xf32> to vector<8x8xf32>
    %104 = vector.extract_strided_slice %42 {offsets = [0, 28], sizes = [8, 4], strides = [1, 1]} : vector<8x32xf32> to vector<8x4xf32>
    %cst_46 = arith.constant dense<0.000000e+00> : vector<8x4xf32>
    %105 = tpu.matmul %103, %104, %cst_46 {dimension_numbers = #tpu.dot_dimension_numbers<[1], [0], [0], [1], [0, 0, 1, 1], [], []>} : vector<8x8xf32>, vector<8x4xf32>, vector<8x4xf32> -> vector<8x4xf32>
    %106 = tpu.concatenate %84, %87, %90, %93, %96, %99, %102, %105 in 1 : vector<8x4xf32>, vector<8x4xf32>, vector<8x4xf32>, vector<8x4xf32>, vector<8x4xf32>, vector<8x4xf32>, vector<8x4xf32>, vector<8x4xf32> -> vector<8x32xf32>
    %c0_47 = arith.constant 0 : index
    %c0_48 = arith.constant 0 : index
    %107 = vector.load %arg11[%c0_47, %c0_48] : memref<32x32xf32, #tpu.memory_space<vmem>>, vector<32x32xf32>
    %cst_49 = arith.constant dense<0.000000e+00> : vector<8x32xf32>
    %108 = tpu.matmul %106, %107, %cst_49 {dimension_numbers = #tpu.dot_dimension_numbers<[1], [0], [0], [1], [0, 0, 1, 1], [], []>} : vector<8x32xf32>, vector<32x32xf32>, vector<8x32xf32> -> vector<8x32xf32>
    %c0_50 = arith.constant 0 : index
    %c0_51 = arith.constant 0 : index
    %109 = vector.load %arg12[%c0_50, %c0_51] : memref<1x32xf32, #tpu.memory_space<vmem>>, vector<1x32xf32>
    %110 = vector.broadcast %109 : vector<1x32xf32> to vector<8x32xf32>
    %111 = arith.addf %108, %110 : vector<8x32xf32>
    %112 = arith.addf %111, %1 : vector<8x32xf32>
    %c0_52 = arith.constant 0 : index
    %c0_53 = arith.constant 0 : index
    %c0_54 = arith.constant 0 : index
    %113 = vector.load %arg13[%c0_52, %c0_53, %c0_54] : memref<1x8x32xf32, #tpu.memory_space<vmem>>, vector<1x8x32xf32>
    %114 = vector.shape_cast %113 : vector<1x8x32xf32> to vector<8x32xf32>
    %115 = vector.shape_cast %112 : vector<8x32xf32> to vector<1x8x32xf32>
    tpu.vector_store %arg13[%c0_52, %c0_53, %c0_54], %115 {strides = array<i32>} : memref<1x8x32xf32, #tpu.memory_space<vmem>>, vector<1x8x32xf32>,
    return
  }
  func.func @transform_0(%arg0: i32) -> (i32, i32, i32) {
    %c0_i32 = arith.constant 0 : i32
    %c0_i32_0 = arith.constant 0 : i32
    %c0_i32_1 = arith.constant 0 : i32
    return %arg0, %c0_i32, %c0_i32_0 : i32, i32, i32
  }
  func.func @transform_1(%arg0: i32) -> (i32, i32, i32) {
    %c0_i32 = arith.constant 0 : i32
    %c0_i32_0 = arith.constant 0 : i32
    %c0_i32_1 = arith.constant 0 : i32
    return %arg0, %c0_i32, %c0_i32_0 : i32, i32, i32
  }
  func.func @transform_2(%arg0: i32) -> (i32, i32) {
    %c0_i32 = arith.constant 0 : i32
    %c0_i32_0 = arith.constant 0 : i32
    %c0_i32_1 = arith.constant 0 : i32
    return %c0_i32, %c0_i32_0 : i32, i32
  }
  func.func @transform_3(%arg0: i32) -> (i32, i32) {
    %c0_i32 = arith.constant 0 : i32
    %c0_i32_0 = arith.constant 0 : i32
    %c0_i32_1 = arith.constant 0 : i32
    return %c0_i32, %c0_i32_0 : i32, i32
  }
  func.func @transform_4(%arg0: i32) -> (i32, i32) {
    %c0_i32 = arith.constant 0 : i32
    %c0_i32_0 = arith.constant 0 : i32
    %c0_i32_1 = arith.constant 0 : i32
    return %c0_i32, %c0_i32_0 : i32, i32
  }
  func.func @transform_5(%arg0: i32) -> (i32, i32) {
    %c0_i32 = arith.constant 0 : i32
    %c0_i32_0 = arith.constant 0 : i32
    %c0_i32_1 = arith.constant 0 : i32
    return %c0_i32, %c0_i32_0 : i32, i32
  }
  func.func @transform_6(%arg0: i32) -> (i32, i32) {
    %c0_i32 = arith.constant 0 : i32
    %c0_i32_0 = arith.constant 0 : i32
    %c0_i32_1 = arith.constant 0 : i32
    return %c0_i32, %c0_i32_0 : i32, i32
  }
  func.func @transform_7(%arg0: i32) -> (i32, i32) {
    %c0_i32 = arith.constant 0 : i32
    %c0_i32_0 = arith.constant 0 : i32
    %c0_i32_1 = arith.constant 0 : i32
    return %c0_i32, %c0_i32_0 : i32, i32
  }
  func.func @transform_8(%arg0: i32) -> (i32, i32) {
    %c0_i32 = arith.constant 0 : i32
    %c0_i32_0 = arith.constant 0 : i32
    %c0_i32_1 = arith.constant 0 : i32
    return %c0_i32, %c0_i32_0 : i32, i32
  }
  func.func @transform_9(%arg0: i32) -> (i32, i32) {
    %c0_i32 = arith.constant 0 : i32
    %c0_i32_0 = arith.constant 0 : i32
    %c0_i32_1 = arith.constant 0 : i32
    return %c0_i32, %c0_i32_0 : i32, i32
  }
  func.func @transform_10(%arg0: i32) -> (i32, i32) {
    %c0_i32 = arith.constant 0 : i32
    %c0_i32_0 = arith.constant 0 : i32
    %c0_i32_1 = arith.constant 0 : i32
    return %c0_i32, %c0_i32_0 : i32, i32
  }
  func.func @transform_11(%arg0: i32) -> (i32, i32) {
    %c0_i32 = arith.constant 0 : i32
    %c0_i32_0 = arith.constant 0 : i32
    %c0_i32_1 = arith.constant 0 : i32
    return %c0_i32, %c0_i32_0 : i32, i32
  }
  func.func @transform_12(%arg0: i32) -> (i32, i32, i32) {
    %c0_i32 = arith.constant 0 : i32
    %c0_i32_0 = arith.constant 0 : i32
    %c0_i32_1 = arith.constant 0 : i32
    return %arg0, %c0_i32, %c0_i32_0 : i32, i32, i32
  }
}

module attributes {stable_mosaic.version = 11 : i64} {
  func.func @ffn_block_kernel(%arg0: i32, %arg1: memref<1x8x32xf32, #tpu.memory_space<vmem>>, %arg2: memref<1x32xf32, #tpu.memory_space<vmem>>, %arg3: memref<1x32xf32, #tpu.memory_space<vmem>>, %arg4: memref<32x32xf32, #tpu.memory_space<vmem>>, %arg5: memref<1x32xf32, #tpu.memory_space<vmem>>, %arg6: memref<32x32xf32, #tpu.memory_space<vmem>>, %arg7: memref<1x32xf32, #tpu.memory_space<vmem>>, %arg8: memref<1x8x32xf32, #tpu.memory_space<vmem>>) attributes {dimension_semantics = [#tpu.dimension_semantics<parallel>], iteration_bounds = array<i64: 2>, scalar_prefetch = 0 : i64, scratch_operands = 0 : i64, tpu.core_type = #tpu.core_type<tc>, window_params = [{transform_indices = @transform_0, window_bounds = array<i64: 1, 8, 32>}, {pipeline_mode = #tpu.pipeline_mode<synchronous>, transform_indices = @transform_1, window_bounds = array<i64: 1, 32>}, {pipeline_mode = #tpu.pipeline_mode<synchronous>, transform_indices = @transform_2, window_bounds = array<i64: 1, 32>}, {pipeline_mode = #tpu.pipeline_mode<synchronous>, transform_indices = @transform_3, window_bounds = array<i64: 32, 32>}, {pipeline_mode = #tpu.pipeline_mode<synchronous>, transform_indices = @transform_4, window_bounds = array<i64: 1, 32>}, {pipeline_mode = #tpu.pipeline_mode<synchronous>, transform_indices = @transform_5, window_bounds = array<i64: 32, 32>}, {pipeline_mode = #tpu.pipeline_mode<synchronous>, transform_indices = @transform_6, window_bounds = array<i64: 1, 32>}, {transform_indices = @transform_7, window_bounds = array<i64: 1, 8, 32>}]} {
    %c0 = arith.constant 0 : index
    %c0_0 = arith.constant 0 : index
    %c0_1 = arith.constant 0 : index
    %0 = vector.load %arg1[%c0, %c0_0, %c0_1] : memref<1x8x32xf32, #tpu.memory_space<vmem>>, vector<1x8x32xf32>
    %1 = vector.shape_cast %0 : vector<1x8x32xf32> to vector<8x32xf32>
    %c0_2 = arith.constant 0 : index
    %c0_3 = arith.constant 0 : index
    %2 = vector.load %arg2[%c0_2, %c0_3] : memref<1x32xf32, #tpu.memory_space<vmem>>, vector<1x32xf32>
    %c0_4 = arith.constant 0 : index
    %c0_5 = arith.constant 0 : index
    %3 = vector.load %arg3[%c0_4, %c0_5] : memref<1x32xf32, #tpu.memory_space<vmem>>, vector<1x32xf32>
    %cst = arith.constant dense<0.000000e+00> : vector<8xf32>
    %4 = vector.multi_reduction <add>, %1, %cst [1] : vector<8x32xf32> to vector<8xf32>
    %5 = vector.shape_cast %4 : vector<8xf32> to vector<8x1xf32>
    %cst_6 = arith.constant 3.200000e+01 : f32
    %6 = vector.broadcast %cst_6 : f32 to vector<8x1xf32>
    %7 = arith.divf %5, %6 : vector<8x1xf32>
    %8 = vector.broadcast %7 : vector<8x1xf32> to vector<8x32xf32>
    %9 = arith.subf %1, %8 : vector<8x32xf32>
    %10 = arith.mulf %9, %9 : vector<8x32xf32>
    %cst_7 = arith.constant dense<0.000000e+00> : vector<8xf32>
    %11 = vector.multi_reduction <add>, %10, %cst_7 [1] : vector<8x32xf32> to vector<8xf32>
    %12 = vector.shape_cast %11 : vector<8xf32> to vector<8x1xf32>
    %cst_8 = arith.constant 3.200000e+01 : f32
    %13 = vector.broadcast %cst_8 : f32 to vector<8x1xf32>
    %14 = arith.divf %12, %13 : vector<8x1xf32>
    %15 = vector.broadcast %7 : vector<8x1xf32> to vector<8x32xf32>
    %16 = arith.subf %1, %15 : vector<8x32xf32>
    %cst_9 = arith.constant 9.99999974E-6 : f32
    %17 = vector.broadcast %cst_9 : f32 to vector<8x1xf32>
    %18 = arith.addf %14, %17 : vector<8x1xf32>
    %19 = math.rsqrt %18 : vector<8x1xf32>
    %20 = vector.broadcast %19 : vector<8x1xf32> to vector<8x32xf32>
    %21 = arith.mulf %16, %20 : vector<8x32xf32>
    %22 = vector.broadcast %2 : vector<1x32xf32> to vector<8x32xf32>
    %23 = arith.mulf %21, %22 : vector<8x32xf32>
    %24 = vector.broadcast %3 : vector<1x32xf32> to vector<8x32xf32>
    %25 = arith.addf %23, %24 : vector<8x32xf32>
    %c0_10 = arith.constant 0 : index
    %c0_11 = arith.constant 0 : index
    %26 = vector.load %arg4[%c0_10, %c0_11] : memref<32x32xf32, #tpu.memory_space<vmem>>, vector<32x32xf32>
    %cst_12 = arith.constant dense<0.000000e+00> : vector<8x32xf32>
    %27 = tpu.matmul %25, %26, %cst_12 {dimension_numbers = #tpu.dot_dimension_numbers<[1], [0], [0], [1], [0, 0, 1, 1], [], []>} : vector<8x32xf32>, vector<32x32xf32>, vector<8x32xf32> -> vector<8x32xf32>
    %c0_13 = arith.constant 0 : index
    %c0_14 = arith.constant 0 : index
    %28 = vector.load %arg5[%c0_13, %c0_14] : memref<1x32xf32, #tpu.memory_space<vmem>>, vector<1x32xf32>
    %29 = vector.broadcast %28 : vector<1x32xf32> to vector<8x32xf32>
    %30 = arith.addf %27, %29 : vector<8x32xf32>
    %cst_15 = arith.constant 0.000000e+00 : f32
    %31 = vector.broadcast %cst_15 : f32 to vector<8x32xf32>
    %32 = arith.maximumf %30, %31 : vector<8x32xf32>
    %c0_16 = arith.constant 0 : index
    %c0_17 = arith.constant 0 : index
    %33 = vector.load %arg6[%c0_16, %c0_17] : memref<32x32xf32, #tpu.memory_space<vmem>>, vector<32x32xf32>
    %cst_18 = arith.constant dense<0.000000e+00> : vector<8x32xf32>
    %34 = tpu.matmul %32, %33, %cst_18 {dimension_numbers = #tpu.dot_dimension_numbers<[1], [0], [0], [1], [0, 0, 1, 1], [], []>} : vector<8x32xf32>, vector<32x32xf32>, vector<8x32xf32> -> vector<8x32xf32>
    %c0_19 = arith.constant 0 : index
    %c0_20 = arith.constant 0 : index
    %35 = vector.load %arg7[%c0_19, %c0_20] : memref<1x32xf32, #tpu.memory_space<vmem>>, vector<1x32xf32>
    %36 = vector.broadcast %35 : vector<1x32xf32> to vector<8x32xf32>
    %37 = arith.addf %34, %36 : vector<8x32xf32>
    %cst_21 = arith.constant 0.000000e+00 : f32
    %38 = vector.broadcast %cst_21 : f32 to vector<8x32xf32>
    %39 = arith.maximumf %37, %38 : vector<8x32xf32>
    %40 = arith.addf %39, %1 : vector<8x32xf32>
    %c0_22 = arith.constant 0 : index
    %c0_23 = arith.constant 0 : index
    %c0_24 = arith.constant 0 : index
    %41 = vector.load %arg8[%c0_22, %c0_23, %c0_24] : memref<1x8x32xf32, #tpu.memory_space<vmem>>, vector<1x8x32xf32>
    %42 = vector.shape_cast %41 : vector<1x8x32xf32> to vector<8x32xf32>
    %43 = vector.shape_cast %40 : vector<8x32xf32> to vector<1x8x32xf32>
    tpu.vector_store %arg8[%c0_22, %c0_23, %c0_24], %43 {strides = array<i32>} : memref<1x8x32xf32, #tpu.memory_space<vmem>>, vector<1x8x32xf32>,
    return
  }
  func.func @transform_0(%arg0: i32) -> (i32, i32, i32) {
    %c0_i32 = arith.constant 0 : i32
    %c0_i32_0 = arith.constant 0 : i32
    %c0_i32_1 = arith.constant 0 : i32
    return %arg0, %c0_i32, %c0_i32_0 : i32, i32, i32
  }
  func.func @transform_1(%arg0: i32) -> (i32, i32) {
    %c0_i32 = arith.constant 0 : i32
    %c0_i32_0 = arith.constant 0 : i32
    %c0_i32_1 = arith.constant 0 : i32
    return %c0_i32, %c0_i32_0 : i32, i32
  }
  func.func @transform_2(%arg0: i32) -> (i32, i32) {
    %c0_i32 = arith.constant 0 : i32
    %c0_i32_0 = arith.constant 0 : i32
    %c0_i32_1 = arith.constant 0 : i32
    return %c0_i32, %c0_i32_0 : i32, i32
  }
  func.func @transform_3(%arg0: i32) -> (i32, i32) {
    %c0_i32 = arith.constant 0 : i32
    %c0_i32_0 = arith.constant 0 : i32
    %c0_i32_1 = arith.constant 0 : i32
    return %c0_i32, %c0_i32_0 : i32, i32
  }
  func.func @transform_4(%arg0: i32) -> (i32, i32) {
    %c0_i32 = arith.constant 0 : i32
    %c0_i32_0 = arith.constant 0 : i32
    %c0_i32_1 = arith.constant 0 : i32
    return %c0_i32, %c0_i32_0 : i32, i32
  }
  func.func @transform_5(%arg0: i32) -> (i32, i32) {
    %c0_i32 = arith.constant 0 : i32
    %c0_i32_0 = arith.constant 0 : i32
    %c0_i32_1 = arith.constant 0 : i32
    return %c0_i32, %c0_i32_0 : i32, i32
  }
  func.func @transform_6(%arg0: i32) -> (i32, i32) {
    %c0_i32 = arith.constant 0 : i32
    %c0_i32_0 = arith.constant 0 : i32
    %c0_i32_1 = arith.constant 0 : i32
    return %c0_i32, %c0_i32_0 : i32, i32
  }
  func.func @transform_7(%arg0: i32) -> (i32, i32, i32) {
    %c0_i32 = arith.constant 0 : i32
    %c0_i32_0 = arith.constant 0 : i32
    %c0_i32_1 = arith.constant 0 : i32
    return %arg0, %c0_i32, %c0_i32_0 : i32, i32, i32
  }
}

</mosaic_0001>

<llo_original>
// kernel: encoder_block_forward.5
$region0: #{encoder_block_forward.5}
  #allocation0 [shape = 'u32[]', space=smem, size = 0x4, offset = 0x4, fixed_abs, tag = 'smem constant byte address 0x4 - core index']
  #allocation1 [shape = 'u32[144,128]{1,0:T(1,128)}', space=vmem, size = 0x12000, scoped, tag = 'internal scratch']
  %s0 = inlined_call_operand.vmem [shape: f32[2,8,32], index: 0, kind: input, shape index: {}]
  %s1 = inlined_call_operand.vmem [shape: f32[1,32], index: 1, kind: input, shape index: {}]
  %s2 = inlined_call_operand.vmem [shape: f32[1,32], index: 2, kind: input, shape index: {}]
  %s3 = inlined_call_operand.vmem [shape: f32[160,32], index: 3, kind: input, shape index: {}]
  %s4 = inlined_call_operand.vmem [shape: f32[1,32], index: 4, kind: input, shape index: {}]
  %s5 = inlined_call_operand.vmem [shape: f32[2,8,32], index: 5, kind: output, shape index: {}]
  %s6 = sld [smem:[#allocation0]]
  $region53: #{encoder_block_forward.5} parent=0
    _
  %s8 = ssub.s32 1, %s6
  %s9 = scalar_select 0, %s8, %s6
  loop: start=0, step=1, limit=4
  $region2: #{encoder_block_forward.5} parent=0 // loop_pre_header
    _
  $region3: #{encoder_block_forward.5} parent=0 // loop_header
    %s11 = sphi 0, %s15
    %p12 = scmp.ge.s32.totalorder %s11, 4
    %s21 = sphi 0, %s23
    %s24 = sphi 0, %s21
    %s25 = sphi 0, %s24
    %s41 = sphi 0, %s25
    %s45 = sphi 0, %s45
    %s47 = sphi 0, %s45
    %s48 = sphi 0, %s47
    %s62 = sphi 0, %s48
    %s66 = sphi 0, %s66
    %s68 = sphi 0, %s66
    %s69 = sphi 0, %s68
    %s83 = sphi 0, %s69
    %s87 = sphi 0, %s87
    %s89 = sphi 0, %s87
    %s90 = sphi 0, %s89
    %s104 = sphi 0, %s90
    %s108 = sphi 0, %s108
    %s110 = sphi 0, %s108
    %s111 = sphi 0, %s110
    %s125 = sphi 0, %s111
    %s131 = sphi 0, %s133
    %s134 = sphi 0, %s131
    %s135 = sphi 0, %s134
    %s151 = sphi 0, %s135
  $region4: #{encoder_block_forward.5} parent=0 // loop_header_branch
    %14 = sbr.rel (%p12) target = $region8
  $region5: #{encoder_block_forward.5} parent=0 // loop_body
    %s16 = ssub.s32 %s11, 1
    %s17 = ssub.s32 %s11, 2
    %s18 = sadd.s32 %s11, 1
    %s19 = ssub.s32 %s11, %s18
    %p20 = scmp.eq.s32.totalorder %s19, 0
    %s22 = sadd.s32 %s21, 1
    %s23 = scalar_select %p20, %s21, %s22
    %p26 = pneg %p20
    %p27 = scmp.eq.s32.totalorder %s11, 1
    %p28 = por %p26, %p27
    %p29 = scmp.ne.s32.totalorder %s21, %s24
    %p30 = scmp.eq.s32.totalorder %s11, 0
    %p31 = por %p29, %p30
    %p32 = scmp.ne.s32.totalorder %s21, %s24
    %p33 = scmp.eq.s32.totalorder %s16, 1
    %p34 = por %p32, %p33
    %p35 = scmp.ne.s32.totalorder %s24, %s25
    %p36 = scmp.eq.s32.totalorder %s16, 0
    %p37 = por %p35, %p36
    %p38 = scmp.ne.s32.totalorder %s24, %s25
    %p39 = scmp.eq.s32.totalorder %s17, 1
    %p40 = por %p38, %p39
    %p42 = scmp.ne.s32.totalorder %s25, %s41
    %p43 = scmp.eq.s32.totalorder %s17, 0
    %p44 = por %p42, %p43
    %s46 = sadd.s32 %s45, 1
    %p49 = scmp.eq.s32.totalorder %s11, 1
    %p50 = scmp.ne.s32.totalorder %s45, %s47
    %p51 = scmp.eq.s32.totalorder %s11, 0
    %p52 = por %p50, %p51
    %p53 = scmp.ne.s32.totalorder %s45, %s47
    %p54 = scmp.eq.s32.totalorder %s16, 1
    %p55 = por %p53, %p54
    %p56 = scmp.ne.s32.totalorder %s47, %s48
    %p57 = scmp.eq.s32.totalorder %s16, 0
    %p58 = por %p56, %p57
    %p59 = scmp.ne.s32.totalorder %s47, %s48
    %p60 = scmp.eq.s32.totalorder %s17, 1
    %p61 = por %p59, %p60
    %p63 = scmp.ne.s32.totalorder %s48, %s62
    %p64 = scmp.eq.s32.totalorder %s17, 0
    %p65 = por %p63, %p64
    %s67 = sadd.s32 %s66, 1
    %p70 = scmp.eq.s32.totalorder %s11, 1
    %p71 = scmp.ne.s32.totalorder %s66, %s68
    %p72 = scmp.eq.s32.totalorder %s11, 0
    %p73 = por %p71, %p72
    %p74 = scmp.ne.s32.totalorder %s66, %s68
    %p75 = scmp.eq.s32.totalorder %s16, 1
    %p76 = por %p74, %p75
    %p77 = scmp.ne.s32.totalorder %s68, %s69
    %p78 = scmp.eq.s32.totalorder %s16, 0
    %p79 = por %p77, %p78
    %p80 = scmp.ne.s32.totalorder %s68, %s69
    %p81 = scmp.eq.s32.totalorder %s17, 1
    %p82 = por %p80, %p81
    %p84 = scmp.ne.s32.totalorder %s69, %s83
    %p85 = scmp.eq.s32.totalorder %s17, 0
    %p86 = por %p84, %p85
    %s88 = sadd.s32 %s87, 1
    %p91 = scmp.eq.s32.totalorder %s11, 1
    %p92 = scmp.ne.s32.totalorder %s87, %s89
    %p93 = scmp.eq.s32.totalorder %s11, 0
    %p94 = por %p92, %p93
    %p95 = scmp.ne.s32.totalorder %s87, %s89
    %p96 = scmp.eq.s32.totalorder %s16, 1
    %p97 = por %p95, %p96
    %p98 = scmp.ne.s32.totalorder %s89, %s90
    %p99 = scmp.eq.s32.totalorder %s16, 0
    %p100 = por %p98, %p99
    %p101 = scmp.ne.s32.totalorder %s89, %s90
    %p102 = scmp.eq.s32.totalorder %s17, 1
    %p103 = por %p101, %p102
    %p105 = scmp.ne.s32.totalorder %s90, %s104
    %p106 = scmp.eq.s32.totalorder %s17, 0
    %p107 = por %p105, %p106
    %s109 = sadd.s32 %s108, 1
    %p112 = scmp.eq.s32.totalorder %s11, 1
    %p113 = scmp.ne.s32.totalorder %s108, %s110
    %p114 = scmp.eq.s32.totalorder %s11, 0
    %p115 = por %p113, %p114
    %p116 = scmp.ne.s32.totalorder %s108, %s110
    %p117 = scmp.eq.s32.totalorder %s16, 1
    %p118 = por %p116, %p117
    %p119 = scmp.ne.s32.totalorder %s110, %s111
    %p120 = scmp.eq.s32.totalorder %s16, 0
    %p121 = por %p119, %p120
    %p122 = scmp.ne.s32.totalorder %s110, %s111
    %p123 = scmp.eq.s32.totalorder %s17, 1
    %p124 = por %p122, %p123
    %p126 = scmp.ne.s32.totalorder %s111, %s125
    %p127 = scmp.eq.s32.totalorder %s17, 0
    %p128 = por %p126, %p127
    %s129 = ssub.s32 %s11, %s18
    %p130 = scmp.eq.s32.totalorder %s129, 0
    %s132 = sadd.s32 %s131, 1
    %s133 = scalar_select %p130, %s131, %s132
    %p136 = pneg %p130
    %p137 = scmp.eq.s32.totalorder %s11, 1
    %p138 = por %p136, %p137
    %p139 = scmp.ne.s32.totalorder %s131, %s134
    %p140 = scmp.eq.s32.totalorder %s11, 0
    %p141 = por %p139, %p140
    %p142 = scmp.ne.s32.totalorder %s131, %s134
    %p143 = scmp.eq.s32.totalorder %s16, 1
    %p144 = por %p142, %p143
    %p145 = scmp.ne.s32.totalorder %s134, %s135
    %p146 = scmp.eq.s32.totalorder %s16, 0
    %p147 = por %p145, %p146
    %p148 = scmp.ne.s32.totalorder %s134, %s135
    %p149 = scmp.eq.s32.totalorder %s17, 1
    %p150 = por %p148, %p149
    %p152 = scmp.ne.s32.totalorder %s135, %s151
    %p153 = scmp.eq.s32.totalorder %s17, 0
    %p154 = por %p152, %p153
    %p155 = scmp.le.s32.totalorder 1, %s11
    %p156 = scmp.lt.s32.totalorder %s11, 3
    %p157 = pnand %p155, %p156
    %p158 = pneg %p157
    // Predicated region
    $region9: #{encoder_block_forward.5} parent=5 // pred_check
      _
    $region10: #{encoder_block_forward.5} parent=5 // pred_check_branch
      %160 = sbr.rel (%p157) target = $region12
    $region11: #{encoder_block_forward.5} parent=5 // pred_region
      %s161 = ssub.s32 %s11, 1
      // Predicated region
      $region13: #{encoder_block_forward.5} parent=11 // pred_check
        %p162 = pneg %p58
      $region14: #{encoder_block_forward.5} parent=11 // pred_check_branch
        %164 = sbr.rel (%p162) target = $region16
      $region15: #{encoder_block_forward.5} parent=11 // pred_region
        _
      $region16: #{encoder_block_forward.5} parent=11 // pred_fallthru
        _
      // Predicated region
      $region17: #{encoder_block_forward.5} parent=11 // pred_check
        %p165 = pneg %p79
      $region18: #{encoder_block_forward.5} parent=11 // pred_check_branch
        %167 = sbr.rel (%p165) target = $region20
      $region19: #{encoder_block_forward.5} parent=11 // pred_region
        _
      $region20: #{encoder_block_forward.5} parent=11 // pred_fallthru
        _
      // Predicated region
      $region21: #{encoder_block_forward.5} parent=11 // pred_check
        %p168 = pneg %p100
      $region22: #{encoder_block_forward.5} parent=11 // pred_check_branch
        %170 = sbr.rel (%p168) target = $region24
      $region23: #{encoder_block_forward.5} parent=11 // pred_region
        _
      $region24: #{encoder_block_forward.5} parent=11 // pred_fallthru
        _
      // Predicated region
      $region25: #{encoder_block_forward.5} parent=11 // pred_check
        %p171 = pneg %p121
      $region26: #{encoder_block_forward.5} parent=11 // pred_check_branch
        %173 = sbr.rel (%p171) target = $region28
      $region27: #{encoder_block_forward.5} parent=11 // pred_region
        _
      $region28: #{encoder_block_forward.5} parent=11 // pred_fallthru
        _
    $region12: #{encoder_block_forward.5} parent=5 // pred_fallthru
      _
    %p174 = scmp.lt.s32.totalorder %s11, 2
    // Predicated region
    $region29: #{encoder_block_forward.5} parent=5 // pred_check
      %p175 = pneg %p174
    $region30: #{encoder_block_forward.5} parent=5 // pred_check_branch
      %177 = sbr.rel (%p175) target = $region32
    $region31: #{encoder_block_forward.5} parent=5 // pred_region
      // Predicated region
      $region33: #{encoder_block_forward.5} parent=31 // pred_check
        %p178 = pneg %p31
      $region34: #{encoder_block_forward.5} parent=31 // pred_check_branch
        %180 = sbr.rel (%p178) target = $region36
      $region35: #{encoder_block_forward.5} parent=31 // pred_region
        %p181 = scmp.lt.s32.totalorder %s11, 1
        %s182 = scalar_select %p181, %s11, 1
        %s183 = smul.addr %s182, 8
        %s184 = scalar_lea.vmem %s0, %s183
      $region36: #{encoder_block_forward.5} parent=31 // pred_fallthru
        _
    $region32: #{encoder_block_forward.5} parent=5 // pred_fallthru
      _
    %p185 = scmp.le.s32.totalorder 1, %s11
    %p186 = scmp.lt.s32.totalorder %s11, 3
    %p187 = pnand %p185, %p186
    %p188 = pneg %p187
    // Predicated region
    $region37: #{encoder_block_forward.5} parent=5 // pred_check
      _
    $region38: #{encoder_block_forward.5} parent=5 // pred_check_branch
      %190 = sbr.rel (%p187) target = $region40
    $region39: #{encoder_block_forward.5} parent=5 // pred_region
      %s191 = ssub.s32 %s11, 1
      %p192 = scmp.lt.s32.totalorder %s16, 1
      %s193 = scalar_select %p192, %s16, 1
      %s194 = smul.addr %s193, 8
      %s195 = scalar_lea.vmem %s0, %s194
      %p196 = pneg %p37
      %p197 = pneg %p34
      %p198 = pneg %p58
      %p199 = pneg %p55
      %p200 = pneg %p79
      %p201 = pneg %p76
      %p202 = pneg %p100
      %p203 = pneg %p97
      %p204 = pneg %p121
      %p205 = pneg %p118
      %p206 = pneg %p147
      %p207 = pneg %p144
      %p208 = scmp.lt.s32.totalorder %s16, 1
      %s209 = scalar_select %p208, %s16, 1
      %s210 = smul.addr %s209, 8
      %s211 = scalar_lea.vmem %s5, %s210
      %p212 = scmp.lt.s32.totalorder %s16, 1
      %s213 = scalar_select %p212, %s16, 1
      %s214 = smul.addr %s213, 8
      %s215 = scalar_lea.vmem %s0, %s214
      %p216 = scmp.lt.s32.totalorder %s16, 1
      %s217 = scalar_select %p216, %s16, 1
      %s218 = smul.addr %s217, 8
      %s219 = scalar_lea.vmem %s5, %s218
      %v220 = vld [vmem:[%s215] sm:$0xff]
      %v221 = vld [vmem:[%s1] sm:$0x1]
      %v222 = vld [vmem:[%s2] sm:$0x1]
      %vm223 = vcmask 261120
      %v224 = vsel %vm223, %v220, 0.0
      %225 = vadd.xlane.f32.xlu0 %v224
      %v226 = vpop.xlane.xlu0 %225
      %v227 = vrcp.pop 32.0
      %v228 = vmul.f32 %v226, %v227
      %v229 = vsub.f32 %v220, %v228
      %v230 = vmul.f32 %v229, %v229
      %v231 = vsel %vm223, %v230, 0.0
      %232 = vadd.xlane.f32.xlu0 %v231
      %v233 = vpop.xlane.xlu0 %232
      %v234 = vmul.f32 %v233, %v227
      %v235 = vadd.f32 %v234, 1e-05
      %v236 = vrsqrt.pop %v235
      %v237 = vmul.f32 %v229, %v236
      %v239 = vlaneseq
      %v240 = vshrl.u32 %v239, 7
      %v241 = vsub.s32 0, %v240
      %v242 = vrot.slane %v221, %v241
      %v244 = vmul.f32 %v237, %v242
      %v246 = vlaneseq
      %v247 = vshrl.u32 %v246, 7
      %v248 = vsub.s32 0, %v247
      %v249 = vrot.slane %v222, %v248
      %v251 = vadd.f32 %v244, %v249
      %v253 = vrot.slane %v251, 6
      %vm255 = vcmask 1041408
      %v256 = vsel %vm255, 0.0, %v253
      %v257 = vsel %vm255, %v253, 0.0
      %vm260 = vcmask 1046528
      %v261 = vrot.slane %v256, 1
      %v262 = vrot.slane %v257, 1
      %v263 = vsel %vm260, %v261, %v262
      %264 = vrot.lane.b32.xlu0 %v263, 32
      %v265 = vpop.permute.xlu0 %264
      %vm267 = vcmask 1045504
      %v268 = vrot.slane %v256, 2
      %v269 = vrot.slane %v257, 2
      %v270 = vsel %vm267, %v268, %v269
      %271 = vrot.lane.b32.xlu0 %v270, 64
      %v272 = vpop.permute.xlu0 %271
      %vm274 = vcmask 1044480
      %v275 = vrot.slane %v256, 3
      %v276 = vrot.slane %v257, 3
      %v277 = vsel %vm274, %v275, %v276
      %278 = vrot.lane.b32.xlu0 %v277, 96
      %v279 = vpop.permute.xlu0 %278
      %vm281 = vcmask 1043456
      %v282 = vrot.slane %v256, 4
      %v283 = vrot.slane %v257, 4
      %v284 = vsel %vm281, %v282, %v283
      %v285 = vsel %vm223, %v256, %v265
      %vm286 = vcmask 523264
      %v287 = vsel %vm286, %v285, %v272
      %vm288 = vcmask 785408
      %v289 = vsel %vm288, %v287, %v279
      %v290 = vld [vmem:[%s3] sm:$0xff]
      %v291 = vld [vmem:[%s3 + $0x8] sm:$0xff]
      %v292 = vld [vmem:[%s3 + $0x10] sm:$0xff]
      %v293 = vld [vmem:[%s3 + $0x18] sm:$0xff]
      %v294 = vld [vmem:[%s3 + $0x20] sm:$0xff]
      %v295 = vld [vmem:[%s3 + $0x28] sm:$0xff]
      %v296 = vld [vmem:[%s3 + $0x30] sm:$0xff]
      %v297 = vld [vmem:[%s3 + $0x38] sm:$0xff]
      %v298 = vld [vmem:[%s3 + $0x40] sm:$0xff]
      %v299 = vld [vmem:[%s3 + $0x48] sm:$0xff]
      %v300 = vld [vmem:[%s3 + $0x50] sm:$0xff]
      %v301 = vld [vmem:[%s3 + $0x58] sm:$0xff]
      %v302 = vld [vmem:[%s3 + $0x60] sm:$0xff]
      %v303 = vld [vmem:[%s3 + $0x68] sm:$0xff]
      %v304 = vld [vmem:[%s3 + $0x70] sm:$0xff]
      %v305 = vld [vmem:[%s3 + $0x78] sm:$0xff]
      %v306 = vld [vmem:[%s3 + $0x80] sm:$0xff]
      %v307 = vld [vmem:[%s3 + $0x88] sm:$0xff]
      %v308 = vld [vmem:[%s3 + $0x90] sm:$0xff]
      %v309 = vld [vmem:[%s3 + $0x98] sm:$0xff]
      %v310 = vld [vmem:[%s4] sm:$0x1]
      %v312 = vlaneseq
      %v313 = vshrl.u32 %v312, 7
      %v314 = vsub.s32 0, %v313
      %v315 = vrot.slane %v310, %v314
      %v317 = vsel %vm223, %v284, 0
      %319 = vmatprep.subr.mxu0 0.0
      %320 = vmatpush1.msra.mxu0 %v290
      %321 = vmatprep.subr.mxu0 0.0
      %322 = vmatpush1.msra.mxu0 %v291
      %323 = vmatprep.subr.mxu0 0.0
      %324 = vmatpush1.msra.mxu0 %v292
      %325 = vmatprep.subr.mxu0 0.0
      %326 = vmatpush1.msra.mxu0 %v293
      %327 = vmatprep.subr.mxu0 0.0
      %328 = vmatpush1.msra.mxu0 %v294
      %329 = vmatprep.subr.mxu0 0.0
      %330 = vmatpush1.msra.mxu0 %v295
      %331 = vmatprep.subr.mxu0 0.0
      %332 = vmatpush1.msra.mxu0 %v296
      %333 = vmatprep.subr.mxu0 0.0
      %334 = vmatpush1.msra.mxu0 %v297
      %335 = vmatprep.subr.mxu0 0.0
      %336 = vmatpush1.msra.mxu0 %v298
      %337 = vmatprep.subr.mxu0 0.0
      %338 = vmatpush1.msra.mxu0 %v299
      %339 = vmatprep.subr.mxu0 0.0
      %340 = vmatpush1.msra.mxu0 %v300
      %341 = vmatprep.subr.mxu0 0.0
      %342 = vmatpush1.msra.mxu0 %v301
      %343 = vmatprep.subr.mxu0 0.0
      %344 = vmatpush1.msra.mxu0 %v302
      %345 = vmatprep.subr.mxu0 0.0
      %346 = vmatpush1.msra.mxu0 %v303
      %347 = vmatprep.subr.mxu0 0.0
      %348 = vmatpush1.msra.mxu0 %v304
      %349 = vmatprep.subr.mxu0 0.0
      %350 = vmatpush1.msra.mxu0 %v305
      %351 = vmatprep.subr.mxu0 0.0
      %352 = vmatpush1.msra.mxu0 %v306
      %353 = vmatprep.subr.mxu0 0.0
      %354 = vmatpush1.msra.mxu0 %v307
      %355 = vmatprep.subr.mxu0 0.0
      %356 = vmatpush1.msra.mxu0 %v308
      %357 = vmatprep.subr.mxu0 0.0
      %358 = vmatpush1.msra.mxu0 %v309
      %359 = vmatprep.subr.mxu0 0.0
      %360 = vmatpush1.msra.mxu0 0.0
      %361 = vmatprep.subr.mxu0 0.0
      %362 = vmatpush1.msra.mxu0 0.0
      %363 = vmatprep.subr.mxu0 0.0
      %364 = vmatpush1.msra.mxu0 0.0
      %365 = vmatprep.subr.mxu0 0.0
      %366 = vmatpush1.msra.mxu0 0.0
      %367 = vmatprep.subr.mxu0 0.0
      %368 = vmatpush1.msra.mxu0 0.0
      %369 = vmatprep.subr.mxu0 0.0
      %370 = vmatpush1.msra.mxu0 0.0
      %371 = vmatprep.subr.mxu0 0.0
      %372 = vmatpush1.msra.mxu0 0.0
      %373 = vmatprep.subr.mxu0 0.0
      %374 = vmatpush1.msra.mxu0 0.0
      %375 = vmatprep.subr.mxu0 0.0
      %376 = vmatpush1.msra.mxu0 0.0
      %377 = vmatprep.subr.mxu0 0.0
      %378 = vmatpush1.msra.mxu0 0.0
      %379 = vmatprep.subr.mxu0 0.0
      %380 = vmatpush1.msra.mxu0 0.0
      %381 = vmatprep.subr.mxu0 0.0
      %382 = vmatpush1.msra.mxu0 0.0
      %383 = vmatprep.mubr.f32.mxu0 %v317
      %384 = vmatmul.mubr.f32.gmra.mrb[0].mxu0 %v289
      %v385 = vpop.f32.mrb[0].mxu0
      %v386 = vadd.f32 %v315, %v385
      %v387 = vpop.f32.mrb[0].mxu0
      %388 = vdwg.mxu0
      %v389 = vmax.f32 %v386, 0.0
      %v390 = vadd.f32 %v389, %v220
      %391 = vst.msk [vmem:[%s219] sm:$0xff] %vm223, %v390
      %p392 = scmp.lt.s32.totalorder %s16, 1
      %s393 = scalar_select %p392, %s16, 1
      %s394 = smul.addr %s393, 8
      %s395 = scalar_lea.vmem %s5, %s394
      // Predicated region
      $region41: #{encoder_block_forward.5} parent=39 // pred_check
        %p396 = pneg %p144
      $region42: #{encoder_block_forward.5} parent=39 // pred_check_branch
        %398 = sbr.rel (%p396) target = $region44
      $region43: #{encoder_block_forward.5} parent=39 // pred_region
        _
      $region44: #{encoder_block_forward.5} parent=39 // pred_fallthru
        _
    $region40: #{encoder_block_forward.5} parent=5 // pred_fallthru
      _
    %p399 = scmp.le.s32.totalorder 2, %s11
    // Predicated region
    $region45: #{encoder_block_forward.5} parent=5 // pred_check
      %p400 = pneg %p399
    $region46: #{encoder_block_forward.5} parent=5 // pred_check_branch
      %402 = sbr.rel (%p400) target = $region48
    $region47: #{encoder_block_forward.5} parent=5 // pred_region
      %s403 = ssub.s32 %s11, 2
      // Predicated region
      $region49: #{encoder_block_forward.5} parent=47 // pred_check
        %p404 = pneg %p150
      $region50: #{encoder_block_forward.5} parent=47 // pred_check_branch
        %406 = sbr.rel (%p404) target = $region52
      $region51: #{encoder_block_forward.5} parent=47 // pred_region
        %p407 = scmp.lt.s32.totalorder %s17, 1
        %s408 = scalar_select %p407, %s17, 1
        %s409 = smul.addr %s408, 8
        %s410 = scalar_lea.vmem %s5, %s409
      $region52: #{encoder_block_forward.5} parent=47 // pred_fallthru
        _
    $region48: #{encoder_block_forward.5} parent=5 // pred_fallthru
      _
  $region6: #{encoder_block_forward.5} parent=0 // loop_footer
    %s15 = sadd.s32 1, %s11
  $region7: #{encoder_block_forward.5} parent=0 // loop_footer_branch
    %10 = sbr.rel target = $region3
  $region8: #{encoder_block_forward.5} parent=0 // loop_exit
    _

// kernel: encoder_block_forward.4
$region0: #{encoder_block_forward.4}
  #allocation0 [shape = 'u32[]', space=smem, size = 0x4, offset = 0x4, fixed_abs, tag = 'smem constant byte address 0x4 - core index']
  #allocation1 [shape = 'u32[144,128]{1,0:T(1,128)}', space=vmem, size = 0x12000, scoped, tag = 'internal scratch']
  %s0 = inlined_call_operand.vmem [shape: f32[2,8,32], index: 0, kind: input, shape index: {}]
  %s1 = inlined_call_operand.vmem [shape: f32[1,8,32], index: 1, kind: input, shape index: {}]
  %s2 = inlined_call_operand.vmem [shape: f32[1,32], index: 2, kind: input, shape index: {}]
  %s3 = inlined_call_operand.vmem [shape: f32[1,32], index: 3, kind: input, shape index: {}]
  %s4 = inlined_call_operand.vmem [shape: f32[160,32], index: 4, kind: input, shape index: {}]
  %s5 = inlined_call_operand.vmem [shape: f32[1,32], index: 5, kind: input, shape index: {}]
  %s6 = inlined_call_operand.vmem [shape: f32[2,8,32], index: 6, kind: output, shape index: {}]
  %s7 = sld [smem:[#allocation0]]
  $region57: #{encoder_block_forward.4} parent=0
    _
  %s9 = ssub.s32 1, %s7
  %s10 = scalar_select 0, %s9, %s7
  loop: start=0, step=1, limit=4
  $region2: #{encoder_block_forward.4} parent=0 // loop_pre_header
    _
  $region3: #{encoder_block_forward.4} parent=0 // loop_header
    %s12 = sphi 0, %s16
    %p13 = scmp.ge.s32.totalorder %s12, 4
    %s22 = sphi 0, %s24
    %s25 = sphi 0, %s22
    %s26 = sphi 0, %s25
    %s42 = sphi 0, %s26
    %s46 = sphi 0, %s46
    %s48 = sphi 0, %s46
    %s49 = sphi 0, %s48
    %s63 = sphi 0, %s49
    %s67 = sphi 0, %s67
    %s69 = sphi 0, %s67
    %s70 = sphi 0, %s69
    %s84 = sphi 0, %s70
    %s88 = sphi 0, %s88
    %s90 = sphi 0, %s88
    %s91 = sphi 0, %s90
    %s105 = sphi 0, %s91
    %s109 = sphi 0, %s109
    %s111 = sphi 0, %s109
    %s112 = sphi 0, %s111
    %s126 = sphi 0, %s112
    %s130 = sphi 0, %s130
    %s132 = sphi 0, %s130
    %s133 = sphi 0, %s132
    %s147 = sphi 0, %s133
    %s153 = sphi 0, %s155
    %s156 = sphi 0, %s153
    %s157 = sphi 0, %s156
    %s173 = sphi 0, %s157
  $region4: #{encoder_block_forward.4} parent=0 // loop_header_branch
    %15 = sbr.rel (%p13) target = $region8
  $region5: #{encoder_block_forward.4} parent=0 // loop_body
    %s17 = ssub.s32 %s12, 1
    %s18 = ssub.s32 %s12, 2
    %s19 = sadd.s32 %s12, 1
    %s20 = ssub.s32 %s12, %s19
    %p21 = scmp.eq.s32.totalorder %s20, 0
    %s23 = sadd.s32 %s22, 1
    %s24 = scalar_select %p21, %s22, %s23
    %p27 = pneg %p21
    %p28 = scmp.eq.s32.totalorder %s12, 1
    %p29 = por %p27, %p28
    %p30 = scmp.ne.s32.totalorder %s22, %s25
    %p31 = scmp.eq.s32.totalorder %s12, 0
    %p32 = por %p30, %p31
    %p33 = scmp.ne.s32.totalorder %s22, %s25
    %p34 = scmp.eq.s32.totalorder %s17, 1
    %p35 = por %p33, %p34
    %p36 = scmp.ne.s32.totalorder %s25, %s26
    %p37 = scmp.eq.s32.totalorder %s17, 0
    %p38 = por %p36, %p37
    %p39 = scmp.ne.s32.totalorder %s25, %s26
    %p40 = scmp.eq.s32.totalorder %s18, 1
    %p41 = por %p39, %p40
    %p43 = scmp.ne.s32.totalorder %s26, %s42
    %p44 = scmp.eq.s32.totalorder %s18, 0
    %p45 = por %p43, %p44
    %s47 = sadd.s32 %s46, 1
    %p50 = scmp.eq.s32.totalorder %s12, 1
    %p51 = scmp.ne.s32.totalorder %s46, %s48
    %p52 = scmp.eq.s32.totalorder %s12, 0
    %p53 = por %p51, %p52
    %p54 = scmp.ne.s32.totalorder %s46, %s48
    %p55 = scmp.eq.s32.totalorder %s17, 1
    %p56 = por %p54, %p55
    %p57 = scmp.ne.s32.totalorder %s48, %s49
    %p58 = scmp.eq.s32.totalorder %s17, 0
    %p59 = por %p57, %p58
    %p60 = scmp.ne.s32.totalorder %s48, %s49
    %p61 = scmp.eq.s32.totalorder %s18, 1
    %p62 = por %p60, %p61
    %p64 = scmp.ne.s32.totalorder %s49, %s63
    %p65 = scmp.eq.s32.totalorder %s18, 0
    %p66 = por %p64, %p65
    %s68 = sadd.s32 %s67, 1
    %p71 = scmp.eq.s32.totalorder %s12, 1
    %p72 = scmp.ne.s32.totalorder %s67, %s69
    %p73 = scmp.eq.s32.totalorder %s12, 0
    %p74 = por %p72, %p73
    %p75 = scmp.ne.s32.totalorder %s67, %s69
    %p76 = scmp.eq.s32.totalorder %s17, 1
    %p77 = por %p75, %p76
    %p78 = scmp.ne.s32.totalorder %s69, %s70
    %p79 = scmp.eq.s32.totalorder %s17, 0
    %p80 = por %p78, %p79
    %p81 = scmp.ne.s32.totalorder %s69, %s70
    %p82 = scmp.eq.s32.totalorder %s18, 1
    %p83 = por %p81, %p82
    %p85 = scmp.ne.s32.totalorder %s70, %s84
    %p86 = scmp.eq.s32.totalorder %s18, 0
    %p87 = por %p85, %p86
    %s89 = sadd.s32 %s88, 1
    %p92 = scmp.eq.s32.totalorder %s12, 1
    %p93 = scmp.ne.s32.totalorder %s88, %s90
    %p94 = scmp.eq.s32.totalorder %s12, 0
    %p95 = por %p93, %p94
    %p96 = scmp.ne.s32.totalorder %s88, %s90
    %p97 = scmp.eq.s32.totalorder %s17, 1
    %p98 = por %p96, %p97
    %p99 = scmp.ne.s32.totalorder %s90, %s91
    %p100 = scmp.eq.s32.totalorder %s17, 0
    %p101 = por %p99, %p100
    %p102 = scmp.ne.s32.totalorder %s90, %s91
    %p103 = scmp.eq.s32.totalorder %s18, 1
    %p104 = por %p102, %p103
    %p106 = scmp.ne.s32.totalorder %s91, %s105
    %p107 = scmp.eq.s32.totalorder %s18, 0
    %p108 = por %p106, %p107
    %s110 = sadd.s32 %s109, 1
    %p113 = scmp.eq.s32.totalorder %s12, 1
    %p114 = scmp.ne.s32.totalorder %s109, %s111
    %p115 = scmp.eq.s32.totalorder %s12, 0
    %p116 = por %p114, %p115
    %p117 = scmp.ne.s32.totalorder %s109, %s111
    %p118 = scmp.eq.s32.totalorder %s17, 1
    %p119 = por %p117, %p118
    %p120 = scmp.ne.s32.totalorder %s111, %s112
    %p121 = scmp.eq.s32.totalorder %s17, 0
    %p122 = por %p120, %p121
    %p123 = scmp.ne.s32.totalorder %s111, %s112
    %p124 = scmp.eq.s32.totalorder %s18, 1
    %p125 = por %p123, %p124
    %p127 = scmp.ne.s32.totalorder %s112, %s126
    %p128 = scmp.eq.s32.totalorder %s18, 0
    %p129 = por %p127, %p128
    %s131 = sadd.s32 %s130, 1
    %p134 = scmp.eq.s32.totalorder %s12, 1
    %p135 = scmp.ne.s32.totalorder %s130, %s132
    %p136 = scmp.eq.s32.totalorder %s12, 0
    %p137 = por %p135, %p136
    %p138 = scmp.ne.s32.totalorder %s130, %s132
    %p139 = scmp.eq.s32.totalorder %s17, 1
    %p140 = por %p138, %p139
    %p141 = scmp.ne.s32.totalorder %s132, %s133
    %p142 = scmp.eq.s32.totalorder %s17, 0
    %p143 = por %p141, %p142
    %p144 = scmp.ne.s32.totalorder %s132, %s133
    %p145 = scmp.eq.s32.totalorder %s18, 1
    %p146 = por %p144, %p145
    %p148 = scmp.ne.s32.totalorder %s133, %s147
    %p149 = scmp.eq.s32.totalorder %s18, 0
    %p150 = por %p148, %p149
    %s151 = ssub.s32 %s12, %s19
    %p152 = scmp.eq.s32.totalorder %s151, 0
    %s154 = sadd.s32 %s153, 1
    %s155 = scalar_select %p152, %s153, %s154
    %p158 = pneg %p152
    %p159 = scmp.eq.s32.totalorder %s12, 1
    %p160 = por %p158, %p159
    %p161 = scmp.ne.s32.totalorder %s153, %s156
    %p162 = scmp.eq.s32.totalorder %s12, 0
    %p163 = por %p161, %p162
    %p164 = scmp.ne.s32.totalorder %s153, %s156
    %p165 = scmp.eq.s32.totalorder %s17, 1
    %p166 = por %p164, %p165
    %p167 = scmp.ne.s32.totalorder %s156, %s157
    %p168 = scmp.eq.s32.totalorder %s17, 0
    %p169 = por %p167, %p168
    %p170 = scmp.ne.s32.totalorder %s156, %s157
    %p171 = scmp.eq.s32.totalorder %s18, 1
    %p172 = por %p170, %p171
    %p174 = scmp.ne.s32.totalorder %s157, %s173
    %p175 = scmp.eq.s32.totalorder %s18, 0
    %p176 = por %p174, %p175
    %p177 = scmp.le.s32.totalorder 1, %s12
    %p178 = scmp.lt.s32.totalorder %s12, 3
    %p179 = pnand %p177, %p178
    %p180 = pneg %p179
    // Predicated region
    $region9: #{encoder_block_forward.4} parent=5 // pred_check
      _
    $region10: #{encoder_block_forward.4} parent=5 // pred_check_branch
      %182 = sbr.rel (%p179) target = $region12
    $region11: #{encoder_block_forward.4} parent=5 // pred_region
      %s183 = ssub.s32 %s12, 1
      // Predicated region
      $region13: #{encoder_block_forward.4} parent=11 // pred_check
        %p184 = pneg %p59
      $region14: #{encoder_block_forward.4} parent=11 // pred_check_branch
        %186 = sbr.rel (%p184) target = $region16
      $region15: #{encoder_block_forward.4} parent=11 // pred_region
        _
      $region16: #{encoder_block_forward.4} parent=11 // pred_fallthru
        _
      // Predicated region
      $region17: #{encoder_block_forward.4} parent=11 // pred_check
        %p187 = pneg %p80
      $region18: #{encoder_block_forward.4} parent=11 // pred_check_branch
        %189 = sbr.rel (%p187) target = $region20
      $region19: #{encoder_block_forward.4} parent=11 // pred_region
        _
      $region20: #{encoder_block_forward.4} parent=11 // pred_fallthru
        _
      // Predicated region
      $region21: #{encoder_block_forward.4} parent=11 // pred_check
        %p190 = pneg %p101
      $region22: #{encoder_block_forward.4} parent=11 // pred_check_branch
        %192 = sbr.rel (%p190) target = $region24
      $region23: #{encoder_block_forward.4} parent=11 // pred_region
        _
      $region24: #{encoder_block_forward.4} parent=11 // pred_fallthru
        _
      // Predicated region
      $region25: #{encoder_block_forward.4} parent=11 // pred_check
        %p193 = pneg %p122
      $region26: #{encoder_block_forward.4} parent=11 // pred_check_branch
        %195 = sbr.rel (%p193) target = $region28
      $region27: #{encoder_block_forward.4} parent=11 // pred_region
        _
      $region28: #{encoder_block_forward.4} parent=11 // pred_fallthru
        _
      // Predicated region
      $region29: #{encoder_block_forward.4} parent=11 // pred_check
        %p196 = pneg %p143
      $region30: #{encoder_block_forward.4} parent=11 // pred_check_branch
        %198 = sbr.rel (%p196) target = $region32
      $region31: #{encoder_block_forward.4} parent=11 // pred_region
        _
      $region32: #{encoder_block_forward.4} parent=11 // pred_fallthru
        _
    $region12: #{encoder_block_forward.4} parent=5 // pred_fallthru
      _
    %p199 = scmp.lt.s32.totalorder %s12, 2
    // Predicated region
    $region33: #{encoder_block_forward.4} parent=5 // pred_check
      %p200 = pneg %p199
    $region34: #{encoder_block_forward.4} parent=5 // pred_check_branch
      %202 = sbr.rel (%p200) target = $region36
    $region35: #{encoder_block_forward.4} parent=5 // pred_region
      // Predicated region
      $region37: #{encoder_block_forward.4} parent=35 // pred_check
        %p203 = pneg %p32
      $region38: #{encoder_block_forward.4} parent=35 // pred_check_branch
        %205 = sbr.rel (%p203) target = $region40
      $region39: #{encoder_block_forward.4} parent=35 // pred_region
        %p206 = scmp.lt.s32.totalorder %s12, 1
        %s207 = scalar_select %p206, %s12, 1
        %s208 = smul.addr %s207, 8
        %s209 = scalar_lea.vmem %s0, %s208
      $region40: #{encoder_block_forward.4} parent=35 // pred_fallthru
        _
    $region36: #{encoder_block_forward.4} parent=5 // pred_fallthru
      _
    %p210 = scmp.le.s32.totalorder 1, %s12
    %p211 = scmp.lt.s32.totalorder %s12, 3
    %p212 = pnand %p210, %p211
    %p213 = pneg %p212
    // Predicated region
    $region41: #{encoder_block_forward.4} parent=5 // pred_check
      _
    $region42: #{encoder_block_forward.4} parent=5 // pred_check_branch
      %215 = sbr.rel (%p212) target = $region44
    $region43: #{encoder_block_forward.4} parent=5 // pred_region
      %s216 = ssub.s32 %s12, 1
      %p217 = scmp.lt.s32.totalorder %s17, 1
      %s218 = scalar_select %p217, %s17, 1
      %s219 = smul.addr %s218, 8
      %s220 = scalar_lea.vmem %s0, %s219
      %p221 = pneg %p38
      %p222 = pneg %p35
      %p223 = pneg %p59
      %p224 = pneg %p56
      %p225 = pneg %p80
      %p226 = pneg %p77
      %p227 = pneg %p101
      %p228 = pneg %p98
      %p229 = pneg %p122
      %p230 = pneg %p119
      %p231 = pneg %p143
      %p232 = pneg %p140
      %p233 = pneg %p169
      %p234 = pneg %p166
      %p235 = scmp.lt.s32.totalorder %s17, 1
      %s236 = scalar_select %p235, %s17, 1
      %s237 = smul.addr %s236, 8
      %s238 = scalar_lea.vmem %s6, %s237
      %p239 = scmp.lt.s32.totalorder %s17, 1
      %s240 = scalar_select %p239, %s17, 1
      %s241 = smul.addr %s240, 8
      %s242 = scalar_lea.vmem %s0, %s241
      %p243 = scmp.lt.s32.totalorder %s17, 1
      %s244 = scalar_select %p243, %s17, 1
      %s245 = smul.addr %s244, 8
      %s246 = scalar_lea.vmem %s6, %s245
      %v247 = vld [vmem:[%s242] sm:$0xff]
      %v248 = vld [vmem:[%s1] sm:$0xff]
      %v249 = vadd.f32 %v247, %v248
      %v250 = vld [vmem:[%s2] sm:$0x1]
      %v251 = vld [vmem:[%s3] sm:$0x1]
      %vm252 = vcmask 261120
      %v253 = vsel %vm252, %v249, 0.0
      %254 = vadd.xlane.f32.xlu0 %v253
      %v255 = vpop.xlane.xlu0 %254
      %v256 = vrcp.pop 32.0
      %v257 = vmul.f32 %v255, %v256
      %v258 = vsub.f32 %v249, %v257
      %v259 = vmul.f32 %v258, %v258
      %v260 = vsel %vm252, %v259, 0.0
      %261 = vadd.xlane.f32.xlu0 %v260
      %v262 = vpop.xlane.xlu0 %261
      %v263 = vmul.f32 %v262, %v256
      %v264 = vadd.f32 %v263, 1e-05
      %v265 = vrsqrt.pop %v264
      %v266 = vmul.f32 %v258, %v265
      %v268 = vlaneseq
      %v269 = vshrl.u32 %v268, 7
      %v270 = vsub.s32 0, %v269
      %v271 = vrot.slane %v250, %v270
      %v273 = vmul.f32 %v266, %v271
      %v275 = vlaneseq
      %v276 = vshrl.u32 %v275, 7
      %v277 = vsub.s32 0, %v276
      %v278 = vrot.slane %v251, %v277
      %v280 = vadd.f32 %v273, %v278
      %v282 = vrot.slane %v280, 6
      %vm284 = vcmask 1041408
      %v285 = vsel %vm284, 0.0, %v282
      %v286 = vsel %vm284, %v282, 0.0
      %vm289 = vcmask 1046528
      %v290 = vrot.slane %v285, 1
      %v291 = vrot.slane %v286, 1
      %v292 = vsel %vm289, %v290, %v291
      %293 = vrot.lane.b32.xlu0 %v292, 32
      %v294 = vpop.permute.xlu0 %293
      %vm296 = vcmask 1045504
      %v297 = vrot.slane %v285, 2
      %v298 = vrot.slane %v286, 2
      %v299 = vsel %vm296, %v297, %v298
      %300 = vrot.lane.b32.xlu0 %v299, 64
      %v301 = vpop.permute.xlu0 %300
      %vm303 = vcmask 1044480
      %v304 = vrot.slane %v285, 3
      %v305 = vrot.slane %v286, 3
      %v306 = vsel %vm303, %v304, %v305
      %307 = vrot.lane.b32.xlu0 %v306, 96
      %v308 = vpop.permute.xlu0 %307
      %vm310 = vcmask 1043456
      %v311 = vrot.slane %v285, 4
      %v312 = vrot.slane %v286, 4
      %v313 = vsel %vm310, %v311, %v312
      %v314 = vsel %vm252, %v285, %v294
      %vm315 = vcmask 523264
      %v316 = vsel %vm315, %v314, %v301
      %vm317 = vcmask 785408
      %v318 = vsel %vm317, %v316, %v308
      %v319 = vld [vmem:[%s4] sm:$0xff]
      %v320 = vld [vmem:[%s4 + $0x8] sm:$0xff]
      %v321 = vld [vmem:[%s4 + $0x10] sm:$0xff]
      %v322 = vld [vmem:[%s4 + $0x18] sm:$0xff]
      %v323 = vld [vmem:[%s4 + $0x20] sm:$0xff]
      %v324 = vld [vmem:[%s4 + $0x28] sm:$0xff]
      %v325 = vld [vmem:[%s4 + $0x30] sm:$0xff]
      %v326 = vld [vmem:[%s4 + $0x38] sm:$0xff]
      %v327 = vld [vmem:[%s4 + $0x40] sm:$0xff]
      %v328 = vld [vmem:[%s4 + $0x48] sm:$0xff]
      %v329 = vld [vmem:[%s4 + $0x50] sm:$0xff]
      %v330 = vld [vmem:[%s4 + $0x58] sm:$0xff]
      %v331 = vld [vmem:[%s4 + $0x60] sm:$0xff]
      %v332 = vld [vmem:[%s4 + $0x68] sm:$0xff]
      %v333 = vld [vmem:[%s4 + $0x70] sm:$0xff]
      %v334 = vld [vmem:[%s4 + $0x78] sm:$0xff]
      %v335 = vld [vmem:[%s4 + $0x80] sm:$0xff]
      %v336 = vld [vmem:[%s4 + $0x88] sm:$0xff]
      %v337 = vld [vmem:[%s4 + $0x90] sm:$0xff]
      %v338 = vld [vmem:[%s4 + $0x98] sm:$0xff]
      %v339 = vld [vmem:[%s5] sm:$0x1]
      %v341 = vlaneseq
      %v342 = vshrl.u32 %v341, 7
      %v343 = vsub.s32 0, %v342
      %v344 = vrot.slane %v339, %v343
      %v346 = vsel %vm252, %v313, 0
      %348 = vmatprep.subr.mxu0 0.0
      %349 = vmatpush1.msra.mxu0 %v319
      %350 = vmatprep.subr.mxu0 0.0
      %351 = vmatpush1.msra.mxu0 %v320
      %352 = vmatprep.subr.mxu0 0.0
      %353 = vmatpush1.msra.mxu0 %v321
      %354 = vmatprep.subr.mxu0 0.0
      %355 = vmatpush1.msra.mxu0 %v322
      %356 = vmatprep.subr.mxu0 0.0
      %357 = vmatpush1.msra.mxu0 %v323
      %358 = vmatprep.subr.mxu0 0.0
      %359 = vmatpush1.msra.mxu0 %v324
      %360 = vmatprep.subr.mxu0 0.0
      %361 = vmatpush1.msra.mxu0 %v325
      %362 = vmatprep.subr.mxu0 0.0
      %363 = vmatpush1.msra.mxu0 %v326
      %364 = vmatprep.subr.mxu0 0.0
      %365 = vmatpush1.msra.mxu0 %v327
      %366 = vmatprep.subr.mxu0 0.0
      %367 = vmatpush1.msra.mxu0 %v328
      %368 = vmatprep.subr.mxu0 0.0
      %369 = vmatpush1.msra.mxu0 %v329
      %370 = vmatprep.subr.mxu0 0.0
      %371 = vmatpush1.msra.mxu0 %v330
      %372 = vmatprep.subr.mxu0 0.0
      %373 = vmatpush1.msra.mxu0 %v331
      %374 = vmatprep.subr.mxu0 0.0
      %375 = vmatpush1.msra.mxu0 %v332
      %376 = vmatprep.subr.mxu0 0.0
      %377 = vmatpush1.msra.mxu0 %v333
      %378 = vmatprep.subr.mxu0 0.0
      %379 = vmatpush1.msra.mxu0 %v334
      %380 = vmatprep.subr.mxu0 0.0
      %381 = vmatpush1.msra.mxu0 %v335
      %382 = vmatprep.subr.mxu0 0.0
      %383 = vmatpush1.msra.mxu0 %v336
      %384 = vmatprep.subr.mxu0 0.0
      %385 = vmatpush1.msra.mxu0 %v337
      %386 = vmatprep.subr.mxu0 0.0
      %387 = vmatpush1.msra.mxu0 %v338
      %388 = vmatprep.subr.mxu0 0.0
      %389 = vmatpush1.msra.mxu0 0.0
      %390 = vmatprep.subr.mxu0 0.0
      %391 = vmatpush1.msra.mxu0 0.0
      %392 = vmatprep.subr.mxu0 0.0
      %393 = vmatpush1.msra.mxu0 0.0
      %394 = vmatprep.subr.mxu0 0.0
      %395 = vmatpush1.msra.mxu0 0.0
      %396 = vmatprep.subr.mxu0 0.0
      %397 = vmatpush1.msra.mxu0 0.0
      %398 = vmatprep.subr.mxu0 0.0
      %399 = vmatpush1.msra.mxu0 0.0
      %400 = vmatprep.subr.mxu0 0.0
      %401 = vmatpush1.msra.mxu0 0.0
      %402 = vmatprep.subr.mxu0 0.0
      %403 = vmatpush1.msra.mxu0 0.0
      %404 = vmatprep.subr.mxu0 0.0
      %405 = vmatpush1.msra.mxu0 0.0
      %406 = vmatprep.subr.mxu0 0.0
      %407 = vmatpush1.msra.mxu0 0.0
      %408 = vmatprep.subr.mxu0 0.0
      %409 = vmatpush1.msra.mxu0 0.0
      %410 = vmatprep.subr.mxu0 0.0
      %411 = vmatpush1.msra.mxu0 0.0
      %412 = vmatprep.mubr.f32.mxu0 %v346
      %413 = vmatmul.mubr.f32.gmra.mrb[0].mxu0 %v318
      %v414 = vpop.f32.mrb[0].mxu0
      %v415 = vadd.f32 %v344, %v414
      %v416 = vpop.f32.mrb[0].mxu0
      %417 = vdwg.mxu0
      %v418 = vmax.f32 %v415, 0.0
      %v419 = vadd.f32 %v418, %v249
      %420 = vst.msk [vmem:[%s246] sm:$0xff] %vm252, %v419
      %p421 = scmp.lt.s32.totalorder %s17, 1
      %s422 = scalar_select %p421, %s17, 1
      %s423 = smul.addr %s422, 8
      %s424 = scalar_lea.vmem %s6, %s423
      // Predicated region
      $region45: #{encoder_block_forward.4} parent=43 // pred_check
        %p425 = pneg %p166
      $region46: #{encoder_block_forward.4} parent=43 // pred_check_branch
        %427 = sbr.rel (%p425) target = $region48
      $region47: #{encoder_block_forward.4} parent=43 // pred_region
        _
      $region48: #{encoder_block_forward.4} parent=43 // pred_fallthru
        _
    $region44: #{encoder_block_forward.4} parent=5 // pred_fallthru
      _
    %p428 = scmp.le.s32.totalorder 2, %s12
    // Predicated region
    $region49: #{encoder_block_forward.4} parent=5 // pred_check
      %p429 = pneg %p428
    $region50: #{encoder_block_forward.4} parent=5 // pred_check_branch
      %431 = sbr.rel (%p429) target = $region52
    $region51: #{encoder_block_forward.4} parent=5 // pred_region
      %s432 = ssub.s32 %s12, 2
      // Predicated region
      $region53: #{encoder_block_forward.4} parent=51 // pred_check
        %p433 = pneg %p172
      $region54: #{encoder_block_forward.4} parent=51 // pred_check_branch
        %435 = sbr.rel (%p433) target = $region56
      $region55: #{encoder_block_forward.4} parent=51 // pred_region
        %p436 = scmp.lt.s32.totalorder %s18, 1
        %s437 = scalar_select %p436, %s18, 1
        %s438 = smul.addr %s437, 8
        %s439 = scalar_lea.vmem %s6, %s438
      $region56: #{encoder_block_forward.4} parent=51 // pred_fallthru
        _
    $region52: #{encoder_block_forward.4} parent=5 // pred_fallthru
      _
  $region6: #{encoder_block_forward.4} parent=0 // loop_footer
    %s16 = sadd.s32 1, %s12
  $region7: #{encoder_block_forward.4} parent=0 // loop_footer_branch
    %11 = sbr.rel target = $region3
  $region8: #{encoder_block_forward.4} parent=0 // loop_exit
    _

// kernel: encoder_block_forward.7
$region0: #{encoder_block_forward.7}
  #allocation0 [shape = 'u32[]', space=smem, size = 0x4, offset = 0x4, fixed_abs, tag = 'smem constant byte address 0x4 - core index']
  #allocation1 [shape = 'u32[144,128]{1,0:T(1,128)}', space=vmem, size = 0x12000, scoped, tag = 'internal scratch']
  %s0 = inlined_call_operand.vmem [shape: f32[2,8,32], index: 0, kind: input, shape index: {}]
  %s1 = inlined_call_operand.vmem [shape: f32[1,32], index: 1, kind: input, shape index: {}]
  %s2 = inlined_call_operand.vmem [shape: f32[1,32], index: 2, kind: input, shape index: {}]
  %s3 = inlined_call_operand.vmem [shape: f32[32,32], index: 3, kind: input, shape index: {}]
  %s4 = inlined_call_operand.vmem [shape: f32[1,32], index: 4, kind: input, shape index: {}]
  %s5 = inlined_call_operand.vmem [shape: f32[32,32], index: 5, kind: input, shape index: {}]
  %s6 = inlined_call_operand.vmem [shape: f32[1,32], index: 6, kind: input, shape index: {}]
  %s7 = inlined_call_operand.hbm [shape: f32[2,8,32], index: 7, kind: output, shape index: {}]
  %s8 = sld [smem:[#allocation0]]
  $region61: #{encoder_block_forward.7} parent=0
    _
  %s10 = ssub.s32 1, %s8
  %s11 = scalar_select 0, %s10, %s8
  $region1: #{encoder_block_forward.7} parent=0
    #allocation2 [shape = 'u8[8192]{0}', space=vmem, size = 0x2000, scoped, tag = 'output window, operand 0']
    #allocation3 [shape = 's32[2]{0}', space=sflag, size = 0x8, scoped, tag = 'scoped memory for encoder_block_forward.7']
    %12 = vsyncpa [#allocation3], 0
    %s13 = scalar_lea.sflag [#allocation3], 1
    %14 = vsyncpa %s13, 0
    loop: start=0, step=1, limit=4
    $region2: #{encoder_block_forward.7} parent=1 // loop_pre_header
      _
    $region3: #{encoder_block_forward.7} parent=1 // loop_header
      %s16 = sphi 0, %s20
      %p17 = scmp.ge.s32.totalorder %s16, 4
      %s26 = sphi 0, %s28
      %s29 = sphi 0, %s26
      %s30 = sphi 0, %s29
      %s46 = sphi 0, %s30
      %s50 = sphi 0, %s50
      %s52 = sphi 0, %s50
      %s53 = sphi 0, %s52
      %s67 = sphi 0, %s53
      %s71 = sphi 0, %s71
      %s73 = sphi 0, %s71
      %s74 = sphi 0, %s73
      %s88 = sphi 0, %s74
      %s92 = sphi 0, %s92
      %s94 = sphi 0, %s92
      %s95 = sphi 0, %s94
      %s109 = sphi 0, %s95
      %s113 = sphi 0, %s113
      %s115 = sphi 0, %s113
      %s116 = sphi 0, %s115
      %s130 = sphi 0, %s116
      %s134 = sphi 0, %s134
      %s136 = sphi 0, %s134
      %s137 = sphi 0, %s136
      %s151 = sphi 0, %s137
      %s155 = sphi 0, %s155
      %s157 = sphi 0, %s155
      %s158 = sphi 0, %s157
      %s172 = sphi 0, %s158
      %s178 = sphi 0, %s180
      %s181 = sphi 0, %s178
      %s182 = sphi 0, %s181
      %s198 = sphi 0, %s182
    $region4: #{encoder_block_forward.7} parent=1 // loop_header_branch
      %19 = sbr.rel (%p17) target = $region8
    $region5: #{encoder_block_forward.7} parent=1 // loop_body
      %s21 = ssub.s32 %s16, 1
      %s22 = ssub.s32 %s16, 2
      %s23 = sadd.s32 %s16, 1
      %s24 = ssub.s32 %s16, %s23
      %p25 = scmp.eq.s32.totalorder %s24, 0
      %s27 = sadd.s32 %s26, 1
      %s28 = scalar_select %p25, %s26, %s27
      %p31 = pneg %p25
      %p32 = scmp.eq.s32.totalorder %s16, 1
      %p33 = por %p31, %p32
      %p34 = scmp.ne.s32.totalorder %s26, %s29
      %p35 = scmp.eq.s32.totalorder %s16, 0
      %p36 = por %p34, %p35
      %p37 = scmp.ne.s32.totalorder %s26, %s29
      %p38 = scmp.eq.s32.totalorder %s21, 1
      %p39 = por %p37, %p38
      %p40 = scmp.ne.s32.totalorder %s29, %s30
      %p41 = scmp.eq.s32.totalorder %s21, 0
      %p42 = por %p40, %p41
      %p43 = scmp.ne.s32.totalorder %s29, %s30
      %p44 = scmp.eq.s32.totalorder %s22, 1
      %p45 = por %p43, %p44
      %p47 = scmp.ne.s32.totalorder %s30, %s46
      %p48 = scmp.eq.s32.totalorder %s22, 0
      %p49 = por %p47, %p48
      %s51 = sadd.s32 %s50, 1
      %p54 = scmp.eq.s32.totalorder %s16, 1
      %p55 = scmp.ne.s32.totalorder %s50, %s52
      %p56 = scmp.eq.s32.totalorder %s16, 0
      %p57 = por %p55, %p56
      %p58 = scmp.ne.s32.totalorder %s50, %s52
      %p59 = scmp.eq.s32.totalorder %s21, 1
      %p60 = por %p58, %p59
      %p61 = scmp.ne.s32.totalorder %s52, %s53
      %p62 = scmp.eq.s32.totalorder %s21, 0
      %p63 = por %p61, %p62
      %p64 = scmp.ne.s32.totalorder %s52, %s53
      %p65 = scmp.eq.s32.totalorder %s22, 1
      %p66 = por %p64, %p65
      %p68 = scmp.ne.s32.totalorder %s53, %s67
      %p69 = scmp.eq.s32.totalorder %s22, 0
      %p70 = por %p68, %p69
      %s72 = sadd.s32 %s71, 1
      %p75 = scmp.eq.s32.totalorder %s16, 1
      %p76 = scmp.ne.s32.totalorder %s71, %s73
      %p77 = scmp.eq.s32.totalorder %s16, 0
      %p78 = por %p76, %p77
      %p79 = scmp.ne.s32.totalorder %s71, %s73
      %p80 = scmp.eq.s32.totalorder %s21, 1
      %p81 = por %p79, %p80
      %p82 = scmp.ne.s32.totalorder %s73, %s74
      %p83 = scmp.eq.s32.totalorder %s21, 0
      %p84 = por %p82, %p83
      %p85 = scmp.ne.s32.totalorder %s73, %s74
      %p86 = scmp.eq.s32.totalorder %s22, 1
      %p87 = por %p85, %p86
      %p89 = scmp.ne.s32.totalorder %s74, %s88
      %p90 = scmp.eq.s32.totalorder %s22, 0
      %p91 = por %p89, %p90
      %s93 = sadd.s32 %s92, 1
      %p96 = scmp.eq.s32.totalorder %s16, 1
      %p97 = scmp.ne.s32.totalorder %s92, %s94
      %p98 = scmp.eq.s32.totalorder %s16, 0
      %p99 = por %p97, %p98
      %p100 = scmp.ne.s32.totalorder %s92, %s94
      %p101 = scmp.eq.s32.totalorder %s21, 1
      %p102 = por %p100, %p101
      %p103 = scmp.ne.s32.totalorder %s94, %s95
      %p104 = scmp.eq.s32.totalorder %s21, 0
      %p105 = por %p103, %p104
      %p106 = scmp.ne.s32.totalorder %s94, %s95
      %p107 = scmp.eq.s32.totalorder %s22, 1
      %p108 = por %p106, %p107
      %p110 = scmp.ne.s32.totalorder %s95, %s109
      %p111 = scmp.eq.s32.totalorder %s22, 0
      %p112 = por %p110, %p111
      %s114 = sadd.s32 %s113, 1
      %p117 = scmp.eq.s32.totalorder %s16, 1
      %p118 = scmp.ne.s32.totalorder %s113, %s115
      %p119 = scmp.eq.s32.totalorder %s16, 0
      %p120 = por %p118, %p119
      %p121 = scmp.ne.s32.totalorder %s113, %s115
      %p122 = scmp.eq.s32.totalorder %s21, 1
      %p123 = por %p121, %p122
      %p124 = scmp.ne.s32.totalorder %s115, %s116
      %p125 = scmp.eq.s32.totalorder %s21, 0
      %p126 = por %p124, %p125
      %p127 = scmp.ne.s32.totalorder %s115, %s116
      %p128 = scmp.eq.s32.totalorder %s22, 1
      %p129 = por %p127, %p128
      %p131 = scmp.ne.s32.totalorder %s116, %s130
      %p132 = scmp.eq.s32.totalorder %s22, 0
      %p133 = por %p131, %p132
      %s135 = sadd.s32 %s134, 1
      %p138 = scmp.eq.s32.totalorder %s16, 1
      %p139 = scmp.ne.s32.totalorder %s134, %s136
      %p140 = scmp.eq.s32.totalorder %s16, 0
      %p141 = por %p139, %p140
      %p142 = scmp.ne.s32.totalorder %s134, %s136
      %p143 = scmp.eq.s32.totalorder %s21, 1
      %p144 = por %p142, %p143
      %p145 = scmp.ne.s32.totalorder %s136, %s137
      %p146 = scmp.eq.s32.totalorder %s21, 0
      %p147 = por %p145, %p146
      %p148 = scmp.ne.s32.totalorder %s136, %s137
      %p149 = scmp.eq.s32.totalorder %s22, 1
      %p150 = por %p148, %p149
      %p152 = scmp.ne.s32.totalorder %s137, %s151
      %p153 = scmp.eq.s32.totalorder %s22, 0
      %p154 = por %p152, %p153
      %s156 = sadd.s32 %s155, 1
      %p159 = scmp.eq.s32.totalorder %s16, 1
      %p160 = scmp.ne.s32.totalorder %s155, %s157
      %p161 = scmp.eq.s32.totalorder %s16, 0
      %p162 = por %p160, %p161
      %p163 = scmp.ne.s32.totalorder %s155, %s157
      %p164 = scmp.eq.s32.totalorder %s21, 1
      %p165 = por %p163, %p164
      %p166 = scmp.ne.s32.totalorder %s157, %s158
      %p167 = scmp.eq.s32.totalorder %s21, 0
      %p168 = por %p166, %p167
      %p169 = scmp.ne.s32.totalorder %s157, %s158
      %p170 = scmp.eq.s32.totalorder %s22, 1
      %p171 = por %p169, %p170
      %p173 = scmp.ne.s32.totalorder %s158, %s172
      %p174 = scmp.eq.s32.totalorder %s22, 0
      %p175 = por %p173, %p174
      %s176 = ssub.s32 %s16, %s23
      %p177 = scmp.eq.s32.totalorder %s176, 0
      %s179 = sadd.s32 %s178, 1
      %s180 = scalar_select %p177, %s178, %s179
      %p183 = pneg %p177
      %p184 = scmp.eq.s32.totalorder %s16, 1
      %p185 = por %p183, %p184
      %p186 = scmp.ne.s32.totalorder %s178, %s181
      %p187 = scmp.eq.s32.totalorder %s16, 0
      %p188 = por %p186, %p187
      %p189 = scmp.ne.s32.totalorder %s178, %s181
      %p190 = scmp.eq.s32.totalorder %s21, 1
      %p191 = por %p189, %p190
      %p192 = scmp.ne.s32.totalorder %s181, %s182
      %p193 = scmp.eq.s32.totalorder %s21, 0
      %p194 = por %p192, %p193
      %p195 = scmp.ne.s32.totalorder %s181, %s182
      %p196 = scmp.eq.s32.totalorder %s22, 1
      %p197 = por %p195, %p196
      %p199 = scmp.ne.s32.totalorder %s182, %s198
      %p200 = scmp.eq.s32.totalorder %s22, 0
      %p201 = por %p199, %p200
      %p202 = scmp.le.s32.totalorder 1, %s16
      %p203 = scmp.lt.s32.totalorder %s16, 3
      %p204 = pnand %p202, %p203
      %p205 = pneg %p204
      // Predicated region
      $region9: #{encoder_block_forward.7} parent=5 // pred_check
        _
      $region10: #{encoder_block_forward.7} parent=5 // pred_check_branch
        %207 = sbr.rel (%p204) target = $region12
      $region11: #{encoder_block_forward.7} parent=5 // pred_region
        %s208 = ssub.s32 %s16, 1
        // Predicated region
        $region13: #{encoder_block_forward.7} parent=11 // pred_check
          %p209 = pneg %p63
        $region14: #{encoder_block_forward.7} parent=11 // pred_check_branch
          %211 = sbr.rel (%p209) target = $region16
        $region15: #{encoder_block_forward.7} parent=11 // pred_region
          _
        $region16: #{encoder_block_forward.7} parent=11 // pred_fallthru
          _
        // Predicated region
        $region17: #{encoder_block_forward.7} parent=11 // pred_check
          %p212 = pneg %p84
        $region18: #{encoder_block_forward.7} parent=11 // pred_check_branch
          %214 = sbr.rel (%p212) target = $region20
        $region19: #{encoder_block_forward.7} parent=11 // pred_region
          _
        $region20: #{encoder_block_forward.7} parent=11 // pred_fallthru
          _
        // Predicated region
        $region21: #{encoder_block_forward.7} parent=11 // pred_check
          %p215 = pneg %p105
        $region22: #{encoder_block_forward.7} parent=11 // pred_check_branch
          %217 = sbr.rel (%p215) target = $region24
        $region23: #{encoder_block_forward.7} parent=11 // pred_region
          _
        $region24: #{encoder_block_forward.7} parent=11 // pred_fallthru
          _
        // Predicated region
        $region25: #{encoder_block_forward.7} parent=11 // pred_check
          %p218 = pneg %p126
        $region26: #{encoder_block_forward.7} parent=11 // pred_check_branch
          %220 = sbr.rel (%p218) target = $region28
        $region27: #{encoder_block_forward.7} parent=11 // pred_region
          _
        $region28: #{encoder_block_forward.7} parent=11 // pred_fallthru
          _
        // Predicated region
        $region29: #{encoder_block_forward.7} parent=11 // pred_check
          %p221 = pneg %p147
        $region30: #{encoder_block_forward.7} parent=11 // pred_check_branch
          %223 = sbr.rel (%p221) target = $region32
        $region31: #{encoder_block_forward.7} parent=11 // pred_region
          _
        $region32: #{encoder_block_forward.7} parent=11 // pred_fallthru
          _
        // Predicated region
        $region33: #{encoder_block_forward.7} parent=11 // pred_check
          %p224 = pneg %p168
        $region34: #{encoder_block_forward.7} parent=11 // pred_check_branch
          %226 = sbr.rel (%p224) target = $region36
        $region35: #{encoder_block_forward.7} parent=11 // pred_region
          _
        $region36: #{encoder_block_forward.7} parent=11 // pred_fallthru
          _
      $region12: #{encoder_block_forward.7} parent=5 // pred_fallthru
        _
      %p227 = scmp.lt.s32.totalorder %s16, 2
      // Predicated region
      $region37: #{encoder_block_forward.7} parent=5 // pred_check
        %p228 = pneg %p227
      $region38: #{encoder_block_forward.7} parent=5 // pred_check_branch
        %230 = sbr.rel (%p228) target = $region40
      $region39: #{encoder_block_forward.7} parent=5 // pred_region
        // Predicated region
        $region41: #{encoder_block_forward.7} parent=39 // pred_check
          %p231 = pneg %p36
        $region42: #{encoder_block_forward.7} parent=39 // pred_check_branch
          %233 = sbr.rel (%p231) target = $region44
        $region43: #{encoder_block_forward.7} parent=39 // pred_region
          %p234 = scmp.lt.s32.totalorder %s16, 1
          %s235 = scalar_select %p234, %s16, 1
          %s236 = smul.addr %s235, 8
          %s237 = scalar_lea.vmem %s0, %s236
        $region44: #{encoder_block_forward.7} parent=39 // pred_fallthru
          _
      $region40: #{encoder_block_forward.7} parent=5 // pred_fallthru
        _
      %p238 = scmp.le.s32.totalorder 1, %s16
      %p239 = scmp.lt.s32.totalorder %s16, 3
      %p240 = pnand %p238, %p239
      %p241 = pneg %p240
      // Predicated region
      $region45: #{encoder_block_forward.7} parent=5 // pred_check
        _
      $region46: #{encoder_block_forward.7} parent=5 // pred_check_branch
        %243 = sbr.rel (%p240) target = $region48
      $region47: #{encoder_block_forward.7} parent=5 // pred_region
        %s244 = ssub.s32 %s16, 1
        %p245 = scmp.lt.s32.totalorder %s21, 1
        %s246 = scalar_select %p245, %s21, 1
        %s247 = smul.addr %s246, 8
        %s248 = scalar_lea.vmem %s0, %s247
        %p249 = pneg %p42
        %p250 = pneg %p39
        %p251 = pneg %p63
        %p252 = pneg %p60
        %p253 = pneg %p84
        %p254 = pneg %p81
        %p255 = pneg %p105
        %p256 = pneg %p102
        %p257 = pneg %p126
        %p258 = pneg %p123
        %p259 = pneg %p147
        %p260 = pneg %p144
        %p261 = pneg %p168
        %p262 = pneg %p165
        %p263 = pneg %p194
        %p264 = pneg %p191
        %s265 = sand.u32 %s181, 1
        %s266 = scalar_lea.sflag [#allocation3], %s265
        %s267 = sand.u32 %s181, 1
        %s268 = smul.addr %s267, 8
        %s269 = scalar_lea.vmem [#allocation2], %s268
        %p270 = scmp.lt.s32.totalorder %s21, 1
        %s271 = scalar_select %p270, %s21, 1
        %s272 = smul.addr %s271, 8
        %s273 = scalar_lea.vmem %s0, %s272
        %v274 = vld [vmem:[%s273] sm:$0xff]
        %v275 = vld [vmem:[%s1] sm:$0x1]
        %v276 = vld [vmem:[%s2] sm:$0x1]
        %vm277 = vcmask 261120
        %v278 = vsel %vm277, %v274, 0.0
        %279 = vadd.xlane.f32.xlu0 %v278
        %v280 = vpop.xlane.xlu0 %279
        %v281 = vrcp.pop 32.0
        %v282 = vmul.f32 %v280, %v281
        %v283 = vsub.f32 %v274, %v282
        %v284 = vmul.f32 %v283, %v283
        %v285 = vsel %vm277, %v284, 0.0
        %286 = vadd.xlane.f32.xlu0 %v285
        %v287 = vpop.xlane.xlu0 %286
        %v288 = vmul.f32 %v287, %v281
        %v289 = vadd.f32 %v288, 1e-05
        %v290 = vrsqrt.pop %v289
        %v291 = vmul.f32 %v283, %v290
        %v293 = vlaneseq
        %v294 = vshrl.u32 %v293, 7
        %v295 = vsub.s32 0, %v294
        %v296 = vrot.slane %v275, %v295
        %v298 = vmul.f32 %v291, %v296
        %v300 = vlaneseq
        %v301 = vshrl.u32 %v300, 7
        %v302 = vsub.s32 0, %v301
        %v303 = vrot.slane %v276, %v302
        %v305 = vadd.f32 %v298, %v303
        %v306 = vld [vmem:[%s3] sm:$0xff]
        %v307 = vld [vmem:[%s3 + $0x8] sm:$0xff]
        %v308 = vld [vmem:[%s3 + $0x10] sm:$0xff]
        %v309 = vld [vmem:[%s3 + $0x18] sm:$0xff]
        %v310 = vld [vmem:[%s4] sm:$0x1]
        %v312 = vlaneseq
        %v313 = vshrl.u32 %v312, 7
        %v314 = vsub.s32 0, %v313
        %v315 = vrot.slane %v310, %v314
        %v318 = vsel %vm277, %v305, 0
        %320 = vmatprep.subr.mxu0 0.0
        %321 = vmatpush1.msra.mxu0 %v306
        %322 = vmatprep.subr.mxu0 0.0
        %323 = vmatpush1.msra.mxu0 %v307
        %324 = vmatprep.subr.mxu0 0.0
        %325 = vmatpush1.msra.mxu0 %v308
        %326 = vmatprep.subr.mxu0 0.0
        %327 = vmatpush1.msra.mxu0 %v309
        %328 = vmatprep.subr.mxu0 0.0
        %329 = vmatpush1.msra.mxu0 0.0
        %330 = vmatprep.subr.mxu0 0.0
        %331 = vmatpush1.msra.mxu0 0.0
        %332 = vmatprep.subr.mxu0 0.0
        %333 = vmatpush1.msra.mxu0 0.0
        %334 = vmatprep.subr.mxu0 0.0
        %335 = vmatpush1.msra.mxu0 0.0
        %336 = vmatprep.subr.mxu0 0.0
        %337 = vmatpush1.msra.mxu0 0.0
        %338 = vmatprep.subr.mxu0 0.0
        %339 = vmatpush1.msra.mxu0 0.0
        %340 = vmatprep.subr.mxu0 0.0
        %341 = vmatpush1.msra.mxu0 0.0
        %342 = vmatprep.subr.mxu0 0.0
        %343 = vmatpush1.msra.mxu0 0.0
        %344 = vmatprep.subr.mxu0 0.0
        %345 = vmatpush1.msra.mxu0 0.0
        %346 = vmatprep.subr.mxu0 0.0
        %347 = vmatpush1.msra.mxu0 0.0
        %348 = vmatprep.subr.mxu0 0.0
        %349 = vmatpush1.msra.mxu0 0.0
        %350 = vmatprep.subr.mxu0 0.0
        %351 = vmatpush1.msra.mxu0 0.0
        %352 = vmatprep.subr.mxu0 0.0
        %353 = vmatpush1.msra.mxu0 0.0
        %354 = vmatprep.subr.mxu0 0.0
        %355 = vmatpush1.msra.mxu0 0.0
        %356 = vmatprep.subr.mxu0 0.0
        %357 = vmatpush1.msra.mxu0 0.0
        %358 = vmatprep.subr.mxu0 0.0
        %359 = vmatpush1.msra.mxu0 0.0
        %360 = vmatprep.subr.mxu0 0.0
        %361 = vmatpush1.msra.mxu0 0.0
        %362 = vmatprep.subr.mxu0 0.0
        %363 = vmatpush1.msra.mxu0 0.0
        %364 = vmatprep.subr.mxu0 0.0
        %365 = vmatpush1.msra.mxu0 0.0
        %366 = vmatprep.subr.mxu0 0.0
        %367 = vmatpush1.msra.mxu0 0.0
        %368 = vmatprep.subr.mxu0 0.0
        %369 = vmatpush1.msra.mxu0 0.0
        %370 = vmatprep.subr.mxu0 0.0
        %371 = vmatpush1.msra.mxu0 0.0
        %372 = vmatprep.subr.mxu0 0.0
        %373 = vmatpush1.msra.mxu0 0.0
        %374 = vmatprep.subr.mxu0 0.0
        %375 = vmatpush1.msra.mxu0 0.0
        %376 = vmatprep.subr.mxu0 0.0
        %377 = vmatpush1.msra.mxu0 0.0
        %378 = vmatprep.subr.mxu0 0.0
        %379 = vmatpush1.msra.mxu0 0.0
        %380 = vmatprep.subr.mxu0 0.0
        %381 = vmatpush1.msra.mxu0 0.0
        %382 = vmatprep.subr.mxu0 0.0
        %383 = vmatpush1.msra.mxu0 0.0
        %384 = vmatprep.mubr.f32.mxu0 0.0
        %385 = vmatmul.mubr.f32.gmra.mrb[0].mxu0 %v318
        %v386 = vpop.f32.mrb[0].mxu0
        %v387 = vadd.f32 %v315, %v386
        %v388 = vpop.f32.mrb[0].mxu0
        %389 = vdwg.mxu0
        %v390 = vmax.f32 %v387, 0.0
        %v391 = vld [vmem:[%s5] sm:$0xff]
        %v392 = vld [vmem:[%s5 + $0x8] sm:$0xff]
        %v393 = vld [vmem:[%s5 + $0x10] sm:$0xff]
        %v394 = vld [vmem:[%s5 + $0x18] sm:$0xff]
        %v395 = vld [vmem:[%s6] sm:$0x1]
        %v397 = vlaneseq
        %v398 = vshrl.u32 %v397, 7
        %v399 = vsub.s32 0, %v398
        %v400 = vrot.slane %v395, %v399
        %v403 = vsel %vm277, %v390, 0
        %405 = vmatprep.subr.mxu0 0.0
        %406 = vmatpush1.msra.mxu0 %v391
        %407 = vmatprep.subr.mxu0 0.0
        %408 = vmatpush1.msra.mxu0 %v392
        %409 = vmatprep.subr.mxu0 0.0
        %410 = vmatpush1.msra.mxu0 %v393
        %411 = vmatprep.subr.mxu0 0.0
        %412 = vmatpush1.msra.mxu0 %v394
        %413 = vmatprep.subr.mxu0 0.0
        %414 = vmatpush1.msra.mxu0 0.0
        %415 = vmatprep.subr.mxu0 0.0
        %416 = vmatpush1.msra.mxu0 0.0
        %417 = vmatprep.subr.mxu0 0.0
        %418 = vmatpush1.msra.mxu0 0.0
        %419 = vmatprep.subr.mxu0 0.0
        %420 = vmatpush1.msra.mxu0 0.0
        %421 = vmatprep.subr.mxu0 0.0
        %422 = vmatpush1.msra.mxu0 0.0
        %423 = vmatprep.subr.mxu0 0.0
        %424 = vmatpush1.msra.mxu0 0.0
        %425 = vmatprep.subr.mxu0 0.0
        %426 = vmatpush1.msra.mxu0 0.0
        %427 = vmatprep.subr.mxu0 0.0
        %428 = vmatpush1.msra.mxu0 0.0
        %429 = vmatprep.subr.mxu0 0.0
        %430 = vmatpush1.msra.mxu0 0.0
        %431 = vmatprep.subr.mxu0 0.0
        %432 = vmatpush1.msra.mxu0 0.0
        %433 = vmatprep.subr.mxu0 0.0
        %434 = vmatpush1.msra.mxu0 0.0
        %435 = vmatprep.subr.mxu0 0.0
        %436 = vmatpush1.msra.mxu0 0.0
        %437 = vmatprep.subr.mxu0 0.0
        %438 = vmatpush1.msra.mxu0 0.0
        %439 = vmatprep.subr.mxu0 0.0
        %440 = vmatpush1.msra.mxu0 0.0
        %441 = vmatprep.subr.mxu0 0.0
        %442 = vmatpush1.msra.mxu0 0.0
        %443 = vmatprep.subr.mxu0 0.0
        %444 = vmatpush1.msra.mxu0 0.0
        %445 = vmatprep.subr.mxu0 0.0
        %446 = vmatpush1.msra.mxu0 0.0
        %447 = vmatprep.subr.mxu0 0.0
        %448 = vmatpush1.msra.mxu0 0.0
        %449 = vmatprep.subr.mxu0 0.0
        %450 = vmatpush1.msra.mxu0 0.0
        %451 = vmatprep.subr.mxu0 0.0
        %452 = vmatpush1.msra.mxu0 0.0
        %453 = vmatprep.subr.mxu0 0.0
        %454 = vmatpush1.msra.mxu0 0.0
        %455 = vmatprep.subr.mxu0 0.0
        %456 = vmatpush1.msra.mxu0 0.0
        %457 = vmatprep.subr.mxu0 0.0
        %458 = vmatpush1.msra.mxu0 0.0
        %459 = vmatprep.subr.mxu0 0.0
        %460 = vmatpush1.msra.mxu0 0.0
        %461 = vmatprep.subr.mxu0 0.0
        %462 = vmatpush1.msra.mxu0 0.0
        %463 = vmatprep.subr.mxu0 0.0
        %464 = vmatpush1.msra.mxu0 0.0
        %465 = vmatprep.subr.mxu0 0.0
        %466 = vmatpush1.msra.mxu0 0.0
        %467 = vmatprep.subr.mxu0 0.0
        %468 = vmatpush1.msra.mxu0 0.0
        %469 = vmatprep.mubr.f32.mxu0 0.0
        %470 = vmatmul.mubr.f32.gmra.mrb[0].mxu0 %v403
        %v471 = vpop.f32.mrb[0].mxu0
        %v472 = vadd.f32 %v400, %v471
        %v473 = vpop.f32.mrb[0].mxu0
        %474 = vdwg.mxu0
        %v475 = vmax.f32 %v472, 0.0
        %v476 = vadd.f32 %v475, %v274
        %477 = vst.msk [vmem:[%s269] sm:$0xff] %vm277, %v476
        %s478 = sand.u32 %s181, 1
        %s479 = scalar_lea.sflag [#allocation3], %s478
        %s480 = sand.u32 %s181, 1
        %s481 = smul.addr %s480, 8
        %s482 = scalar_lea.vmem [#allocation2], %s481
        // Predicated region
        $region49: #{encoder_block_forward.7} parent=47 // pred_check
          %p483 = pneg %p191
        $region50: #{encoder_block_forward.7} parent=47 // pred_check_branch
          %485 = sbr.rel (%p483) target = $region52
        $region51: #{encoder_block_forward.7} parent=47 // pred_region
          %s487 = ssub.s32 128, 128
          %488 = vsyncadd %s479, %s487
          %s489 = smul.addr %s21, 128
          %s490 = scalar_lea.hbm %s7, %s489
          %s492 = sshll.u32 %s482, 4
          %s493 = int_to_ptr.vmem [resolvable:$true] %s492
          %495 = dma.vmem_to_hbm [thread:$0]  %s493, 128, %s490, %s479
        $region52: #{encoder_block_forward.7} parent=47 // pred_fallthru
          _
      $region48: #{encoder_block_forward.7} parent=5 // pred_fallthru
        _
      %p496 = scmp.le.s32.totalorder 2, %s16
      // Predicated region
      $region53: #{encoder_block_forward.7} parent=5 // pred_check
        %p497 = pneg %p496
      $region54: #{encoder_block_forward.7} parent=5 // pred_check_branch
        %499 = sbr.rel (%p497) target = $region56
      $region55: #{encoder_block_forward.7} parent=5 // pred_region
        %s500 = ssub.s32 %s16, 2
        // Predicated region
        $region57: #{encoder_block_forward.7} parent=55 // pred_check
          %p501 = pneg %p197
        $region58: #{encoder_block_forward.7} parent=55 // pred_check_branch
          %503 = sbr.rel (%p501) target = $region60
        $region59: #{encoder_block_forward.7} parent=55 // pred_region
          %s504 = sand.u32 %s182, 1
          %s505 = scalar_lea.sflag [#allocation3], %s504
          %s506 = sand.u32 %s182, 1
          %s507 = smul.addr %s506, 8
          %s508 = scalar_lea.vmem [#allocation2], %s507
          %509 = dma.done %s505, 128
        $region60: #{encoder_block_forward.7} parent=55 // pred_fallthru
          _
      $region56: #{encoder_block_forward.7} parent=5 // pred_fallthru
        _
    $region6: #{encoder_block_forward.7} parent=1 // loop_footer
      %s20 = sadd.s32 1, %s16
    $region7: #{encoder_block_forward.7} parent=1 // loop_footer_branch
      %15 = sbr.rel target = $region3
    $region8: #{encoder_block_forward.7} parent=1 // loop_exit
      _
    %510 = vsyncpa [#allocation3], 1
    %s511 = scalar_lea.sflag [#allocation3], 1
    %512 = vsyncpa %s511, 1

// kernel: encoder_block_forward.6
$region0: #{encoder_block_forward.6}
  #allocation0 [shape = 'u32[]', space=smem, size = 0x4, offset = 0x4, fixed_abs, tag = 'smem constant byte address 0x4 - core index']
  #allocation1 [shape = 'u32[144,128]{1,0:T(1,128)}', space=vmem, size = 0x12000, scoped, tag = 'internal scratch']
  %s0 = inlined_call_operand.vmem [shape: f32[2,8,32], index: 0, kind: input, shape index: {}]
  %s1 = inlined_call_operand.vmem [shape: f32[2,1,8], index: 1, kind: input, shape index: {}]
  %s2 = inlined_call_operand.vmem [shape: f32[1,32], index: 2, kind: input, shape index: {}]
  %s3 = inlined_call_operand.vmem [shape: f32[1,32], index: 3, kind: input, shape index: {}]
  %s4 = inlined_call_operand.vmem [shape: f32[32,32], index: 4, kind: input, shape index: {}]
  %s5 = inlined_call_operand.vmem [shape: f32[32,32], index: 5, kind: input, shape index: {}]
  %s6 = inlined_call_operand.vmem [shape: f32[32,32], index: 6, kind: input, shape index: {}]
  %s7 = inlined_call_operand.vmem [shape: f32[1,32], index: 7, kind: input, shape index: {}]
  %s8 = inlined_call_operand.vmem [shape: f32[1,32], index: 8, kind: input, shape index: {}]
  %s9 = inlined_call_operand.vmem [shape: f32[1,32], index: 9, kind: input, shape index: {}]
  %s10 = inlined_call_operand.vmem [shape: f32[32,32], index: 10, kind: input, shape index: {}]
  %s11 = inlined_call_operand.vmem [shape: f32[1,32], index: 11, kind: input, shape index: {}]
  %s12 = inlined_call_operand.vmem [shape: f32[2,8,32], index: 12, kind: output, shape index: {}]
  %s13 = sld [smem:[#allocation0]]
  $region81: #{encoder_block_forward.6} parent=0
    _
  %s15 = ssub.s32 1, %s13
  %s16 = scalar_select 0, %s15, %s13
  loop: start=0, step=1, limit=4
  $region2: #{encoder_block_forward.6} parent=0 // loop_pre_header
    _
  $region3: #{encoder_block_forward.6} parent=0 // loop_header
    %s18 = sphi 0, %s22
    %p19 = scmp.ge.s32.totalorder %s18, 4
    %s28 = sphi 0, %s30
    %s31 = sphi 0, %s28
    %s32 = sphi 0, %s31
    %s48 = sphi 0, %s32
    %s54 = sphi 0, %s56
    %s57 = sphi 0, %s54
    %s58 = sphi 0, %s57
    %s74 = sphi 0, %s58
    %s78 = sphi 0, %s78
    %s80 = sphi 0, %s78
    %s81 = sphi 0, %s80
    %s95 = sphi 0, %s81
    %s99 = sphi 0, %s99
    %s101 = sphi 0, %s99
    %s102 = sphi 0, %s101
    %s116 = sphi 0, %s102
    %s120 = sphi 0, %s120
    %s122 = sphi 0, %s120
    %s123 = sphi 0, %s122
    %s137 = sphi 0, %s123
    %s141 = sphi 0, %s141
    %s143 = sphi 0, %s141
    %s144 = sphi 0, %s143
    %s158 = sphi 0, %s144
    %s162 = sphi 0, %s162
    %s164 = sphi 0, %s162
    %s165 = sphi 0, %s164
    %s179 = sphi 0, %s165
    %s183 = sphi 0, %s183
    %s185 = sphi 0, %s183
    %s186 = sphi 0, %s185
    %s200 = sphi 0, %s186
    %s204 = sphi 0, %s204
    %s206 = sphi 0, %s204
    %s207 = sphi 0, %s206
    %s221 = sphi 0, %s207
    %s225 = sphi 0, %s225
    %s227 = sphi 0, %s225
    %s228 = sphi 0, %s227
    %s242 = sphi 0, %s228
    %s246 = sphi 0, %s246
    %s248 = sphi 0, %s246
    %s249 = sphi 0, %s248
    %s263 = sphi 0, %s249
    %s267 = sphi 0, %s267
    %s269 = sphi 0, %s267
    %s270 = sphi 0, %s269
    %s284 = sphi 0, %s270
    %s290 = sphi 0, %s292
    %s293 = sphi 0, %s290
    %s294 = sphi 0, %s293
    %s310 = sphi 0, %s294
  $region4: #{encoder_block_forward.6} parent=0 // loop_header_branch
    %21 = sbr.rel (%p19) target = $region8
  $region5: #{encoder_block_forward.6} parent=0 // loop_body
    %s23 = ssub.s32 %s18, 1
    %s24 = ssub.s32 %s18, 2
    %s25 = sadd.s32 %s18, 1
    %s26 = ssub.s32 %s18, %s25
    %p27 = scmp.eq.s32.totalorder %s26, 0
    %s29 = sadd.s32 %s28, 1
    %s30 = scalar_select %p27, %s28, %s29
    %p33 = pneg %p27
    %p34 = scmp.eq.s32.totalorder %s18, 1
    %p35 = por %p33, %p34
    %p36 = scmp.ne.s32.totalorder %s28, %s31
    %p37 = scmp.eq.s32.totalorder %s18, 0
    %p38 = por %p36, %p37
    %p39 = scmp.ne.s32.totalorder %s28, %s31
    %p40 = scmp.eq.s32.totalorder %s23, 1
    %p41 = por %p39, %p40
    %p42 = scmp.ne.s32.totalorder %s31, %s32
    %p43 = scmp.eq.s32.totalorder %s23, 0
    %p44 = por %p42, %p43
    %p45 = scmp.ne.s32.totalorder %s31, %s32
    %p46 = scmp.eq.s32.totalorder %s24, 1
    %p47 = por %p45, %p46
    %p49 = scmp.ne.s32.totalorder %s32, %s48
    %p50 = scmp.eq.s32.totalorder %s24, 0
    %p51 = por %p49, %p50
    %s52 = ssub.s32 %s18, %s25
    %p53 = scmp.eq.s32.totalorder %s52, 0
    %s55 = sadd.s32 %s54, 1
    %s56 = scalar_select %p53, %s54, %s55
    %p59 = pneg %p53
    %p60 = scmp.eq.s32.totalorder %s18, 1
    %p61 = por %p59, %p60
    %p62 = scmp.ne.s32.totalorder %s54, %s57
    %p63 = scmp.eq.s32.totalorder %s18, 0
    %p64 = por %p62, %p63
    %p65 = scmp.ne.s32.totalorder %s54, %s57
    %p66 = scmp.eq.s32.totalorder %s23, 1
    %p67 = por %p65, %p66
    %p68 = scmp.ne.s32.totalorder %s57, %s58
    %p69 = scmp.eq.s32.totalorder %s23, 0
    %p70 = por %p68, %p69
    %p71 = scmp.ne.s32.totalorder %s57, %s58
    %p72 = scmp.eq.s32.totalorder %s24, 1
    %p73 = por %p71, %p72
    %p75 = scmp.ne.s32.totalorder %s58, %s74
    %p76 = scmp.eq.s32.totalorder %s24, 0
    %p77 = por %p75, %p76
    %s79 = sadd.s32 %s78, 1
    %p82 = scmp.eq.s32.totalorder %s18, 1
    %p83 = scmp.ne.s32.totalorder %s78, %s80
    %p84 = scmp.eq.s32.totalorder %s18, 0
    %p85 = por %p83, %p84
    %p86 = scmp.ne.s32.totalorder %s78, %s80
    %p87 = scmp.eq.s32.totalorder %s23, 1
    %p88 = por %p86, %p87
    %p89 = scmp.ne.s32.totalorder %s80, %s81
    %p90 = scmp.eq.s32.totalorder %s23, 0
    %p91 = por %p89, %p90
    %p92 = scmp.ne.s32.totalorder %s80, %s81
    %p93 = scmp.eq.s32.totalorder %s24, 1
    %p94 = por %p92, %p93
    %p96 = scmp.ne.s32.totalorder %s81, %s95
    %p97 = scmp.eq.s32.totalorder %s24, 0
    %p98 = por %p96, %p97
    %s100 = sadd.s32 %s99, 1
    %p103 = scmp.eq.s32.totalorder %s18, 1
    %p104 = scmp.ne.s32.totalorder %s99, %s101
    %p105 = scmp.eq.s32.totalorder %s18, 0
    %p106 = por %p104, %p105
    %p107 = scmp.ne.s32.totalorder %s99, %s101
    %p108 = scmp.eq.s32.totalorder %s23, 1
    %p109 = por %p107, %p108
    %p110 = scmp.ne.s32.totalorder %s101, %s102
    %p111 = scmp.eq.s32.totalorder %s23, 0
    %p112 = por %p110, %p111
    %p113 = scmp.ne.s32.totalorder %s101, %s102
    %p114 = scmp.eq.s32.totalorder %s24, 1
    %p115 = por %p113, %p114
    %p117 = scmp.ne.s32.totalorder %s102, %s116
    %p118 = scmp.eq.s32.totalorder %s24, 0
    %p119 = por %p117, %p118
    %s121 = sadd.s32 %s120, 1
    %p124 = scmp.eq.s32.totalorder %s18, 1
    %p125 = scmp.ne.s32.totalorder %s120, %s122
    %p126 = scmp.eq.s32.totalorder %s18, 0
    %p127 = por %p125, %p126
    %p128 = scmp.ne.s32.totalorder %s120, %s122
    %p129 = scmp.eq.s32.totalorder %s23, 1
    %p130 = por %p128, %p129
    %p131 = scmp.ne.s32.totalorder %s122, %s123
    %p132 = scmp.eq.s32.totalorder %s23, 0
    %p133 = por %p131, %p132
    %p134 = scmp.ne.s32.totalorder %s122, %s123
    %p135 = scmp.eq.s32.totalorder %s24, 1
    %p136 = por %p134, %p135
    %p138 = scmp.ne.s32.totalorder %s123, %s137
    %p139 = scmp.eq.s32.totalorder %s24, 0
    %p140 = por %p138, %p139
    %s142 = sadd.s32 %s141, 1
    %p145 = scmp.eq.s32.totalorder %s18, 1
    %p146 = scmp.ne.s32.totalorder %s141, %s143
    %p147 = scmp.eq.s32.totalorder %s18, 0
    %p148 = por %p146, %p147
    %p149 = scmp.ne.s32.totalorder %s141, %s143
    %p150 = scmp.eq.s32.totalorder %s23, 1
    %p151 = por %p149, %p150
    %p152 = scmp.ne.s32.totalorder %s143, %s144
    %p153 = scmp.eq.s32.totalorder %s23, 0
    %p154 = por %p152, %p153
    %p155 = scmp.ne.s32.totalorder %s143, %s144
    %p156 = scmp.eq.s32.totalorder %s24, 1
    %p157 = por %p155, %p156
    %p159 = scmp.ne.s32.totalorder %s144, %s158
    %p160 = scmp.eq.s32.totalorder %s24, 0
    %p161 = por %p159, %p160
    %s163 = sadd.s32 %s162, 1
    %p166 = scmp.eq.s32.totalorder %s18, 1
    %p167 = scmp.ne.s32.totalorder %s162, %s164
    %p168 = scmp.eq.s32.totalorder %s18, 0
    %p169 = por %p167, %p168
    %p170 = scmp.ne.s32.totalorder %s162, %s164
    %p171 = scmp.eq.s32.totalorder %s23, 1
    %p172 = por %p170, %p171
    %p173 = scmp.ne.s32.totalorder %s164, %s165
    %p174 = scmp.eq.s32.totalorder %s23, 0
    %p175 = por %p173, %p174
    %p176 = scmp.ne.s32.totalorder %s164, %s165
    %p177 = scmp.eq.s32.totalorder %s24, 1
    %p178 = por %p176, %p177
    %p180 = scmp.ne.s32.totalorder %s165, %s179
    %p181 = scmp.eq.s32.totalorder %s24, 0
    %p182 = por %p180, %p181
    %s184 = sadd.s32 %s183, 1
    %p187 = scmp.eq.s32.totalorder %s18, 1
    %p188 = scmp.ne.s32.totalorder %s183, %s185
    %p189 = scmp.eq.s32.totalorder %s18, 0
    %p190 = por %p188, %p189
    %p191 = scmp.ne.s32.totalorder %s183, %s185
    %p192 = scmp.eq.s32.totalorder %s23, 1
    %p193 = por %p191, %p192
    %p194 = scmp.ne.s32.totalorder %s185, %s186
    %p195 = scmp.eq.s32.totalorder %s23, 0
    %p196 = por %p194, %p195
    %p197 = scmp.ne.s32.totalorder %s185, %s186
    %p198 = scmp.eq.s32.totalorder %s24, 1
    %p199 = por %p197, %p198
    %p201 = scmp.ne.s32.totalorder %s186, %s200
    %p202 = scmp.eq.s32.totalorder %s24, 0
    %p203 = por %p201, %p202
    %s205 = sadd.s32 %s204, 1
    %p208 = scmp.eq.s32.totalorder %s18, 1
    %p209 = scmp.ne.s32.totalorder %s204, %s206
    %p210 = scmp.eq.s32.totalorder %s18, 0
    %p211 = por %p209, %p210
    %p212 = scmp.ne.s32.totalorder %s204, %s206
    %p213 = scmp.eq.s32.totalorder %s23, 1
    %p214 = por %p212, %p213
    %p215 = scmp.ne.s32.totalorder %s206, %s207
    %p216 = scmp.eq.s32.totalorder %s23, 0
    %p217 = por %p215, %p216
    %p218 = scmp.ne.s32.totalorder %s206, %s207
    %p219 = scmp.eq.s32.totalorder %s24, 1
    %p220 = por %p218, %p219
    %p222 = scmp.ne.s32.totalorder %s207, %s221
    %p223 = scmp.eq.s32.totalorder %s24, 0
    %p224 = por %p222, %p223
    %s226 = sadd.s32 %s225, 1
    %p229 = scmp.eq.s32.totalorder %s18, 1
    %p230 = scmp.ne.s32.totalorder %s225, %s227
    %p231 = scmp.eq.s32.totalorder %s18, 0
    %p232 = por %p230, %p231
    %p233 = scmp.ne.s32.totalorder %s225, %s227
    %p234 = scmp.eq.s32.totalorder %s23, 1
    %p235 = por %p233, %p234
    %p236 = scmp.ne.s32.totalorder %s227, %s228
    %p237 = scmp.eq.s32.totalorder %s23, 0
    %p238 = por %p236, %p237
    %p239 = scmp.ne.s32.totalorder %s227, %s228
    %p240 = scmp.eq.s32.totalorder %s24, 1
    %p241 = por %p239, %p240
    %p243 = scmp.ne.s32.totalorder %s228, %s242
    %p244 = scmp.eq.s32.totalorder %s24, 0
    %p245 = por %p243, %p244
    %s247 = sadd.s32 %s246, 1
    %p250 = scmp.eq.s32.totalorder %s18, 1
    %p251 = scmp.ne.s32.totalorder %s246, %s248
    %p252 = scmp.eq.s32.totalorder %s18, 0
    %p253 = por %p251, %p252
    %p254 = scmp.ne.s32.totalorder %s246, %s248
    %p255 = scmp.eq.s32.totalorder %s23, 1
    %p256 = por %p254, %p255
    %p257 = scmp.ne.s32.totalorder %s248, %s249
    %p258 = scmp.eq.s32.totalorder %s23, 0
    %p259 = por %p257, %p258
    %p260 = scmp.ne.s32.totalorder %s248, %s249
    %p261 = scmp.eq.s32.totalorder %s24, 1
    %p262 = por %p260, %p261
    %p264 = scmp.ne.s32.totalorder %s249, %s263
    %p265 = scmp.eq.s32.totalorder %s24, 0
    %p266 = por %p264, %p265
    %s268 = sadd.s32 %s267, 1
    %p271 = scmp.eq.s32.totalorder %s18, 1
    %p272 = scmp.ne.s32.totalorder %s267, %s269
    %p273 = scmp.eq.s32.totalorder %s18, 0
    %p274 = por %p272, %p273
    %p275 = scmp.ne.s32.totalorder %s267, %s269
    %p276 = scmp.eq.s32.totalorder %s23, 1
    %p277 = por %p275, %p276
    %p278 = scmp.ne.s32.totalorder %s269, %s270
    %p279 = scmp.eq.s32.totalorder %s23, 0
    %p280 = por %p278, %p279
    %p281 = scmp.ne.s32.totalorder %s269, %s270
    %p282 = scmp.eq.s32.totalorder %s24, 1
    %p283 = por %p281, %p282
    %p285 = scmp.ne.s32.totalorder %s270, %s284
    %p286 = scmp.eq.s32.totalorder %s24, 0
    %p287 = por %p285, %p286
    %s288 = ssub.s32 %s18, %s25
    %p289 = scmp.eq.s32.totalorder %s288, 0
    %s291 = sadd.s32 %s290, 1
    %s292 = scalar_select %p289, %s290, %s291
    %p295 = pneg %p289
    %p296 = scmp.eq.s32.totalorder %s18, 1
    %p297 = por %p295, %p296
    %p298 = scmp.ne.s32.totalorder %s290, %s293
    %p299 = scmp.eq.s32.totalorder %s18, 0
    %p300 = por %p298, %p299
    %p301 = scmp.ne.s32.totalorder %s290, %s293
    %p302 = scmp.eq.s32.totalorder %s23, 1
    %p303 = por %p301, %p302
    %p304 = scmp.ne.s32.totalorder %s293, %s294
    %p305 = scmp.eq.s32.totalorder %s23, 0
    %p306 = por %p304, %p305
    %p307 = scmp.ne.s32.totalorder %s293, %s294
    %p308 = scmp.eq.s32.totalorder %s24, 1
    %p309 = por %p307, %p308
    %p311 = scmp.ne.s32.totalorder %s294, %s310
    %p312 = scmp.eq.s32.totalorder %s24, 0
    %p313 = por %p311, %p312
    %p314 = scmp.le.s32.totalorder 1, %s18
    %p315 = scmp.lt.s32.totalorder %s18, 3
    %p316 = pnand %p314, %p315
    %p317 = pneg %p316
    // Predicated region
    $region9: #{encoder_block_forward.6} parent=5 // pred_check
      _
    $region10: #{encoder_block_forward.6} parent=5 // pred_check_branch
      %319 = sbr.rel (%p316) target = $region12
    $region11: #{encoder_block_forward.6} parent=5 // pred_region
      %s320 = ssub.s32 %s18, 1
      // Predicated region
      $region13: #{encoder_block_forward.6} parent=11 // pred_check
        %p321 = pneg %p91
      $region14: #{encoder_block_forward.6} parent=11 // pred_check_branch
        %323 = sbr.rel (%p321) target = $region16
      $region15: #{encoder_block_forward.6} parent=11 // pred_region
        _
      $region16: #{encoder_block_forward.6} parent=11 // pred_fallthru
        _
      // Predicated region
      $region17: #{encoder_block_forward.6} parent=11 // pred_check
        %p324 = pneg %p112
      $region18: #{encoder_block_forward.6} parent=11 // pred_check_branch
        %326 = sbr.rel (%p324) target = $region20
      $region19: #{encoder_block_forward.6} parent=11 // pred_region
        _
      $region20: #{encoder_block_forward.6} parent=11 // pred_fallthru
        _
      // Predicated region
      $region21: #{encoder_block_forward.6} parent=11 // pred_check
        %p327 = pneg %p133
      $region22: #{encoder_block_forward.6} parent=11 // pred_check_branch
        %329 = sbr.rel (%p327) target = $region24
      $region23: #{encoder_block_forward.6} parent=11 // pred_region
        _
      $region24: #{encoder_block_forward.6} parent=11 // pred_fallthru
        _
      // Predicated region
      $region25: #{encoder_block_forward.6} parent=11 // pred_check
        %p330 = pneg %p154
      $region26: #{encoder_block_forward.6} parent=11 // pred_check_branch
        %332 = sbr.rel (%p330) target = $region28
      $region27: #{encoder_block_forward.6} parent=11 // pred_region
        _
      $region28: #{encoder_block_forward.6} parent=11 // pred_fallthru
        _
      // Predicated region
      $region29: #{encoder_block_forward.6} parent=11 // pred_check
        %p333 = pneg %p175
      $region30: #{encoder_block_forward.6} parent=11 // pred_check_branch
        %335 = sbr.rel (%p333) target = $region32
      $region31: #{encoder_block_forward.6} parent=11 // pred_region
        _
      $region32: #{encoder_block_forward.6} parent=11 // pred_fallthru
        _
      // Predicated region
      $region33: #{encoder_block_forward.6} parent=11 // pred_check
        %p336 = pneg %p196
      $region34: #{encoder_block_forward.6} parent=11 // pred_check_branch
        %338 = sbr.rel (%p336) target = $region36
      $region35: #{encoder_block_forward.6} parent=11 // pred_region
        _
      $region36: #{encoder_block_forward.6} parent=11 // pred_fallthru
        _
      // Predicated region
      $region37: #{encoder_block_forward.6} parent=11 // pred_check
        %p339 = pneg %p217
      $region38: #{encoder_block_forward.6} parent=11 // pred_check_branch
        %341 = sbr.rel (%p339) target = $region40
      $region39: #{encoder_block_forward.6} parent=11 // pred_region
        _
      $region40: #{encoder_block_forward.6} parent=11 // pred_fallthru
        _
      // Predicated region
      $region41: #{encoder_block_forward.6} parent=11 // pred_check
        %p342 = pneg %p238
      $region42: #{encoder_block_forward.6} parent=11 // pred_check_branch
        %344 = sbr.rel (%p342) target = $region44
      $region43: #{encoder_block_forward.6} parent=11 // pred_region
        _
      $region44: #{encoder_block_forward.6} parent=11 // pred_fallthru
        _
      // Predicated region
      $region45: #{encoder_block_forward.6} parent=11 // pred_check
        %p345 = pneg %p259
      $region46: #{encoder_block_forward.6} parent=11 // pred_check_branch
        %347 = sbr.rel (%p345) target = $region48
      $region47: #{encoder_block_forward.6} parent=11 // pred_region
        _
      $region48: #{encoder_block_forward.6} parent=11 // pred_fallthru
        _
      // Predicated region
      $region49: #{encoder_block_forward.6} parent=11 // pred_check
        %p348 = pneg %p280
      $region50: #{encoder_block_forward.6} parent=11 // pred_check_branch
        %350 = sbr.rel (%p348) target = $region52
      $region51: #{encoder_block_forward.6} parent=11 // pred_region
        _
      $region52: #{encoder_block_forward.6} parent=11 // pred_fallthru
        _
    $region12: #{encoder_block_forward.6} parent=5 // pred_fallthru
      _
    %p351 = scmp.lt.s32.totalorder %s18, 2
    // Predicated region
    $region53: #{encoder_block_forward.6} parent=5 // pred_check
      %p352 = pneg %p351
    $region54: #{encoder_block_forward.6} parent=5 // pred_check_branch
      %354 = sbr.rel (%p352) target = $region56
    $region55: #{encoder_block_forward.6} parent=5 // pred_region
      // Predicated region
      $region57: #{encoder_block_forward.6} parent=55 // pred_check
        %p355 = pneg %p38
      $region58: #{encoder_block_forward.6} parent=55 // pred_check_branch
        %357 = sbr.rel (%p355) target = $region60
      $region59: #{encoder_block_forward.6} parent=55 // pred_region
        %p358 = scmp.lt.s32.totalorder %s18, 1
        %s359 = scalar_select %p358, %s18, 1
        %s360 = smul.addr %s359, 8
        %s361 = scalar_lea.vmem %s0, %s360
      $region60: #{encoder_block_forward.6} parent=55 // pred_fallthru
        _
      // Predicated region
      $region61: #{encoder_block_forward.6} parent=55 // pred_check
        %p362 = pneg %p64
      $region62: #{encoder_block_forward.6} parent=55 // pred_check_branch
        %364 = sbr.rel (%p362) target = $region64
      $region63: #{encoder_block_forward.6} parent=55 // pred_region
        %p365 = scmp.lt.s32.totalorder %s18, 1
        %s366 = scalar_select %p365, %s18, 1
        %s367 = scalar_lea.vmem %s1, %s366
      $region64: #{encoder_block_forward.6} parent=55 // pred_fallthru
        _
    $region56: #{encoder_block_forward.6} parent=5 // pred_fallthru
      _
    %p368 = scmp.le.s32.totalorder 1, %s18
    %p369 = scmp.lt.s32.totalorder %s18, 3
    %p370 = pnand %p368, %p369
    %p371 = pneg %p370
    // Predicated region
    $region65: #{encoder_block_forward.6} parent=5 // pred_check
      _
    $region66: #{encoder_block_forward.6} parent=5 // pred_check_branch
      %373 = sbr.rel (%p370) target = $region68
    $region67: #{encoder_block_forward.6} parent=5 // pred_region
      %s374 = ssub.s32 %s18, 1
      %p375 = scmp.lt.s32.totalorder %s23, 1
      %s376 = scalar_select %p375, %s23, 1
      %s377 = smul.addr %s376, 8
      %s378 = scalar_lea.vmem %s0, %s377
      %p379 = pneg %p44
      %p380 = pneg %p41
      %p381 = scmp.lt.s32.totalorder %s23, 1
      %s382 = scalar_select %p381, %s23, 1
      %s383 = scalar_lea.vmem %s1, %s382
      %p384 = pneg %p70
      %p385 = pneg %p67
      %p386 = pneg %p91
      %p387 = pneg %p88
      %p388 = pneg %p112
      %p389 = pneg %p109
      %p390 = pneg %p133
      %p391 = pneg %p130
      %p392 = pneg %p154
      %p393 = pneg %p151
      %p394 = pneg %p175
      %p395 = pneg %p172
      %p396 = pneg %p196
      %p397 = pneg %p193
      %p398 = pneg %p217
      %p399 = pneg %p214
      %p400 = pneg %p238
      %p401 = pneg %p235
      %p402 = pneg %p259
      %p403 = pneg %p256
      %p404 = pneg %p280
      %p405 = pneg %p277
      %p406 = pneg %p306
      %p407 = pneg %p303
      %p408 = scmp.lt.s32.totalorder %s23, 1
      %s409 = scalar_select %p408, %s23, 1
      %s410 = smul.addr %s409, 8
      %s411 = scalar_lea.vmem %s12, %s410
      %p412 = scmp.lt.s32.totalorder %s23, 1
      %s413 = scalar_select %p412, %s23, 1
      %s414 = smul.addr %s413, 8
      %s415 = scalar_lea.vmem %s0, %s414
      %p416 = scmp.lt.s32.totalorder %s23, 1
      %s417 = scalar_select %p416, %s23, 1
      %s418 = scalar_lea.vmem %s1, %s417
      %p419 = scmp.lt.s32.totalorder %s23, 1
      %s420 = scalar_select %p419, %s23, 1
      %s421 = smul.addr %s420, 8
      %s422 = scalar_lea.vmem %s12, %s421
      %v423 = vld [vmem:[%s415] sm:$0xff]
      %v424 = vld [vmem:[%s2] sm:$0x1]
      %v425 = vld [vmem:[%s3] sm:$0x1]
      %vm426 = vcmask 261120
      %v427 = vsel %vm426, %v423, 0.0
      %428 = vadd.xlane.f32.xlu0 %v427
      %v429 = vpop.xlane.xlu0 %428
      %v430 = vrcp.pop 32.0
      %v431 = vmul.f32 %v429, %v430
      %v432 = vsub.f32 %v423, %v431
      %v433 = vmul.f32 %v432, %v432
      %v434 = vsel %vm426, %v433, 0.0
      %435 = vadd.xlane.f32.xlu0 %v434
      %v436 = vpop.xlane.xlu0 %435
      %v437 = vmul.f32 %v436, %v430
      %v438 = vadd.f32 %v437, 1e-05
      %v439 = vrsqrt.pop %v438
      %v440 = vmul.f32 %v432, %v439
      %v442 = vlaneseq
      %v443 = vshrl.u32 %v442, 7
      %v444 = vsub.s32 0, %v443
      %v445 = vrot.slane %v424, %v444
      %v447 = vmul.f32 %v440, %v445
      %v449 = vlaneseq
      %v450 = vshrl.u32 %v449, 7
      %v451 = vsub.s32 0, %v450
      %v452 = vrot.slane %v425, %v451
      %v454 = vadd.f32 %v447, %v452
      %v455 = vld [vmem:[%s4] sm:$0xff]
      %v456 = vld [vmem:[%s4 + $0x8] sm:$0xff]
      %v457 = vld [vmem:[%s4 + $0x10] sm:$0xff]
      %v458 = vld [vmem:[%s4 + $0x18] sm:$0xff]
      %v459 = vld [vmem:[%s7] sm:$0x1]
      %v461 = vlaneseq
      %v462 = vshrl.u32 %v461, 7
      %v463 = vsub.s32 0, %v462
      %v464 = vrot.slane %v459, %v463
      %v467 = vsel %vm426, %v454, 0
      %469 = vmatprep.subr.mxu0 0.0
      %470 = vmatpush1.msra.mxu0 %v455
      %471 = vmatprep.subr.mxu0 0.0
      %472 = vmatpush1.msra.mxu0 %v456
      %473 = vmatprep.subr.mxu0 0.0
      %474 = vmatpush1.msra.mxu0 %v457
      %475 = vmatprep.subr.mxu0 0.0
      %476 = vmatpush1.msra.mxu0 %v458
      %477 = vmatprep.subr.mxu0 0.0
      %478 = vmatpush1.msra.mxu0 0.0
      %479 = vmatprep.subr.mxu0 0.0
      %480 = vmatpush1.msra.mxu0 0.0
      %481 = vmatprep.subr.mxu0 0.0
      %482 = vmatpush1.msra.mxu0 0.0
      %483 = vmatprep.subr.mxu0 0.0
      %484 = vmatpush1.msra.mxu0 0.0
      %485 = vmatprep.subr.mxu0 0.0
      %486 = vmatpush1.msra.mxu0 0.0
      %487 = vmatprep.subr.mxu0 0.0
      %488 = vmatpush1.msra.mxu0 0.0
      %489 = vmatprep.subr.mxu0 0.0
      %490 = vmatpush1.msra.mxu0 0.0
      %491 = vmatprep.subr.mxu0 0.0
      %492 = vmatpush1.msra.mxu0 0.0
      %493 = vmatprep.subr.mxu0 0.0
      %494 = vmatpush1.msra.mxu0 0.0
      %495 = vmatprep.subr.mxu0 0.0
      %496 = vmatpush1.msra.mxu0 0.0
      %497 = vmatprep.subr.mxu0 0.0
      %498 = vmatpush1.msra.mxu0 0.0
      %499 = vmatprep.subr.mxu0 0.0
      %500 = vmatpush1.msra.mxu0 0.0
      %501 = vmatprep.subr.mxu0 0.0
      %502 = vmatpush1.msra.mxu0 0.0
      %503 = vmatprep.subr.mxu0 0.0
      %504 = vmatpush1.msra.mxu0 0.0
      %505 = vmatprep.subr.mxu0 0.0
      %506 = vmatpush1.msra.mxu0 0.0
      %507 = vmatprep.subr.mxu0 0.0
      %508 = vmatpush1.msra.mxu0 0.0
      %509 = vmatprep.subr.mxu0 0.0
      %510 = vmatpush1.msra.mxu0 0.0
      %511 = vmatprep.subr.mxu0 0.0
      %512 = vmatpush1.msra.mxu0 0.0
      %513 = vmatprep.subr.mxu0 0.0
      %514 = vmatpush1.msra.mxu0 0.0
      %515 = vmatprep.subr.mxu0 0.0
      %516 = vmatpush1.msra.mxu0 0.0
      %517 = vmatprep.subr.mxu0 0.0
      %518 = vmatpush1.msra.mxu0 0.0
      %519 = vmatprep.subr.mxu0 0.0
      %520 = vmatpush1.msra.mxu0 0.0
      %521 = vmatprep.subr.mxu0 0.0
      %522 = vmatpush1.msra.mxu0 0.0
      %523 = vmatprep.subr.mxu0 0.0
      %524 = vmatpush1.msra.mxu0 0.0
      %525 = vmatprep.subr.mxu0 0.0
      %526 = vmatpush1.msra.mxu0 0.0
      %527 = vmatprep.subr.mxu0 0.0
      %528 = vmatpush1.msra.mxu0 0.0
      %529 = vmatprep.subr.mxu0 0.0
      %530 = vmatpush1.msra.mxu0 0.0
      %531 = vmatprep.subr.mxu0 0.0
      %532 = vmatpush1.msra.mxu0 0.0
      %533 = vmatprep.mubr.f32.mxu0 0.0
      %534 = vmatmul.mubr.f32.gmra.mrb[0].mxu0 %v467
      %v535 = vpop.f32.mrb[0].mxu0
      %v536 = vadd.f32 %v464, %v535
      %v537 = vpop.f32.mrb[0].mxu0
      %538 = vdwg.mxu0
      %v539 = vmul.f32 %v536, 0.5
      %v540 = vld [vmem:[%s5] sm:$0xff]
      %v541 = vld [vmem:[%s5 + $0x8] sm:$0xff]
      %v542 = vld [vmem:[%s5 + $0x10] sm:$0xff]
      %v543 = vld [vmem:[%s5 + $0x18] sm:$0xff]
      %v544 = vld [vmem:[%s8] sm:$0x1]
      %v546 = vlaneseq
      %v547 = vshrl.u32 %v546, 7
      %v548 = vsub.s32 0, %v547
      %v549 = vrot.slane %v544, %v548
      %551 = vmatprep.subr.mxu0 0.0
      %552 = vmatpush1.msra.mxu0 %v540
      %553 = vmatprep.subr.mxu0 0.0
      %554 = vmatpush1.msra.mxu0 %v541
      %555 = vmatprep.subr.mxu0 0.0
      %556 = vmatpush1.msra.mxu0 %v542
      %557 = vmatprep.subr.mxu0 0.0
      %558 = vmatpush1.msra.mxu0 %v543
      %559 = vmatprep.subr.mxu0 0.0
      %560 = vmatpush1.msra.mxu0 0.0
      %561 = vmatprep.subr.mxu0 0.0
      %562 = vmatpush1.msra.mxu0 0.0
      %563 = vmatprep.subr.mxu0 0.0
      %564 = vmatpush1.msra.mxu0 0.0
      %565 = vmatprep.subr.mxu0 0.0
      %566 = vmatpush1.msra.mxu0 0.0
      %567 = vmatprep.subr.mxu0 0.0
      %568 = vmatpush1.msra.mxu0 0.0
      %569 = vmatprep.subr.mxu0 0.0
      %570 = vmatpush1.msra.mxu0 0.0
      %571 = vmatprep.subr.mxu0 0.0
      %572 = vmatpush1.msra.mxu0 0.0
      %573 = vmatprep.subr.mxu0 0.0
      %574 = vmatpush1.msra.mxu0 0.0
      %575 = vmatprep.subr.mxu0 0.0
      %576 = vmatpush1.msra.mxu0 0.0
      %577 = vmatprep.subr.mxu0 0.0
      %578 = vmatpush1.msra.mxu0 0.0
      %579 = vmatprep.subr.mxu0 0.0
      %580 = vmatpush1.msra.mxu0 0.0
      %581 = vmatprep.subr.mxu0 0.0
      %582 = vmatpush1.msra.mxu0 0.0
      %583 = vmatprep.subr.mxu0 0.0
      %584 = vmatpush1.msra.mxu0 0.0
      %585 = vmatprep.subr.mxu0 0.0
      %586 = vmatpush1.msra.mxu0 0.0
      %587 = vmatprep.subr.mxu0 0.0
      %588 = vmatpush1.msra.mxu0 0.0
      %589 = vmatprep.subr.mxu0 0.0
      %590 = vmatpush1.msra.mxu0 0.0
      %591 = vmatprep.subr.mxu0 0.0
      %592 = vmatpush1.msra.mxu0 0.0
      %593 = vmatprep.subr.mxu0 0.0
      %594 = vmatpush1.msra.mxu0 0.0
      %595 = vmatprep.subr.mxu0 0.0
      %596 = vmatpush1.msra.mxu0 0.0
      %597 = vmatprep.subr.mxu0 0.0
      %598 = vmatpush1.msra.mxu0 0.0
      %599 = vmatprep.subr.mxu0 0.0
      %600 = vmatpush1.msra.mxu0 0.0
      %601 = vmatprep.subr.mxu0 0.0
      %602 = vmatpush1.msra.mxu0 0.0
      %603 = vmatprep.subr.mxu0 0.0
      %604 = vmatpush1.msra.mxu0 0.0
      %605 = vmatprep.subr.mxu0 0.0
      %606 = vmatpush1.msra.mxu0 0.0
      %607 = vmatprep.subr.mxu0 0.0
      %608 = vmatpush1.msra.mxu0 0.0
      %609 = vmatprep.subr.mxu0 0.0
      %610 = vmatpush1.msra.mxu0 0.0
      %611 = vmatprep.subr.mxu0 0.0
      %612 = vmatpush1.msra.mxu0 0.0
      %613 = vmatprep.subr.mxu0 0.0
      %614 = vmatpush1.msra.mxu0 0.0
      %615 = vmatprep.mubr.f32.mxu0 0.0
      %616 = vmatmul.mubr.f32.gmra.mrb[0].mxu0 %v467
      %v617 = vpop.f32.mrb[0].mxu0
      %v618 = vadd.f32 %v549, %v617
      %v619 = vpop.f32.mrb[0].mxu0
      %620 = vdwg.mxu0
      %v621 = vld [vmem:[%s6] sm:$0xff]
      %v622 = vld [vmem:[%s6 + $0x8] sm:$0xff]
      %v623 = vld [vmem:[%s6 + $0x10] sm:$0xff]
      %v624 = vld [vmem:[%s6 + $0x18] sm:$0xff]
      %v625 = vld [vmem:[%s9] sm:$0x1]
      %v627 = vlaneseq
      %v628 = vshrl.u32 %v627, 7
      %v629 = vsub.s32 0, %v628
      %v630 = vrot.slane %v625, %v629
      %632 = vmatprep.subr.mxu0 0.0
      %633 = vmatpush1.msra.mxu0 %v621
      %634 = vmatprep.subr.mxu0 0.0
      %635 = vmatpush1.msra.mxu0 %v622
      %636 = vmatprep.subr.mxu0 0.0
      %637 = vmatpush1.msra.mxu0 %v623
      %638 = vmatprep.subr.mxu0 0.0
      %639 = vmatpush1.msra.mxu0 %v624
      %640 = vmatprep.subr.mxu0 0.0
      %641 = vmatpush1.msra.mxu0 0.0
      %642 = vmatprep.subr.mxu0 0.0
      %643 = vmatpush1.msra.mxu0 0.0
      %644 = vmatprep.subr.mxu0 0.0
      %645 = vmatpush1.msra.mxu0 0.0
      %646 = vmatprep.subr.mxu0 0.0
      %647 = vmatpush1.msra.mxu0 0.0
      %648 = vmatprep.subr.mxu0 0.0
      %649 = vmatpush1.msra.mxu0 0.0
      %650 = vmatprep.subr.mxu0 0.0
      %651 = vmatpush1.msra.mxu0 0.0
      %652 = vmatprep.subr.mxu0 0.0
      %653 = vmatpush1.msra.mxu0 0.0
      %654 = vmatprep.subr.mxu0 0.0
      %655 = vmatpush1.msra.mxu0 0.0
      %656 = vmatprep.subr.mxu0 0.0
      %657 = vmatpush1.msra.mxu0 0.0
      %658 = vmatprep.subr.mxu0 0.0
      %659 = vmatpush1.msra.mxu0 0.0
      %660 = vmatprep.subr.mxu0 0.0
      %661 = vmatpush1.msra.mxu0 0.0
      %662 = vmatprep.subr.mxu0 0.0
      %663 = vmatpush1.msra.mxu0 0.0
      %664 = vmatprep.subr.mxu0 0.0
      %665 = vmatpush1.msra.mxu0 0.0
      %666 = vmatprep.subr.mxu0 0.0
      %667 = vmatpush1.msra.mxu0 0.0
      %668 = vmatprep.subr.mxu0 0.0
      %669 = vmatpush1.msra.mxu0 0.0
      %670 = vmatprep.subr.mxu0 0.0
      %671 = vmatpush1.msra.mxu0 0.0
      %672 = vmatprep.subr.mxu0 0.0
      %673 = vmatpush1.msra.mxu0 0.0
      %674 = vmatprep.subr.mxu0 0.0
      %675 = vmatpush1.msra.mxu0 0.0
      %676 = vmatprep.subr.mxu0 0.0
      %677 = vmatpush1.msra.mxu0 0.0
      %678 = vmatprep.subr.mxu0 0.0
      %679 = vmatpush1.msra.mxu0 0.0
      %680 = vmatprep.subr.mxu0 0.0
      %681 = vmatpush1.msra.mxu0 0.0
      %682 = vmatprep.subr.mxu0 0.0
      %683 = vmatpush1.msra.mxu0 0.0
      %684 = vmatprep.subr.mxu0 0.0
      %685 = vmatpush1.msra.mxu0 0.0
      %686 = vmatprep.subr.mxu0 0.0
      %687 = vmatpush1.msra.mxu0 0.0
      %688 = vmatprep.subr.mxu0 0.0
      %689 = vmatpush1.msra.mxu0 0.0
      %690 = vmatprep.subr.mxu0 0.0
      %691 = vmatpush1.msra.mxu0 0.0
      %692 = vmatprep.subr.mxu0 0.0
      %693 = vmatpush1.msra.mxu0 0.0
      %694 = vmatprep.subr.mxu0 0.0
      %695 = vmatpush1.msra.mxu0 0.0
      %696 = vmatprep.mubr.f32.mxu0 0.0
      %697 = vmatmul.mubr.f32.gmra.mrb[0].mxu0 %v467
      %v698 = vpop.f32.mrb[0].mxu0
      %v699 = vadd.f32 %v630, %v698
      %v700 = vpop.f32.mrb[0].mxu0
      %701 = vdwg.mxu0
      %v702 = vld [vmem:[%s418] sm:$0x1]
      %vm703 = vcmask 31744
      %v705 = vsel %vm703, %v539, 0
      %v708 = vsel %vm703, %v618, 0
      %710 = vmatprep.subr.mxu0 0.0
      %711 = vmatpush1.xpose.msra.mxu0 %v708
      %712 = vmatprep.subr.mxu0 0.0
      %713 = vmatpush1.xpose.msra.mxu0 0.0
      %714 = vmatprep.subr.mxu0 0.0
      %715 = vmatpush1.xpose.msra.mxu0 0.0
      %716 = vmatprep.subr.mxu0 0.0
      %717 = vmatpush1.xpose.msra.mxu0 0.0
      %718 = vmatprep.subr.mxu0 0.0
      %719 = vmatpush1.xpose.msra.mxu0 0.0
      %720 = vmatprep.subr.mxu0 0.0
      %721 = vmatpush1.xpose.msra.mxu0 0.0
      %722 = vmatprep.subr.mxu0 0.0
      %723 = vmatpush1.xpose.msra.mxu0 0.0
      %724 = vmatprep.subr.mxu0 0.0
      %725 = vmatpush1.xpose.msra.mxu0 0.0
      %726 = vmatprep.subr.mxu0 0.0
      %727 = vmatpush1.xpose.msra.mxu0 0.0
      %728 = vmatprep.subr.mxu0 0.0
      %729 = vmatpush1.xpose.msra.mxu0 0.0
      %730 = vmatprep.subr.mxu0 0.0
      %731 = vmatpush1.xpose.msra.mxu0 0.0
      %732 = vmatprep.subr.mxu0 0.0
      %733 = vmatpush1.xpose.msra.mxu0 0.0
      %734 = vmatprep.subr.mxu0 0.0
      %735 = vmatpush1.xpose.msra.mxu0 0.0
      %736 = vmatprep.subr.mxu0 0.0
      %737 = vmatpush1.xpose.msra.mxu0 0.0
      %738 = vmatprep.subr.mxu0 0.0
      %739 = vmatpush1.xpose.msra.mxu0 0.0
      %740 = vmatprep.subr.mxu0 0.0
      %741 = vmatpush1.xpose.msra.mxu0 0.0
      %742 = vmatprep.subr.mxu0 0.0
      %743 = vmatpush1.xpose.msra.mxu0 0.0
      %744 = vmatprep.subr.mxu0 0.0
      %745 = vmatpush1.xpose.msra.mxu0 0.0
      %746 = vmatprep.subr.mxu0 0.0
      %747 = vmatpush1.xpose.msra.mxu0 0.0
      %748 = vmatprep.subr.mxu0 0.0
      %749 = vmatpush1.xpose.msra.mxu0 0.0
      %750 = vmatprep.subr.mxu0 0.0
      %751 = vmatpush1.xpose.msra.mxu0 0.0
      %752 = vmatprep.subr.mxu0 0.0
      %753 = vmatpush1.xpose.msra.mxu0 0.0
      %754 = vmatprep.subr.mxu0 0.0
      %755 = vmatpush1.xpose.msra.mxu0 0.0
      %756 = vmatprep.subr.mxu0 0.0
      %757 = vmatpush1.xpose.msra.mxu0 0.0
      %758 = vmatprep.subr.mxu0 0.0
      %759 = vmatpush1.xpose.msra.mxu0 0.0
      %760 = vmatprep.subr.mxu0 0.0
      %761 = vmatpush1.xpose.msra.mxu0 0.0
      %762 = vmatprep.subr.mxu0 0.0
      %763 = vmatpush1.xpose.msra.mxu0 0.0
      %764 = vmatprep.subr.mxu0 0.0
      %765 = vmatpush1.xpose.msra.mxu0 0.0
      %766 = vmatprep.subr.mxu0 0.0
      %767 = vmatpush1.xpose.msra.mxu0 0.0
      %768 = vmatprep.subr.mxu0 0.0
      %769 = vmatpush1.xpose.msra.mxu0 0.0
      %770 = vmatprep.subr.mxu0 0.0
      %771 = vmatpush1.xpose.msra.mxu0 0.0
      %772 = vmatprep.subr.mxu0 0.0
      %773 = vmatpush1.xpose.msra.mxu0 0.0
      %774 = vmatprep.mubr.f32.mxu0 0.0
      %775 = vmatmul.mubr.f32.gmra.mrb[0].mxu0 %v705
      %v776 = vpop.f32.mrb[0].mxu0
      %v777 = vadd.f32 0.0, %v776
      %v778 = vpop.f32.mrb[0].mxu0
      %779 = vdwg.mxu0
      %780 = vrot.lane.b32.xlu0 %v539, 124
      %v781 = vpop.permute.xlu0 %780
      %782 = vrot.lane.b32.xlu0 %v618, 124
      %v783 = vpop.permute.xlu0 %782
      %v784 = vsel %vm703, %v781, 0
      %v786 = vsel %vm703, %v783, 0
      %788 = vmatprep.subr.mxu0 0.0
      %789 = vmatpush1.xpose.msra.mxu0 %v786
      %790 = vmatprep.subr.mxu0 0.0
      %791 = vmatpush1.xpose.msra.mxu0 0.0
      %792 = vmatprep.subr.mxu0 0.0
      %793 = vmatpush1.xpose.msra.mxu0 0.0
      %794 = vmatprep.subr.mxu0 0.0
      %795 = vmatpush1.xpose.msra.mxu0 0.0
      %796 = vmatprep.subr.mxu0 0.0
      %797 = vmatpush1.xpose.msra.mxu0 0.0
      %798 = vmatprep.subr.mxu0 0.0
      %799 = vmatpush1.xpose.msra.mxu0 0.0
      %800 = vmatprep.subr.mxu0 0.0
      %801 = vmatpush1.xpose.msra.mxu0 0.0
      %802 = vmatprep.subr.mxu0 0.0
      %803 = vmatpush1.xpose.msra.mxu0 0.0
      %804 = vmatprep.subr.mxu0 0.0
      %805 = vmatpush1.xpose.msra.mxu0 0.0
      %806 = vmatprep.subr.mxu0 0.0
      %807 = vmatpush1.xpose.msra.mxu0 0.0
      %808 = vmatprep.subr.mxu0 0.0
      %809 = vmatpush1.xpose.msra.mxu0 0.0
      %810 = vmatprep.subr.mxu0 0.0
      %811 = vmatpush1.xpose.msra.mxu0 0.0
      %812 = vmatprep.subr.mxu0 0.0
      %813 = vmatpush1.xpose.msra.mxu0 0.0
      %814 = vmatprep.subr.mxu0 0.0
      %815 = vmatpush1.xpose.msra.mxu0 0.0
      %816 = vmatprep.subr.mxu0 0.0
      %817 = vmatpush1.xpose.msra.mxu0 0.0
      %818 = vmatprep.subr.mxu0 0.0
      %819 = vmatpush1.xpose.msra.mxu0 0.0
      %820 = vmatprep.subr.mxu0 0.0
      %821 = vmatpush1.xpose.msra.mxu0 0.0
      %822 = vmatprep.subr.mxu0 0.0
      %823 = vmatpush1.xpose.msra.mxu0 0.0
      %824 = vmatprep.subr.mxu0 0.0
      %825 = vmatpush1.xpose.msra.mxu0 0.0
      %826 = vmatprep.subr.mxu0 0.0
      %827 = vmatpush1.xpose.msra.mxu0 0.0
      %828 = vmatprep.subr.mxu0 0.0
      %829 = vmatpush1.xpose.msra.mxu0 0.0
      %830 = vmatprep.subr.mxu0 0.0
      %831 = vmatpush1.xpose.msra.mxu0 0.0
      %832 = vmatprep.subr.mxu0 0.0
      %833 = vmatpush1.xpose.msra.mxu0 0.0
      %834 = vmatprep.subr.mxu0 0.0
      %835 = vmatpush1.xpose.msra.mxu0 0.0
      %836 = vmatprep.subr.mxu0 0.0
      %837 = vmatpush1.xpose.msra.mxu0 0.0
      %838 = vmatprep.subr.mxu0 0.0
      %839 = vmatpush1.xpose.msra.mxu0 0.0
      %840 = vmatprep.subr.mxu0 0.0
      %841 = vmatpush1.xpose.msra.mxu0 0.0
      %842 = vmatprep.subr.mxu0 0.0
      %843 = vmatpush1.xpose.msra.mxu0 0.0
      %844 = vmatprep.subr.mxu0 0.0
      %845 = vmatpush1.xpose.msra.mxu0 0.0
      %846 = vmatprep.subr.mxu0 0.0
      %847 = vmatpush1.xpose.msra.mxu0 0.0
      %848 = vmatprep.subr.mxu0 0.0
      %849 = vmatpush1.xpose.msra.mxu0 0.0
      %850 = vmatprep.subr.mxu0 0.0
      %851 = vmatpush1.xpose.msra.mxu0 0.0
      %852 = vmatprep.mubr.f32.mxu0 0.0
      %853 = vmatmul.mubr.f32.gmra.mrb[0].mxu0 %v784
      %v854 = vpop.f32.mrb[0].mxu0
      %v855 = vadd.f32 0.0, %v854
      %v856 = vpop.f32.mrb[0].mxu0
      %857 = vdwg.mxu0
      %858 = vrot.lane.b32.xlu0 %v539, 120
      %v859 = vpop.permute.xlu0 %858
      %860 = vrot.lane.b32.xlu0 %v618, 120
      %v861 = vpop.permute.xlu0 %860
      %v862 = vsel %vm703, %v859, 0
      %v864 = vsel %vm703, %v861, 0
      %866 = vmatprep.subr.mxu0 0.0
      %867 = vmatpush1.xpose.msra.mxu0 %v864
      %868 = vmatprep.subr.mxu0 0.0
      %869 = vmatpush1.xpose.msra.mxu0 0.0
      %870 = vmatprep.subr.mxu0 0.0
      %871 = vmatpush1.xpose.msra.mxu0 0.0
      %872 = vmatprep.subr.mxu0 0.0
      %873 = vmatpush1.xpose.msra.mxu0 0.0
      %874 = vmatprep.subr.mxu0 0.0
      %875 = vmatpush1.xpose.msra.mxu0 0.0
      %876 = vmatprep.subr.mxu0 0.0
      %877 = vmatpush1.xpose.msra.mxu0 0.0
      %878 = vmatprep.subr.mxu0 0.0
      %879 = vmatpush1.xpose.msra.mxu0 0.0
      %880 = vmatprep.subr.mxu0 0.0
      %881 = vmatpush1.xpose.msra.mxu0 0.0
      %882 = vmatprep.subr.mxu0 0.0
      %883 = vmatpush1.xpose.msra.mxu0 0.0
      %884 = vmatprep.subr.mxu0 0.0
      %885 = vmatpush1.xpose.msra.mxu0 0.0
      %886 = vmatprep.subr.mxu0 0.0
      %887 = vmatpush1.xpose.msra.mxu0 0.0
      %888 = vmatprep.subr.mxu0 0.0
      %889 = vmatpush1.xpose.msra.mxu0 0.0
      %890 = vmatprep.subr.mxu0 0.0
      %891 = vmatpush1.xpose.msra.mxu0 0.0
      %892 = vmatprep.subr.mxu0 0.0
      %893 = vmatpush1.xpose.msra.mxu0 0.0
      %894 = vmatprep.subr.mxu0 0.0
      %895 = vmatpush1.xpose.msra.mxu0 0.0
      %896 = vmatprep.subr.mxu0 0.0
      %897 = vmatpush1.xpose.msra.mxu0 0.0
      %898 = vmatprep.subr.mxu0 0.0
      %899 = vmatpush1.xpose.msra.mxu0 0.0
      %900 = vmatprep.subr.mxu0 0.0
      %901 = vmatpush1.xpose.msra.mxu0 0.0
      %902 = vmatprep.subr.mxu0 0.0
      %903 = vmatpush1.xpose.msra.mxu0 0.0
      %904 = vmatprep.subr.mxu0 0.0
      %905 = vmatpush1.xpose.msra.mxu0 0.0
      %906 = vmatprep.subr.mxu0 0.0
      %907 = vmatpush1.xpose.msra.mxu0 0.0
      %908 = vmatprep.subr.mxu0 0.0
      %909 = vmatpush1.xpose.msra.mxu0 0.0
      %910 = vmatprep.subr.mxu0 0.0
      %911 = vmatpush1.xpose.msra.mxu0 0.0
      %912 = vmatprep.subr.mxu0 0.0
      %913 = vmatpush1.xpose.msra.mxu0 0.0
      %914 = vmatprep.subr.mxu0 0.0
      %915 = vmatpush1.xpose.msra.mxu0 0.0
      %916 = vmatprep.subr.mxu0 0.0
      %917 = vmatpush1.xpose.msra.mxu0 0.0
      %918 = vmatprep.subr.mxu0 0.0
      %919 = vmatpush1.xpose.msra.mxu0 0.0
      %920 = vmatprep.subr.mxu0 0.0
      %921 = vmatpush1.xpose.msra.mxu0 0.0
      %922 = vmatprep.subr.mxu0 0.0
      %923 = vmatpush1.xpose.msra.mxu0 0.0
      %924 = vmatprep.subr.mxu0 0.0
      %925 = vmatpush1.xpose.msra.mxu0 0.0
      %926 = vmatprep.subr.mxu0 0.0
      %927 = vmatpush1.xpose.msra.mxu0 0.0
      %928 = vmatprep.subr.mxu0 0.0
      %929 = vmatpush1.xpose.msra.mxu0 0.0
      %930 = vmatprep.mubr.f32.mxu0 0.0
      %931 = vmatmul.mubr.f32.gmra.mrb[0].mxu0 %v862
      %v932 = vpop.f32.mrb[0].mxu0
      %v933 = vadd.f32 0.0, %v932
      %v934 = vpop.f32.mrb[0].mxu0
      %935 = vdwg.mxu0
      %936 = vrot.lane.b32.xlu0 %v539, 116
      %v937 = vpop.permute.xlu0 %936
      %938 = vrot.lane.b32.xlu0 %v618, 116
      %v939 = vpop.permute.xlu0 %938
      %v940 = vsel %vm703, %v937, 0
      %v942 = vsel %vm703, %v939, 0
      %944 = vmatprep.subr.mxu0 0.0
      %945 = vmatpush1.xpose.msra.mxu0 %v942
      %946 = vmatprep.subr.mxu0 0.0
      %947 = vmatpush1.xpose.msra.mxu0 0.0
      %948 = vmatprep.subr.mxu0 0.0
      %949 = vmatpush1.xpose.msra.mxu0 0.0
      %950 = vmatprep.subr.mxu0 0.0
      %951 = vmatpush1.xpose.msra.mxu0 0.0
      %952 = vmatprep.subr.mxu0 0.0
      %953 = vmatpush1.xpose.msra.mxu0 0.0
      %954 = vmatprep.subr.mxu0 0.0
      %955 = vmatpush1.xpose.msra.mxu0 0.0
      %956 = vmatprep.subr.mxu0 0.0
      %957 = vmatpush1.xpose.msra.mxu0 0.0
      %958 = vmatprep.subr.mxu0 0.0
      %959 = vmatpush1.xpose.msra.mxu0 0.0
      %960 = vmatprep.subr.mxu0 0.0
      %961 = vmatpush1.xpose.msra.mxu0 0.0
      %962 = vmatprep.subr.mxu0 0.0
      %963 = vmatpush1.xpose.msra.mxu0 0.0
      %964 = vmatprep.subr.mxu0 0.0
      %965 = vmatpush1.xpose.msra.mxu0 0.0
      %966 = vmatprep.subr.mxu0 0.0
      %967 = vmatpush1.xpose.msra.mxu0 0.0
      %968 = vmatprep.subr.mxu0 0.0
      %969 = vmatpush1.xpose.msra.mxu0 0.0
      %970 = vmatprep.subr.mxu0 0.0
      %971 = vmatpush1.xpose.msra.mxu0 0.0
      %972 = vmatprep.subr.mxu0 0.0
      %973 = vmatpush1.xpose.msra.mxu0 0.0
      %974 = vmatprep.subr.mxu0 0.0
      %975 = vmatpush1.xpose.msra.mxu0 0.0
      %976 = vmatprep.subr.mxu0 0.0
      %977 = vmatpush1.xpose.msra.mxu0 0.0
      %978 = vmatprep.subr.mxu0 0.0
      %979 = vmatpush1.xpose.msra.mxu0 0.0
      %980 = vmatprep.subr.mxu0 0.0
      %981 = vmatpush1.xpose.msra.mxu0 0.0
      %982 = vmatprep.subr.mxu0 0.0
      %983 = vmatpush1.xpose.msra.mxu0 0.0
      %984 = vmatprep.subr.mxu0 0.0
      %985 = vmatpush1.xpose.msra.mxu0 0.0
      %986 = vmatprep.subr.mxu0 0.0
      %987 = vmatpush1.xpose.msra.mxu0 0.0
      %988 = vmatprep.subr.mxu0 0.0
      %989 = vmatpush1.xpose.msra.mxu0 0.0
      %990 = vmatprep.subr.mxu0 0.0
      %991 = vmatpush1.xpose.msra.mxu0 0.0
      %992 = vmatprep.subr.mxu0 0.0
      %993 = vmatpush1.xpose.msra.mxu0 0.0
      %994 = vmatprep.subr.mxu0 0.0
      %995 = vmatpush1.xpose.msra.mxu0 0.0
      %996 = vmatprep.subr.mxu0 0.0
      %997 = vmatpush1.xpose.msra.mxu0 0.0
      %998 = vmatprep.subr.mxu0 0.0
      %999 = vmatpush1.xpose.msra.mxu0 0.0
      %1000 = vmatprep.subr.mxu0 0.0
      %1001 = vmatpush1.xpose.msra.mxu0 0.0
      %1002 = vmatprep.subr.mxu0 0.0
      %1003 = vmatpush1.xpose.msra.mxu0 0.0
      %1004 = vmatprep.subr.mxu0 0.0
      %1005 = vmatpush1.xpose.msra.mxu0 0.0
      %1006 = vmatprep.subr.mxu0 0.0
      %1007 = vmatpush1.xpose.msra.mxu0 0.0
      %1008 = vmatprep.mubr.f32.mxu0 0.0
      %1009 = vmatmul.mubr.f32.gmra.mrb[0].mxu0 %v940
      %v1010 = vpop.f32.mrb[0].mxu0
      %v1011 = vadd.f32 0.0, %v1010
      %v1012 = vpop.f32.mrb[0].mxu0
      %1013 = vdwg.mxu0
      %1014 = vrot.lane.b32.xlu0 %v539, 112
      %v1015 = vpop.permute.xlu0 %1014
      %1016 = vrot.lane.b32.xlu0 %v618, 112
      %v1017 = vpop.permute.xlu0 %1016
      %v1018 = vsel %vm703, %v1015, 0
      %v1020 = vsel %vm703, %v1017, 0
      %1022 = vmatprep.subr.mxu0 0.0
      %1023 = vmatpush1.xpose.msra.mxu0 %v1020
      %1024 = vmatprep.subr.mxu0 0.0
      %1025 = vmatpush1.xpose.msra.mxu0 0.0
      %1026 = vmatprep.subr.mxu0 0.0
      %1027 = vmatpush1.xpose.msra.mxu0 0.0
      %1028 = vmatprep.subr.mxu0 0.0
      %1029 = vmatpush1.xpose.msra.mxu0 0.0
      %1030 = vmatprep.subr.mxu0 0.0
      %1031 = vmatpush1.xpose.msra.mxu0 0.0
      %1032 = vmatprep.subr.mxu0 0.0
      %1033 = vmatpush1.xpose.msra.mxu0 0.0
      %1034 = vmatprep.subr.mxu0 0.0
      %1035 = vmatpush1.xpose.msra.mxu0 0.0
      %1036 = vmatprep.subr.mxu0 0.0
      %1037 = vmatpush1.xpose.msra.mxu0 0.0
      %1038 = vmatprep.subr.mxu0 0.0
      %1039 = vmatpush1.xpose.msra.mxu0 0.0
      %1040 = vmatprep.subr.mxu0 0.0
      %1041 = vmatpush1.xpose.msra.mxu0 0.0
      %1042 = vmatprep.subr.mxu0 0.0
      %1043 = vmatpush1.xpose.msra.mxu0 0.0
      %1044 = vmatprep.subr.mxu0 0.0
      %1045 = vmatpush1.xpose.msra.mxu0 0.0
      %1046 = vmatprep.subr.mxu0 0.0
      %1047 = vmatpush1.xpose.msra.mxu0 0.0
      %1048 = vmatprep.subr.mxu0 0.0
      %1049 = vmatpush1.xpose.msra.mxu0 0.0
      %1050 = vmatprep.subr.mxu0 0.0
      %1051 = vmatpush1.xpose.msra.mxu0 0.0
      %1052 = vmatprep.subr.mxu0 0.0
      %1053 = vmatpush1.xpose.msra.mxu0 0.0
      %1054 = vmatprep.subr.mxu0 0.0
      %1055 = vmatpush1.xpose.msra.mxu0 0.0
      %1056 = vmatprep.subr.mxu0 0.0
      %1057 = vmatpush1.xpose.msra.mxu0 0.0
      %1058 = vmatprep.subr.mxu0 0.0
      %1059 = vmatpush1.xpose.msra.mxu0 0.0
      %1060 = vmatprep.subr.mxu0 0.0
      %1061 = vmatpush1.xpose.msra.mxu0 0.0
      %1062 = vmatprep.subr.mxu0 0.0
      %1063 = vmatpush1.xpose.msra.mxu0 0.0
      %1064 = vmatprep.subr.mxu0 0.0
      %1065 = vmatpush1.xpose.msra.mxu0 0.0
      %1066 = vmatprep.subr.mxu0 0.0
      %1067 = vmatpush1.xpose.msra.mxu0 0.0
      %1068 = vmatprep.subr.mxu0 0.0
      %1069 = vmatpush1.xpose.msra.mxu0 0.0
      %1070 = vmatprep.subr.mxu0 0.0
      %1071 = vmatpush1.xpose.msra.mxu0 0.0
      %1072 = vmatprep.subr.mxu0 0.0
      %1073 = vmatpush1.xpose.msra.mxu0 0.0
      %1074 = vmatprep.subr.mxu0 0.0
      %1075 = vmatpush1.xpose.msra.mxu0 0.0
      %1076 = vmatprep.subr.mxu0 0.0
      %1077 = vmatpush1.xpose.msra.mxu0 0.0
      %1078 = vmatprep.subr.mxu0 0.0
      %1079 = vmatpush1.xpose.msra.mxu0 0.0
      %1080 = vmatprep.subr.mxu0 0.0
      %1081 = vmatpush1.xpose.msra.mxu0 0.0
      %1082 = vmatprep.subr.mxu0 0.0
      %1083 = vmatpush1.xpose.msra.mxu0 0.0
      %1084 = vmatprep.subr.mxu0 0.0
      %1085 = vmatpush1.xpose.msra.mxu0 0.0
      %1086 = vmatprep.mubr.f32.mxu0 0.0
      %1087 = vmatmul.mubr.f32.gmra.mrb[0].mxu0 %v1018
      %v1088 = vpop.f32.mrb[0].mxu0
      %v1089 = vadd.f32 0.0, %v1088
      %v1090 = vpop.f32.mrb[0].mxu0
      %1091 = vdwg.mxu0
      %1092 = vrot.lane.b32.xlu0 %v539, 108
      %v1093 = vpop.permute.xlu0 %1092
      %1094 = vrot.lane.b32.xlu0 %v618, 108
      %v1095 = vpop.permute.xlu0 %1094
      %v1096 = vsel %vm703, %v1093, 0
      %v1098 = vsel %vm703, %v1095, 0
      %1100 = vmatprep.subr.mxu0 0.0
      %1101 = vmatpush1.xpose.msra.mxu0 %v1098
      %1102 = vmatprep.subr.mxu0 0.0
      %1103 = vmatpush1.xpose.msra.mxu0 0.0
      %1104 = vmatprep.subr.mxu0 0.0
      %1105 = vmatpush1.xpose.msra.mxu0 0.0
      %1106 = vmatprep.subr.mxu0 0.0
      %1107 = vmatpush1.xpose.msra.mxu0 0.0
      %1108 = vmatprep.subr.mxu0 0.0
      %1109 = vmatpush1.xpose.msra.mxu0 0.0
      %1110 = vmatprep.subr.mxu0 0.0
      %1111 = vmatpush1.xpose.msra.mxu0 0.0
      %1112 = vmatprep.subr.mxu0 0.0
      %1113 = vmatpush1.xpose.msra.mxu0 0.0
      %1114 = vmatprep.subr.mxu0 0.0
      %1115 = vmatpush1.xpose.msra.mxu0 0.0
      %1116 = vmatprep.subr.mxu0 0.0
      %1117 = vmatpush1.xpose.msra.mxu0 0.0
      %1118 = vmatprep.subr.mxu0 0.0
      %1119 = vmatpush1.xpose.msra.mxu0 0.0
      %1120 = vmatprep.subr.mxu0 0.0
      %1121 = vmatpush1.xpose.msra.mxu0 0.0
      %1122 = vmatprep.subr.mxu0 0.0
      %1123 = vmatpush1.xpose.msra.mxu0 0.0
      %1124 = vmatprep.subr.mxu0 0.0
      %1125 = vmatpush1.xpose.msra.mxu0 0.0
      %1126 = vmatprep.subr.mxu0 0.0
      %1127 = vmatpush1.xpose.msra.mxu0 0.0
      %1128 = vmatprep.subr.mxu0 0.0
      %1129 = vmatpush1.xpose.msra.mxu0 0.0
      %1130 = vmatprep.subr.mxu0 0.0
      %1131 = vmatpush1.xpose.msra.mxu0 0.0
      %1132 = vmatprep.subr.mxu0 0.0
      %1133 = vmatpush1.xpose.msra.mxu0 0.0
      %1134 = vmatprep.subr.mxu0 0.0
      %1135 = vmatpush1.xpose.msra.mxu0 0.0
      %1136 = vmatprep.subr.mxu0 0.0
      %1137 = vmatpush1.xpose.msra.mxu0 0.0
      %1138 = vmatprep.subr.mxu0 0.0
      %1139 = vmatpush1.xpose.msra.mxu0 0.0
      %1140 = vmatprep.subr.mxu0 0.0
      %1141 = vmatpush1.xpose.msra.mxu0 0.0
      %1142 = vmatprep.subr.mxu0 0.0
      %1143 = vmatpush1.xpose.msra.mxu0 0.0
      %1144 = vmatprep.subr.mxu0 0.0
      %1145 = vmatpush1.xpose.msra.mxu0 0.0
      %1146 = vmatprep.subr.mxu0 0.0
      %1147 = vmatpush1.xpose.msra.mxu0 0.0
      %1148 = vmatprep.subr.mxu0 0.0
      %1149 = vmatpush1.xpose.msra.mxu0 0.0
      %1150 = vmatprep.subr.mxu0 0.0
      %1151 = vmatpush1.xpose.msra.mxu0 0.0
      %1152 = vmatprep.subr.mxu0 0.0
      %1153 = vmatpush1.xpose.msra.mxu0 0.0
      %1154 = vmatprep.subr.mxu0 0.0
      %1155 = vmatpush1.xpose.msra.mxu0 0.0
      %1156 = vmatprep.subr.mxu0 0.0
      %1157 = vmatpush1.xpose.msra.mxu0 0.0
      %1158 = vmatprep.subr.mxu0 0.0
      %1159 = vmatpush1.xpose.msra.mxu0 0.0
      %1160 = vmatprep.subr.mxu0 0.0
      %1161 = vmatpush1.xpose.msra.mxu0 0.0
      %1162 = vmatprep.subr.mxu0 0.0
      %1163 = vmatpush1.xpose.msra.mxu0 0.0
      %1164 = vmatprep.mubr.f32.mxu0 0.0
      %1165 = vmatmul.mubr.f32.gmra.mrb[0].mxu0 %v1096
      %v1166 = vpop.f32.mrb[0].mxu0
      %v1167 = vadd.f32 0.0, %v1166
      %v1168 = vpop.f32.mrb[0].mxu0
      %1169 = vdwg.mxu0
      %1170 = vrot.lane.b32.xlu0 %v539, 104
      %v1171 = vpop.permute.xlu0 %1170
      %1172 = vrot.lane.b32.xlu0 %v618, 104
      %v1173 = vpop.permute.xlu0 %1172
      %v1174 = vsel %vm703, %v1171, 0
      %v1176 = vsel %vm703, %v1173, 0
      %1178 = vmatprep.subr.mxu0 0.0
      %1179 = vmatpush1.xpose.msra.mxu0 %v1176
      %1180 = vmatprep.subr.mxu0 0.0
      %1181 = vmatpush1.xpose.msra.mxu0 0.0
      %1182 = vmatprep.subr.mxu0 0.0
      %1183 = vmatpush1.xpose.msra.mxu0 0.0
      %1184 = vmatprep.subr.mxu0 0.0
      %1185 = vmatpush1.xpose.msra.mxu0 0.0
      %1186 = vmatprep.subr.mxu0 0.0
      %1187 = vmatpush1.xpose.msra.mxu0 0.0
      %1188 = vmatprep.subr.mxu0 0.0
      %1189 = vmatpush1.xpose.msra.mxu0 0.0
      %1190 = vmatprep.subr.mxu0 0.0
      %1191 = vmatpush1.xpose.msra.mxu0 0.0
      %1192 = vmatprep.subr.mxu0 0.0
      %1193 = vmatpush1.xpose.msra.mxu0 0.0
      %1194 = vmatprep.subr.mxu0 0.0
      %1195 = vmatpush1.xpose.msra.mxu0 0.0
      %1196 = vmatprep.subr.mxu0 0.0
      %1197 = vmatpush1.xpose.msra.mxu0 0.0
      %1198 = vmatprep.subr.mxu0 0.0
      %1199 = vmatpush1.xpose.msra.mxu0 0.0
      %1200 = vmatprep.subr.mxu0 0.0
      %1201 = vmatpush1.xpose.msra.mxu0 0.0
      %1202 = vmatprep.subr.mxu0 0.0
      %1203 = vmatpush1.xpose.msra.mxu0 0.0
      %1204 = vmatprep.subr.mxu0 0.0
      %1205 = vmatpush1.xpose.msra.mxu0 0.0
      %1206 = vmatprep.subr.mxu0 0.0
      %1207 = vmatpush1.xpose.msra.mxu0 0.0
      %1208 = vmatprep.subr.mxu0 0.0
      %1209 = vmatpush1.xpose.msra.mxu0 0.0
      %1210 = vmatprep.subr.mxu0 0.0
      %1211 = vmatpush1.xpose.msra.mxu0 0.0
      %1212 = vmatprep.subr.mxu0 0.0
      %1213 = vmatpush1.xpose.msra.mxu0 0.0
      %1214 = vmatprep.subr.mxu0 0.0
      %1215 = vmatpush1.xpose.msra.mxu0 0.0
      %1216 = vmatprep.subr.mxu0 0.0
      %1217 = vmatpush1.xpose.msra.mxu0 0.0
      %1218 = vmatprep.subr.mxu0 0.0
      %1219 = vmatpush1.xpose.msra.mxu0 0.0
      %1220 = vmatprep.subr.mxu0 0.0
      %1221 = vmatpush1.xpose.msra.mxu0 0.0
      %1222 = vmatprep.subr.mxu0 0.0
      %1223 = vmatpush1.xpose.msra.mxu0 0.0
      %1224 = vmatprep.subr.mxu0 0.0
      %1225 = vmatpush1.xpose.msra.mxu0 0.0
      %1226 = vmatprep.subr.mxu0 0.0
      %1227 = vmatpush1.xpose.msra.mxu0 0.0
      %1228 = vmatprep.subr.mxu0 0.0
      %1229 = vmatpush1.xpose.msra.mxu0 0.0
      %1230 = vmatprep.subr.mxu0 0.0
      %1231 = vmatpush1.xpose.msra.mxu0 0.0
      %1232 = vmatprep.subr.mxu0 0.0
      %1233 = vmatpush1.xpose.msra.mxu0 0.0
      %1234 = vmatprep.subr.mxu0 0.0
      %1235 = vmatpush1.xpose.msra.mxu0 0.0
      %1236 = vmatprep.subr.mxu0 0.0
      %1237 = vmatpush1.xpose.msra.mxu0 0.0
      %1238 = vmatprep.subr.mxu0 0.0
      %1239 = vmatpush1.xpose.msra.mxu0 0.0
      %1240 = vmatprep.subr.mxu0 0.0
      %1241 = vmatpush1.xpose.msra.mxu0 0.0
      %1242 = vmatprep.mubr.f32.mxu0 0.0
      %1243 = vmatmul.mubr.f32.gmra.mrb[0].mxu0 %v1174
      %v1244 = vpop.f32.mrb[0].mxu0
      %v1245 = vadd.f32 0.0, %v1244
      %v1246 = vpop.f32.mrb[0].mxu0
      %1247 = vdwg.mxu0
      %1248 = vrot.lane.b32.xlu0 %v539, 100
      %v1249 = vpop.permute.xlu0 %1248
      %1250 = vrot.lane.b32.xlu0 %v618, 100
      %v1251 = vpop.permute.xlu0 %1250
      %v1252 = vsel %vm703, %v1249, 0
      %v1254 = vsel %vm703, %v1251, 0
      %1256 = vmatprep.subr.mxu0 0.0
      %1257 = vmatpush1.xpose.msra.mxu0 %v1254
      %1258 = vmatprep.subr.mxu0 0.0
      %1259 = vmatpush1.xpose.msra.mxu0 0.0
      %1260 = vmatprep.subr.mxu0 0.0
      %1261 = vmatpush1.xpose.msra.mxu0 0.0
      %1262 = vmatprep.subr.mxu0 0.0
      %1263 = vmatpush1.xpose.msra.mxu0 0.0
      %1264 = vmatprep.subr.mxu0 0.0
      %1265 = vmatpush1.xpose.msra.mxu0 0.0
      %1266 = vmatprep.subr.mxu0 0.0
      %1267 = vmatpush1.xpose.msra.mxu0 0.0
      %1268 = vmatprep.subr.mxu0 0.0
      %1269 = vmatpush1.xpose.msra.mxu0 0.0
      %1270 = vmatprep.subr.mxu0 0.0
      %1271 = vmatpush1.xpose.msra.mxu0 0.0
      %1272 = vmatprep.subr.mxu0 0.0
      %1273 = vmatpush1.xpose.msra.mxu0 0.0
      %1274 = vmatprep.subr.mxu0 0.0
      %1275 = vmatpush1.xpose.msra.mxu0 0.0
      %1276 = vmatprep.subr.mxu0 0.0
      %1277 = vmatpush1.xpose.msra.mxu0 0.0
      %1278 = vmatprep.subr.mxu0 0.0
      %1279 = vmatpush1.xpose.msra.mxu0 0.0
      %1280 = vmatprep.subr.mxu0 0.0
      %1281 = vmatpush1.xpose.msra.mxu0 0.0
      %1282 = vmatprep.subr.mxu0 0.0
      %1283 = vmatpush1.xpose.msra.mxu0 0.0
      %1284 = vmatprep.subr.mxu0 0.0
      %1285 = vmatpush1.xpose.msra.mxu0 0.0
      %1286 = vmatprep.subr.mxu0 0.0
      %1287 = vmatpush1.xpose.msra.mxu0 0.0
      %1288 = vmatprep.subr.mxu0 0.0
      %1289 = vmatpush1.xpose.msra.mxu0 0.0
      %1290 = vmatprep.subr.mxu0 0.0
      %1291 = vmatpush1.xpose.msra.mxu0 0.0
      %1292 = vmatprep.subr.mxu0 0.0
      %1293 = vmatpush1.xpose.msra.mxu0 0.0
      %1294 = vmatprep.subr.mxu0 0.0
      %1295 = vmatpush1.xpose.msra.mxu0 0.0
      %1296 = vmatprep.subr.mxu0 0.0
      %1297 = vmatpush1.xpose.msra.mxu0 0.0
      %1298 = vmatprep.subr.mxu0 0.0
      %1299 = vmatpush1.xpose.msra.mxu0 0.0
      %1300 = vmatprep.subr.mxu0 0.0
      %1301 = vmatpush1.xpose.msra.mxu0 0.0
      %1302 = vmatprep.subr.mxu0 0.0
      %1303 = vmatpush1.xpose.msra.mxu0 0.0
      %1304 = vmatprep.subr.mxu0 0.0
      %1305 = vmatpush1.xpose.msra.mxu0 0.0
      %1306 = vmatprep.subr.mxu0 0.0
      %1307 = vmatpush1.xpose.msra.mxu0 0.0
      %1308 = vmatprep.subr.mxu0 0.0
      %1309 = vmatpush1.xpose.msra.mxu0 0.0
      %1310 = vmatprep.subr.mxu0 0.0
      %1311 = vmatpush1.xpose.msra.mxu0 0.0
      %1312 = vmatprep.subr.mxu0 0.0
      %1313 = vmatpush1.xpose.msra.mxu0 0.0
      %1314 = vmatprep.subr.mxu0 0.0
      %1315 = vmatpush1.xpose.msra.mxu0 0.0
      %1316 = vmatprep.subr.mxu0 0.0
      %1317 = vmatpush1.xpose.msra.mxu0 0.0
      %1318 = vmatprep.subr.mxu0 0.0
      %1319 = vmatpush1.xpose.msra.mxu0 0.0
      %1320 = vmatprep.mubr.f32.mxu0 0.0
      %1321 = vmatmul.mubr.f32.gmra.mrb[0].mxu0 %v1252
      %v1322 = vpop.f32.mrb[0].mxu0
      %v1323 = vadd.f32 0.0, %v1322
      %v1324 = vpop.f32.mrb[0].mxu0
      %1325 = vdwg.mxu0
      %v1327 = vlaneseq
      %v1328 = vshrl.u32 %v1327, 7
      %v1329 = vsub.s32 0, %v1328
      %v1330 = vrot.slane %v702, %v1329
      %v1332 = vadd.f32 %v777, %v1330
      %v1333 = vadd.f32 %v855, %v1330
      %v1334 = vadd.f32 %v933, %v1330
      %v1335 = vadd.f32 %v1011, %v1330
      %v1336 = vadd.f32 %v1089, %v1330
      %v1337 = vadd.f32 %v1167, %v1330
      %v1338 = vadd.f32 %v1245, %v1330
      %v1339 = vadd.f32 %v1323, %v1330
      %vm1340 = vcmask 64512
      %v1341 = vsel %vm1340, %v1332, -inf
      %1342 = vmax.xlane.f32.xlu0 %v1341
      %v1343 = vpop.xlane.xlu0 %1342
      %v1344 = vsel %vm1340, %v1333, -inf
      %1345 = vmax.xlane.f32.xlu0 %v1344
      %v1346 = vpop.xlane.xlu0 %1345
      %v1347 = vsel %vm1340, %v1334, -inf
      %1348 = vmax.xlane.f32.xlu0 %v1347
      %v1349 = vpop.xlane.xlu0 %1348
      %v1350 = vsel %vm1340, %v1335, -inf
      %1351 = vmax.xlane.f32.xlu0 %v1350
      %v1352 = vpop.xlane.xlu0 %1351
      %v1353 = vsel %vm1340, %v1336, -inf
      %1354 = vmax.xlane.f32.xlu0 %v1353
      %v1355 = vpop.xlane.xlu0 %1354
      %v1356 = vsel %vm1340, %v1337, -inf
      %1357 = vmax.xlane.f32.xlu0 %v1356
      %v1358 = vpop.xlane.xlu0 %1357
      %v1359 = vsel %vm1340, %v1338, -inf
      %1360 = vmax.xlane.f32.xlu0 %v1359
      %v1361 = vpop.xlane.xlu0 %1360
      %v1362 = vsel %vm1340, %v1339, -inf
      %1363 = vmax.xlane.f32.xlu0 %v1362
      %v1364 = vpop.xlane.xlu0 %1363
      %v1365 = vsub.f32 %v1332, %v1343
      %v1366 = vsub.f32 %v1333, %v1346
      %v1367 = vsub.f32 %v1334, %v1349
      %v1368 = vsub.f32 %v1335, %v1352
      %v1369 = vsub.f32 %v1336, %v1355
      %v1370 = vsub.f32 %v1337, %v1358
      %v1371 = vsub.f32 %v1338, %v1361
      %v1372 = vsub.f32 %v1339, %v1364
      %v1373 = vmul.f32 %v1365, 1.442695
      %v1374 = vpow.pop %v1373
      %v1375 = vmul.f32 %v1366, 1.442695
      %v1376 = vpow.pop %v1375
      %v1377 = vmul.f32 %v1367, 1.442695
      %v1378 = vpow.pop %v1377
      %v1379 = vmul.f32 %v1368, 1.442695
      %v1380 = vpow.pop %v1379
      %v1381 = vmul.f32 %v1369, 1.442695
      %v1382 = vpow.pop %v1381
      %v1383 = vmul.f32 %v1370, 1.442695
      %v1384 = vpow.pop %v1383
      %v1385 = vmul.f32 %v1371, 1.442695
      %v1386 = vpow.pop %v1385
      %v1387 = vmul.f32 %v1372, 1.442695
      %v1388 = vpow.pop %v1387
      %v1389 = vsel %vm1340, %v1374, 0.0
      %1390 = vadd.xlane.f32.xlu0 %v1389
      %v1391 = vpop.xlane.xlu0 %1390
      %v1392 = vsel %vm1340, %v1376, 0.0
      %1393 = vadd.xlane.f32.xlu0 %v1392
      %v1394 = vpop.xlane.xlu0 %1393
      %v1395 = vsel %vm1340, %v1378, 0.0
      %1396 = vadd.xlane.f32.xlu0 %v1395
      %v1397 = vpop.xlane.xlu0 %1396
      %v1398 = vsel %vm1340, %v1380, 0.0
      %1399 = vadd.xlane.f32.xlu0 %v1398
      %v1400 = vpop.xlane.xlu0 %1399
      %v1401 = vsel %vm1340, %v1382, 0.0
      %1402 = vadd.xlane.f32.xlu0 %v1401
      %v1403 = vpop.xlane.xlu0 %1402
      %v1404 = vsel %vm1340, %v1384, 0.0
      %1405 = vadd.xlane.f32.xlu0 %v1404
      %v1406 = vpop.xlane.xlu0 %1405
      %v1407 = vsel %vm1340, %v1386, 0.0
      %1408 = vadd.xlane.f32.xlu0 %v1407
      %v1409 = vpop.xlane.xlu0 %1408
      %v1410 = vsel %vm1340, %v1388, 0.0
      %1411 = vadd.xlane.f32.xlu0 %v1410
      %v1412 = vpop.xlane.xlu0 %1411
      %v1413 = vrcp.pop %v1391
      %v1414 = vrcp.pop %v1394
      %v1415 = vrcp.pop %v1397
      %v1416 = vrcp.pop %v1400
      %v1417 = vrcp.pop %v1403
      %v1418 = vrcp.pop %v1406
      %v1419 = vrcp.pop %v1409
      %v1420 = vrcp.pop %v1412
      %v1421 = vmul.f32 %v1374, %v1413
      %v1422 = vmul.f32 %v1376, %v1414
      %v1423 = vmul.f32 %v1378, %v1415
      %v1424 = vmul.f32 %v1380, %v1416
      %v1425 = vmul.f32 %v1382, %v1417
      %v1426 = vmul.f32 %v1384, %v1418
      %v1427 = vmul.f32 %v1386, %v1419
      %v1428 = vmul.f32 %v1388, %v1420
      %v1430 = vsel %vm1340, %v1421, 0
      %1432 = vmatprep.subr.mxu0 0.0
      %1433 = vmatpush1.msra.mxu0 %v699
      %1434 = vmatprep.subr.mxu0 0.0
      %1435 = vmatpush1.msra.mxu0 0.0
      %1436 = vmatprep.subr.mxu0 0.0
      %1437 = vmatpush1.msra.mxu0 0.0
      %1438 = vmatprep.subr.mxu0 0.0
      %1439 = vmatpush1.msra.mxu0 0.0
      %1440 = vmatprep.subr.mxu0 0.0
      %1441 = vmatpush1.msra.mxu0 0.0
      %1442 = vmatprep.subr.mxu0 0.0
      %1443 = vmatpush1.msra.mxu0 0.0
      %1444 = vmatprep.subr.mxu0 0.0
      %1445 = vmatpush1.msra.mxu0 0.0
      %1446 = vmatprep.subr.mxu0 0.0
      %1447 = vmatpush1.msra.mxu0 0.0
      %1448 = vmatprep.subr.mxu0 0.0
      %1449 = vmatpush1.msra.mxu0 0.0
      %1450 = vmatprep.subr.mxu0 0.0
      %1451 = vmatpush1.msra.mxu0 0.0
      %1452 = vmatprep.subr.mxu0 0.0
      %1453 = vmatpush1.msra.mxu0 0.0
      %1454 = vmatprep.subr.mxu0 0.0
      %1455 = vmatpush1.msra.mxu0 0.0
      %1456 = vmatprep.subr.mxu0 0.0
      %1457 = vmatpush1.msra.mxu0 0.0
      %1458 = vmatprep.subr.mxu0 0.0
      %1459 = vmatpush1.msra.mxu0 0.0
      %1460 = vmatprep.subr.mxu0 0.0
      %1461 = vmatpush1.msra.mxu0 0.0
      %1462 = vmatprep.subr.mxu0 0.0
      %1463 = vmatpush1.msra.mxu0 0.0
      %1464 = vmatprep.subr.mxu0 0.0
      %1465 = vmatpush1.msra.mxu0 0.0
      %1466 = vmatprep.subr.mxu0 0.0
      %1467 = vmatpush1.msra.mxu0 0.0
      %1468 = vmatprep.subr.mxu0 0.0
      %1469 = vmatpush1.msra.mxu0 0.0
      %1470 = vmatprep.subr.mxu0 0.0
      %1471 = vmatpush1.msra.mxu0 0.0
      %1472 = vmatprep.subr.mxu0 0.0
      %1473 = vmatpush1.msra.mxu0 0.0
      %1474 = vmatprep.subr.mxu0 0.0
      %1475 = vmatpush1.msra.mxu0 0.0
      %1476 = vmatprep.subr.mxu0 0.0
      %1477 = vmatpush1.msra.mxu0 0.0
      %1478 = vmatprep.subr.mxu0 0.0
      %1479 = vmatpush1.msra.mxu0 0.0
      %1480 = vmatprep.subr.mxu0 0.0
      %1481 = vmatpush1.msra.mxu0 0.0
      %1482 = vmatprep.subr.mxu0 0.0
      %1483 = vmatpush1.msra.mxu0 0.0
      %1484 = vmatprep.subr.mxu0 0.0
      %1485 = vmatpush1.msra.mxu0 0.0
      %1486 = vmatprep.subr.mxu0 0.0
      %1487 = vmatpush1.msra.mxu0 0.0
      %1488 = vmatprep.subr.mxu0 0.0
      %1489 = vmatpush1.msra.mxu0 0.0
      %1490 = vmatprep.subr.mxu0 0.0
      %1491 = vmatpush1.msra.mxu0 0.0
      %1492 = vmatprep.subr.mxu0 0.0
      %1493 = vmatpush1.msra.mxu0 0.0
      %1494 = vmatprep.subr.mxu0 0.0
      %1495 = vmatpush1.msra.mxu0 0.0
      %1496 = vmatprep.mubr.f32.mxu0 0.0
      %1497 = vmatmul.mubr.f32.gmra.mrb[0].mxu0 %v1430
      %v1498 = vpop.f32.mrb[0].mxu0
      %v1499 = vadd.f32 0.0, %v1498
      %v1500 = vpop.f32.mrb[0].mxu0
      %1501 = vdwg.mxu0
      %1503 = vrot.lane.b32.xlu0 %v699, 124
      %v1504 = vpop.permute.xlu0 %1503
      %v1507 = vsel %vm1340, %v1422, 0
      %1509 = vmatprep.subr.mxu0 0.0
      %1510 = vmatpush1.msra.mxu0 %v1504
      %1511 = vmatprep.subr.mxu0 0.0
      %1512 = vmatpush1.msra.mxu0 0.0
      %1513 = vmatprep.subr.mxu0 0.0
      %1514 = vmatpush1.msra.mxu0 0.0
      %1515 = vmatprep.subr.mxu0 0.0
      %1516 = vmatpush1.msra.mxu0 0.0
      %1517 = vmatprep.subr.mxu0 0.0
      %1518 = vmatpush1.msra.mxu0 0.0
      %1519 = vmatprep.subr.mxu0 0.0
      %1520 = vmatpush1.msra.mxu0 0.0
      %1521 = vmatprep.subr.mxu0 0.0
      %1522 = vmatpush1.msra.mxu0 0.0
      %1523 = vmatprep.subr.mxu0 0.0
      %1524 = vmatpush1.msra.mxu0 0.0
      %1525 = vmatprep.subr.mxu0 0.0
      %1526 = vmatpush1.msra.mxu0 0.0
      %1527 = vmatprep.subr.mxu0 0.0
      %1528 = vmatpush1.msra.mxu0 0.0
      %1529 = vmatprep.subr.mxu0 0.0
      %1530 = vmatpush1.msra.mxu0 0.0
      %1531 = vmatprep.subr.mxu0 0.0
      %1532 = vmatpush1.msra.mxu0 0.0
      %1533 = vmatprep.subr.mxu0 0.0
      %1534 = vmatpush1.msra.mxu0 0.0
      %1535 = vmatprep.subr.mxu0 0.0
      %1536 = vmatpush1.msra.mxu0 0.0
      %1537 = vmatprep.subr.mxu0 0.0
      %1538 = vmatpush1.msra.mxu0 0.0
      %1539 = vmatprep.subr.mxu0 0.0
      %1540 = vmatpush1.msra.mxu0 0.0
      %1541 = vmatprep.subr.mxu0 0.0
      %1542 = vmatpush1.msra.mxu0 0.0
      %1543 = vmatprep.subr.mxu0 0.0
      %1544 = vmatpush1.msra.mxu0 0.0
      %1545 = vmatprep.subr.mxu0 0.0
      %1546 = vmatpush1.msra.mxu0 0.0
      %1547 = vmatprep.subr.mxu0 0.0
      %1548 = vmatpush1.msra.mxu0 0.0
      %1549 = vmatprep.subr.mxu0 0.0
      %1550 = vmatpush1.msra.mxu0 0.0
      %1551 = vmatprep.subr.mxu0 0.0
      %1552 = vmatpush1.msra.mxu0 0.0
      %1553 = vmatprep.subr.mxu0 0.0
      %1554 = vmatpush1.msra.mxu0 0.0
      %1555 = vmatprep.subr.mxu0 0.0
      %1556 = vmatpush1.msra.mxu0 0.0
      %1557 = vmatprep.subr.mxu0 0.0
      %1558 = vmatpush1.msra.mxu0 0.0
      %1559 = vmatprep.subr.mxu0 0.0
      %1560 = vmatpush1.msra.mxu0 0.0
      %1561 = vmatprep.subr.mxu0 0.0
      %1562 = vmatpush1.msra.mxu0 0.0
      %1563 = vmatprep.subr.mxu0 0.0
      %1564 = vmatpush1.msra.mxu0 0.0
      %1565 = vmatprep.subr.mxu0 0.0
      %1566 = vmatpush1.msra.mxu0 0.0
      %1567 = vmatprep.subr.mxu0 0.0
      %1568 = vmatpush1.msra.mxu0 0.0
      %1569 = vmatprep.subr.mxu0 0.0
      %1570 = vmatpush1.msra.mxu0 0.0
      %1571 = vmatprep.subr.mxu0 0.0
      %1572 = vmatpush1.msra.mxu0 0.0
      %1573 = vmatprep.mubr.f32.mxu0 0.0
      %1574 = vmatmul.mubr.f32.gmra.mrb[0].mxu0 %v1507
      %v1575 = vpop.f32.mrb[0].mxu0
      %v1576 = vadd.f32 0.0, %v1575
      %v1577 = vpop.f32.mrb[0].mxu0
      %1578 = vdwg.mxu0
      %1579 = vrot.lane.b32.xlu0 %v699, 120
      %v1580 = vpop.permute.xlu0 %1579
      %v1583 = vsel %vm1340, %v1423, 0
      %1585 = vmatprep.subr.mxu0 0.0
      %1586 = vmatpush1.msra.mxu0 %v1580
      %1587 = vmatprep.subr.mxu0 0.0
      %1588 = vmatpush1.msra.mxu0 0.0
      %1589 = vmatprep.subr.mxu0 0.0
      %1590 = vmatpush1.msra.mxu0 0.0
      %1591 = vmatprep.subr.mxu0 0.0
      %1592 = vmatpush1.msra.mxu0 0.0
      %1593 = vmatprep.subr.mxu0 0.0
      %1594 = vmatpush1.msra.mxu0 0.0
      %1595 = vmatprep.subr.mxu0 0.0
      %1596 = vmatpush1.msra.mxu0 0.0
      %1597 = vmatprep.subr.mxu0 0.0
      %1598 = vmatpush1.msra.mxu0 0.0
      %1599 = vmatprep.subr.mxu0 0.0
      %1600 = vmatpush1.msra.mxu0 0.0
      %1601 = vmatprep.subr.mxu0 0.0
      %1602 = vmatpush1.msra.mxu0 0.0
      %1603 = vmatprep.subr.mxu0 0.0
      %1604 = vmatpush1.msra.mxu0 0.0
      %1605 = vmatprep.subr.mxu0 0.0
      %1606 = vmatpush1.msra.mxu0 0.0
      %1607 = vmatprep.subr.mxu0 0.0
      %1608 = vmatpush1.msra.mxu0 0.0
      %1609 = vmatprep.subr.mxu0 0.0
      %1610 = vmatpush1.msra.mxu0 0.0
      %1611 = vmatprep.subr.mxu0 0.0
      %1612 = vmatpush1.msra.mxu0 0.0
      %1613 = vmatprep.subr.mxu0 0.0
      %1614 = vmatpush1.msra.mxu0 0.0
      %1615 = vmatprep.subr.mxu0 0.0
      %1616 = vmatpush1.msra.mxu0 0.0
      %1617 = vmatprep.subr.mxu0 0.0
      %1618 = vmatpush1.msra.mxu0 0.0
      %1619 = vmatprep.subr.mxu0 0.0
      %1620 = vmatpush1.msra.mxu0 0.0
      %1621 = vmatprep.subr.mxu0 0.0
      %1622 = vmatpush1.msra.mxu0 0.0
      %1623 = vmatprep.subr.mxu0 0.0
      %1624 = vmatpush1.msra.mxu0 0.0
      %1625 = vmatprep.subr.mxu0 0.0
      %1626 = vmatpush1.msra.mxu0 0.0
      %1627 = vmatprep.subr.mxu0 0.0
      %1628 = vmatpush1.msra.mxu0 0.0
      %1629 = vmatprep.subr.mxu0 0.0
      %1630 = vmatpush1.msra.mxu0 0.0
      %1631 = vmatprep.subr.mxu0 0.0
      %1632 = vmatpush1.msra.mxu0 0.0
      %1633 = vmatprep.subr.mxu0 0.0
      %1634 = vmatpush1.msra.mxu0 0.0
      %1635 = vmatprep.subr.mxu0 0.0
      %1636 = vmatpush1.msra.mxu0 0.0
      %1637 = vmatprep.subr.mxu0 0.0
      %1638 = vmatpush1.msra.mxu0 0.0
      %1639 = vmatprep.subr.mxu0 0.0
      %1640 = vmatpush1.msra.mxu0 0.0
      %1641 = vmatprep.subr.mxu0 0.0
      %1642 = vmatpush1.msra.mxu0 0.0
      %1643 = vmatprep.subr.mxu0 0.0
      %1644 = vmatpush1.msra.mxu0 0.0
      %1645 = vmatprep.subr.mxu0 0.0
      %1646 = vmatpush1.msra.mxu0 0.0
      %1647 = vmatprep.subr.mxu0 0.0
      %1648 = vmatpush1.msra.mxu0 0.0
      %1649 = vmatprep.mubr.f32.mxu0 0.0
      %1650 = vmatmul.mubr.f32.gmra.mrb[0].mxu0 %v1583
      %v1651 = vpop.f32.mrb[0].mxu0
      %v1652 = vadd.f32 0.0, %v1651
      %v1653 = vpop.f32.mrb[0].mxu0
      %1654 = vdwg.mxu0
      %1655 = vrot.lane.b32.xlu0 %v699, 116
      %v1656 = vpop.permute.xlu0 %1655
      %v1659 = vsel %vm1340, %v1424, 0
      %1661 = vmatprep.subr.mxu0 0.0
      %1662 = vmatpush1.msra.mxu0 %v1656
      %1663 = vmatprep.subr.mxu0 0.0
      %1664 = vmatpush1.msra.mxu0 0.0
      %1665 = vmatprep.subr.mxu0 0.0
      %1666 = vmatpush1.msra.mxu0 0.0
      %1667 = vmatprep.subr.mxu0 0.0
      %1668 = vmatpush1.msra.mxu0 0.0
      %1669 = vmatprep.subr.mxu0 0.0
      %1670 = vmatpush1.msra.mxu0 0.0
      %1671 = vmatprep.subr.mxu0 0.0
      %1672 = vmatpush1.msra.mxu0 0.0
      %1673 = vmatprep.subr.mxu0 0.0
      %1674 = vmatpush1.msra.mxu0 0.0
      %1675 = vmatprep.subr.mxu0 0.0
      %1676 = vmatpush1.msra.mxu0 0.0
      %1677 = vmatprep.subr.mxu0 0.0
      %1678 = vmatpush1.msra.mxu0 0.0
      %1679 = vmatprep.subr.mxu0 0.0
      %1680 = vmatpush1.msra.mxu0 0.0
      %1681 = vmatprep.subr.mxu0 0.0
      %1682 = vmatpush1.msra.mxu0 0.0
      %1683 = vmatprep.subr.mxu0 0.0
      %1684 = vmatpush1.msra.mxu0 0.0
      %1685 = vmatprep.subr.mxu0 0.0
      %1686 = vmatpush1.msra.mxu0 0.0
      %1687 = vmatprep.subr.mxu0 0.0
      %1688 = vmatpush1.msra.mxu0 0.0
      %1689 = vmatprep.subr.mxu0 0.0
      %1690 = vmatpush1.msra.mxu0 0.0
      %1691 = vmatprep.subr.mxu0 0.0
      %1692 = vmatpush1.msra.mxu0 0.0
      %1693 = vmatprep.subr.mxu0 0.0
      %1694 = vmatpush1.msra.mxu0 0.0
      %1695 = vmatprep.subr.mxu0 0.0
      %1696 = vmatpush1.msra.mxu0 0.0
      %1697 = vmatprep.subr.mxu0 0.0
      %1698 = vmatpush1.msra.mxu0 0.0
      %1699 = vmatprep.subr.mxu0 0.0
      %1700 = vmatpush1.msra.mxu0 0.0
      %1701 = vmatprep.subr.mxu0 0.0
      %1702 = vmatpush1.msra.mxu0 0.0
      %1703 = vmatprep.subr.mxu0 0.0
      %1704 = vmatpush1.msra.mxu0 0.0
      %1705 = vmatprep.subr.mxu0 0.0
      %1706 = vmatpush1.msra.mxu0 0.0
      %1707 = vmatprep.subr.mxu0 0.0
      %1708 = vmatpush1.msra.mxu0 0.0
      %1709 = vmatprep.subr.mxu0 0.0
      %1710 = vmatpush1.msra.mxu0 0.0
      %1711 = vmatprep.subr.mxu0 0.0
      %1712 = vmatpush1.msra.mxu0 0.0
      %1713 = vmatprep.subr.mxu0 0.0
      %1714 = vmatpush1.msra.mxu0 0.0
      %1715 = vmatprep.subr.mxu0 0.0
      %1716 = vmatpush1.msra.mxu0 0.0
      %1717 = vmatprep.subr.mxu0 0.0
      %1718 = vmatpush1.msra.mxu0 0.0
      %1719 = vmatprep.subr.mxu0 0.0
      %1720 = vmatpush1.msra.mxu0 0.0
      %1721 = vmatprep.subr.mxu0 0.0
      %1722 = vmatpush1.msra.mxu0 0.0
      %1723 = vmatprep.subr.mxu0 0.0
      %1724 = vmatpush1.msra.mxu0 0.0
      %1725 = vmatprep.mubr.f32.mxu0 0.0
      %1726 = vmatmul.mubr.f32.gmra.mrb[0].mxu0 %v1659
      %v1727 = vpop.f32.mrb[0].mxu0
      %v1728 = vadd.f32 0.0, %v1727
      %v1729 = vpop.f32.mrb[0].mxu0
      %1730 = vdwg.mxu0
      %1731 = vrot.lane.b32.xlu0 %v699, 112
      %v1732 = vpop.permute.xlu0 %1731
      %v1735 = vsel %vm1340, %v1425, 0
      %1737 = vmatprep.subr.mxu0 0.0
      %1738 = vmatpush1.msra.mxu0 %v1732
      %1739 = vmatprep.subr.mxu0 0.0
      %1740 = vmatpush1.msra.mxu0 0.0
      %1741 = vmatprep.subr.mxu0 0.0
      %1742 = vmatpush1.msra.mxu0 0.0
      %1743 = vmatprep.subr.mxu0 0.0
      %1744 = vmatpush1.msra.mxu0 0.0
      %1745 = vmatprep.subr.mxu0 0.0
      %1746 = vmatpush1.msra.mxu0 0.0
      %1747 = vmatprep.subr.mxu0 0.0
      %1748 = vmatpush1.msra.mxu0 0.0
      %1749 = vmatprep.subr.mxu0 0.0
      %1750 = vmatpush1.msra.mxu0 0.0
      %1751 = vmatprep.subr.mxu0 0.0
      %1752 = vmatpush1.msra.mxu0 0.0
      %1753 = vmatprep.subr.mxu0 0.0
      %1754 = vmatpush1.msra.mxu0 0.0
      %1755 = vmatprep.subr.mxu0 0.0
      %1756 = vmatpush1.msra.mxu0 0.0
      %1757 = vmatprep.subr.mxu0 0.0
      %1758 = vmatpush1.msra.mxu0 0.0
      %1759 = vmatprep.subr.mxu0 0.0
      %1760 = vmatpush1.msra.mxu0 0.0
      %1761 = vmatprep.subr.mxu0 0.0
      %1762 = vmatpush1.msra.mxu0 0.0
      %1763 = vmatprep.subr.mxu0 0.0
      %1764 = vmatpush1.msra.mxu0 0.0
      %1765 = vmatprep.subr.mxu0 0.0
      %1766 = vmatpush1.msra.mxu0 0.0
      %1767 = vmatprep.subr.mxu0 0.0
      %1768 = vmatpush1.msra.mxu0 0.0
      %1769 = vmatprep.subr.mxu0 0.0
      %1770 = vmatpush1.msra.mxu0 0.0
      %1771 = vmatprep.subr.mxu0 0.0
      %1772 = vmatpush1.msra.mxu0 0.0
      %1773 = vmatprep.subr.mxu0 0.0
      %1774 = vmatpush1.msra.mxu0 0.0
      %1775 = vmatprep.subr.mxu0 0.0
      %1776 = vmatpush1.msra.mxu0 0.0
      %1777 = vmatprep.subr.mxu0 0.0
      %1778 = vmatpush1.msra.mxu0 0.0
      %1779 = vmatprep.subr.mxu0 0.0
      %1780 = vmatpush1.msra.mxu0 0.0
      %1781 = vmatprep.subr.mxu0 0.0
      %1782 = vmatpush1.msra.mxu0 0.0
      %1783 = vmatprep.subr.mxu0 0.0
      %1784 = vmatpush1.msra.mxu0 0.0
      %1785 = vmatprep.subr.mxu0 0.0
      %1786 = vmatpush1.msra.mxu0 0.0
      %1787 = vmatprep.subr.mxu0 0.0
      %1788 = vmatpush1.msra.mxu0 0.0
      %1789 = vmatprep.subr.mxu0 0.0
      %1790 = vmatpush1.msra.mxu0 0.0
      %1791 = vmatprep.subr.mxu0 0.0
      %1792 = vmatpush1.msra.mxu0 0.0
      %1793 = vmatprep.subr.mxu0 0.0
      %1794 = vmatpush1.msra.mxu0 0.0
      %1795 = vmatprep.subr.mxu0 0.0
      %1796 = vmatpush1.msra.mxu0 0.0
      %1797 = vmatprep.subr.mxu0 0.0
      %1798 = vmatpush1.msra.mxu0 0.0
      %1799 = vmatprep.subr.mxu0 0.0
      %1800 = vmatpush1.msra.mxu0 0.0
      %1801 = vmatprep.mubr.f32.mxu0 0.0
      %1802 = vmatmul.mubr.f32.gmra.mrb[0].mxu0 %v1735
      %v1803 = vpop.f32.mrb[0].mxu0
      %v1804 = vadd.f32 0.0, %v1803
      %v1805 = vpop.f32.mrb[0].mxu0
      %1806 = vdwg.mxu0
      %1807 = vrot.lane.b32.xlu0 %v699, 108
      %v1808 = vpop.permute.xlu0 %1807
      %v1811 = vsel %vm1340, %v1426, 0
      %1813 = vmatprep.subr.mxu0 0.0
      %1814 = vmatpush1.msra.mxu0 %v1808
      %1815 = vmatprep.subr.mxu0 0.0
      %1816 = vmatpush1.msra.mxu0 0.0
      %1817 = vmatprep.subr.mxu0 0.0
      %1818 = vmatpush1.msra.mxu0 0.0
      %1819 = vmatprep.subr.mxu0 0.0
      %1820 = vmatpush1.msra.mxu0 0.0
      %1821 = vmatprep.subr.mxu0 0.0
      %1822 = vmatpush1.msra.mxu0 0.0
      %1823 = vmatprep.subr.mxu0 0.0
      %1824 = vmatpush1.msra.mxu0 0.0
      %1825 = vmatprep.subr.mxu0 0.0
      %1826 = vmatpush1.msra.mxu0 0.0
      %1827 = vmatprep.subr.mxu0 0.0
      %1828 = vmatpush1.msra.mxu0 0.0
      %1829 = vmatprep.subr.mxu0 0.0
      %1830 = vmatpush1.msra.mxu0 0.0
      %1831 = vmatprep.subr.mxu0 0.0
      %1832 = vmatpush1.msra.mxu0 0.0
      %1833 = vmatprep.subr.mxu0 0.0
      %1834 = vmatpush1.msra.mxu0 0.0
      %1835 = vmatprep.subr.mxu0 0.0
      %1836 = vmatpush1.msra.mxu0 0.0
      %1837 = vmatprep.subr.mxu0 0.0
      %1838 = vmatpush1.msra.mxu0 0.0
      %1839 = vmatprep.subr.mxu0 0.0
      %1840 = vmatpush1.msra.mxu0 0.0
      %1841 = vmatprep.subr.mxu0 0.0
      %1842 = vmatpush1.msra.mxu0 0.0
      %1843 = vmatprep.subr.mxu0 0.0
      %1844 = vmatpush1.msra.mxu0 0.0
      %1845 = vmatprep.subr.mxu0 0.0
      %1846 = vmatpush1.msra.mxu0 0.0
      %1847 = vmatprep.subr.mxu0 0.0
      %1848 = vmatpush1.msra.mxu0 0.0
      %1849 = vmatprep.subr.mxu0 0.0
      %1850 = vmatpush1.msra.mxu0 0.0
      %1851 = vmatprep.subr.mxu0 0.0
      %1852 = vmatpush1.msra.mxu0 0.0
      %1853 = vmatprep.subr.mxu0 0.0
      %1854 = vmatpush1.msra.mxu0 0.0
      %1855 = vmatprep.subr.mxu0 0.0
      %1856 = vmatpush1.msra.mxu0 0.0
      %1857 = vmatprep.subr.mxu0 0.0
      %1858 = vmatpush1.msra.mxu0 0.0
      %1859 = vmatprep.subr.mxu0 0.0
      %1860 = vmatpush1.msra.mxu0 0.0
      %1861 = vmatprep.subr.mxu0 0.0
      %1862 = vmatpush1.msra.mxu0 0.0
      %1863 = vmatprep.subr.mxu0 0.0
      %1864 = vmatpush1.msra.mxu0 0.0
      %1865 = vmatprep.subr.mxu0 0.0
      %1866 = vmatpush1.msra.mxu0 0.0
      %1867 = vmatprep.subr.mxu0 0.0
      %1868 = vmatpush1.msra.mxu0 0.0
      %1869 = vmatprep.subr.mxu0 0.0
      %1870 = vmatpush1.msra.mxu0 0.0
      %1871 = vmatprep.subr.mxu0 0.0
      %1872 = vmatpush1.msra.mxu0 0.0
      %1873 = vmatprep.subr.mxu0 0.0
      %1874 = vmatpush1.msra.mxu0 0.0
      %1875 = vmatprep.subr.mxu0 0.0
      %1876 = vmatpush1.msra.mxu0 0.0
      %1877 = vmatprep.mubr.f32.mxu0 0.0
      %1878 = vmatmul.mubr.f32.gmra.mrb[0].mxu0 %v1811
      %v1879 = vpop.f32.mrb[0].mxu0
      %v1880 = vadd.f32 0.0, %v1879
      %v1881 = vpop.f32.mrb[0].mxu0
      %1882 = vdwg.mxu0
      %1883 = vrot.lane.b32.xlu0 %v699, 104
      %v1884 = vpop.permute.xlu0 %1883
      %v1887 = vsel %vm1340, %v1427, 0
      %1889 = vmatprep.subr.mxu0 0.0
      %1890 = vmatpush1.msra.mxu0 %v1884
      %1891 = vmatprep.subr.mxu0 0.0
      %1892 = vmatpush1.msra.mxu0 0.0
      %1893 = vmatprep.subr.mxu0 0.0
      %1894 = vmatpush1.msra.mxu0 0.0
      %1895 = vmatprep.subr.mxu0 0.0
      %1896 = vmatpush1.msra.mxu0 0.0
      %1897 = vmatprep.subr.mxu0 0.0
      %1898 = vmatpush1.msra.mxu0 0.0
      %1899 = vmatprep.subr.mxu0 0.0
      %1900 = vmatpush1.msra.mxu0 0.0
      %1901 = vmatprep.subr.mxu0 0.0
      %1902 = vmatpush1.msra.mxu0 0.0
      %1903 = vmatprep.subr.mxu0 0.0
      %1904 = vmatpush1.msra.mxu0 0.0
      %1905 = vmatprep.subr.mxu0 0.0
      %1906 = vmatpush1.msra.mxu0 0.0
      %1907 = vmatprep.subr.mxu0 0.0
      %1908 = vmatpush1.msra.mxu0 0.0
      %1909 = vmatprep.subr.mxu0 0.0
      %1910 = vmatpush1.msra.mxu0 0.0
      %1911 = vmatprep.subr.mxu0 0.0
      %1912 = vmatpush1.msra.mxu0 0.0
      %1913 = vmatprep.subr.mxu0 0.0
      %1914 = vmatpush1.msra.mxu0 0.0
      %1915 = vmatprep.subr.mxu0 0.0
      %1916 = vmatpush1.msra.mxu0 0.0
      %1917 = vmatprep.subr.mxu0 0.0
      %1918 = vmatpush1.msra.mxu0 0.0
      %1919 = vmatprep.subr.mxu0 0.0
      %1920 = vmatpush1.msra.mxu0 0.0
      %1921 = vmatprep.subr.mxu0 0.0
      %1922 = vmatpush1.msra.mxu0 0.0
      %1923 = vmatprep.subr.mxu0 0.0
      %1924 = vmatpush1.msra.mxu0 0.0
      %1925 = vmatprep.subr.mxu0 0.0
      %1926 = vmatpush1.msra.mxu0 0.0
      %1927 = vmatprep.subr.mxu0 0.0
      %1928 = vmatpush1.msra.mxu0 0.0
      %1929 = vmatprep.subr.mxu0 0.0
      %1930 = vmatpush1.msra.mxu0 0.0
      %1931 = vmatprep.subr.mxu0 0.0
      %1932 = vmatpush1.msra.mxu0 0.0
      %1933 = vmatprep.subr.mxu0 0.0
      %1934 = vmatpush1.msra.mxu0 0.0
      %1935 = vmatprep.subr.mxu0 0.0
      %1936 = vmatpush1.msra.mxu0 0.0
      %1937 = vmatprep.subr.mxu0 0.0
      %1938 = vmatpush1.msra.mxu0 0.0
      %1939 = vmatprep.subr.mxu0 0.0
      %1940 = vmatpush1.msra.mxu0 0.0
      %1941 = vmatprep.subr.mxu0 0.0
      %1942 = vmatpush1.msra.mxu0 0.0
      %1943 = vmatprep.subr.mxu0 0.0
      %1944 = vmatpush1.msra.mxu0 0.0
      %1945 = vmatprep.subr.mxu0 0.0
      %1946 = vmatpush1.msra.mxu0 0.0
      %1947 = vmatprep.subr.mxu0 0.0
      %1948 = vmatpush1.msra.mxu0 0.0
      %1949 = vmatprep.subr.mxu0 0.0
      %1950 = vmatpush1.msra.mxu0 0.0
      %1951 = vmatprep.subr.mxu0 0.0
      %1952 = vmatpush1.msra.mxu0 0.0
      %1953 = vmatprep.mubr.f32.mxu0 0.0
      %1954 = vmatmul.mubr.f32.gmra.mrb[0].mxu0 %v1887
      %v1955 = vpop.f32.mrb[0].mxu0
      %v1956 = vadd.f32 0.0, %v1955
      %v1957 = vpop.f32.mrb[0].mxu0
      %1958 = vdwg.mxu0
      %1959 = vrot.lane.b32.xlu0 %v699, 100
      %v1960 = vpop.permute.xlu0 %1959
      %v1963 = vsel %vm1340, %v1428, 0
      %1965 = vmatprep.subr.mxu0 0.0
      %1966 = vmatpush1.msra.mxu0 %v1960
      %1967 = vmatprep.subr.mxu0 0.0
      %1968 = vmatpush1.msra.mxu0 0.0
      %1969 = vmatprep.subr.mxu0 0.0
      %1970 = vmatpush1.msra.mxu0 0.0
      %1971 = vmatprep.subr.mxu0 0.0
      %1972 = vmatpush1.msra.mxu0 0.0
      %1973 = vmatprep.subr.mxu0 0.0
      %1974 = vmatpush1.msra.mxu0 0.0
      %1975 = vmatprep.subr.mxu0 0.0
      %1976 = vmatpush1.msra.mxu0 0.0
      %1977 = vmatprep.subr.mxu0 0.0
      %1978 = vmatpush1.msra.mxu0 0.0
      %1979 = vmatprep.subr.mxu0 0.0
      %1980 = vmatpush1.msra.mxu0 0.0
      %1981 = vmatprep.subr.mxu0 0.0
      %1982 = vmatpush1.msra.mxu0 0.0
      %1983 = vmatprep.subr.mxu0 0.0
      %1984 = vmatpush1.msra.mxu0 0.0
      %1985 = vmatprep.subr.mxu0 0.0
      %1986 = vmatpush1.msra.mxu0 0.0
      %1987 = vmatprep.subr.mxu0 0.0
      %1988 = vmatpush1.msra.mxu0 0.0
      %1989 = vmatprep.subr.mxu0 0.0
      %1990 = vmatpush1.msra.mxu0 0.0
      %1991 = vmatprep.subr.mxu0 0.0
      %1992 = vmatpush1.msra.mxu0 0.0
      %1993 = vmatprep.subr.mxu0 0.0
      %1994 = vmatpush1.msra.mxu0 0.0
      %1995 = vmatprep.subr.mxu0 0.0
      %1996 = vmatpush1.msra.mxu0 0.0
      %1997 = vmatprep.subr.mxu0 0.0
      %1998 = vmatpush1.msra.mxu0 0.0
      %1999 = vmatprep.subr.mxu0 0.0
      %2000 = vmatpush1.msra.mxu0 0.0
      %2001 = vmatprep.subr.mxu0 0.0
      %2002 = vmatpush1.msra.mxu0 0.0
      %2003 = vmatprep.subr.mxu0 0.0
      %2004 = vmatpush1.msra.mxu0 0.0
      %2005 = vmatprep.subr.mxu0 0.0
      %2006 = vmatpush1.msra.mxu0 0.0
      %2007 = vmatprep.subr.mxu0 0.0
      %2008 = vmatpush1.msra.mxu0 0.0
      %2009 = vmatprep.subr.mxu0 0.0
      %2010 = vmatpush1.msra.mxu0 0.0
      %2011 = vmatprep.subr.mxu0 0.0
      %2012 = vmatpush1.msra.mxu0 0.0
      %2013 = vmatprep.subr.mxu0 0.0
      %2014 = vmatpush1.msra.mxu0 0.0
      %2015 = vmatprep.subr.mxu0 0.0
      %2016 = vmatpush1.msra.mxu0 0.0
      %2017 = vmatprep.subr.mxu0 0.0
      %2018 = vmatpush1.msra.mxu0 0.0
      %2019 = vmatprep.subr.mxu0 0.0
      %2020 = vmatpush1.msra.mxu0 0.0
      %2021 = vmatprep.subr.mxu0 0.0
      %2022 = vmatpush1.msra.mxu0 0.0
      %2023 = vmatprep.subr.mxu0 0.0
      %2024 = vmatpush1.msra.mxu0 0.0
      %2025 = vmatprep.subr.mxu0 0.0
      %2026 = vmatpush1.msra.mxu0 0.0
      %2027 = vmatprep.subr.mxu0 0.0
      %2028 = vmatpush1.msra.mxu0 0.0
      %2029 = vmatprep.mubr.f32.mxu0 0.0
      %2030 = vmatmul.mubr.f32.gmra.mrb[0].mxu0 %v1963
      %v2031 = vpop.f32.mrb[0].mxu0
      %v2032 = vadd.f32 0.0, %v2031
      %v2033 = vpop.f32.mrb[0].mxu0
      %2034 = vdwg.mxu0
      %2036 = vrot.lane.b32.xlu0 %v1576, 4
      %v2037 = vpop.permute.xlu0 %2036
      %2040 = vrot.lane.b32.xlu0 %v1652, 8
      %v2041 = vpop.permute.xlu0 %2040
      %2044 = vrot.lane.b32.xlu0 %v1728, 12
      %v2045 = vpop.permute.xlu0 %2044
      %2048 = vrot.lane.b32.xlu0 %v1804, 16
      %v2049 = vpop.permute.xlu0 %2048
      %2052 = vrot.lane.b32.xlu0 %v1880, 20
      %v2053 = vpop.permute.xlu0 %2052
      %2056 = vrot.lane.b32.xlu0 %v1956, 24
      %v2057 = vpop.permute.xlu0 %2056
      %2060 = vrot.lane.b32.xlu0 %v2032, 28
      %v2061 = vpop.permute.xlu0 %2060
      %v2063 = vsel %vm703, %v1499, %v2037
      %v2064 = vsel %vm1340, %v2063, %v2041
      %vm2065 = vcmask 97280
      %v2066 = vsel %vm2065, %v2064, %v2045
      %vm2067 = vcmask 130048
      %v2068 = vsel %vm2067, %v2066, %v2049
      %vm2069 = vcmask 162816
      %v2070 = vsel %vm2069, %v2068, %v2053
      %vm2071 = vcmask 195584
      %v2072 = vsel %vm2071, %v2070, %v2057
      %vm2073 = vcmask 228352
      %v2074 = vsel %vm2073, %v2072, %v2061
      %v2075 = vld [vmem:[%s10] sm:$0xff]
      %v2076 = vld [vmem:[%s10 + $0x8] sm:$0xff]
      %v2077 = vld [vmem:[%s10 + $0x10] sm:$0xff]
      %v2078 = vld [vmem:[%s10 + $0x18] sm:$0xff]
      %v2079 = vld [vmem:[%s11] sm:$0x1]
      %v2081 = vlaneseq
      %v2082 = vshrl.u32 %v2081, 7
      %v2083 = vsub.s32 0, %v2082
      %v2084 = vrot.slane %v2079, %v2083
      %v2087 = vsel %vm426, %v2074, 0
      %2089 = vmatprep.subr.mxu0 0.0
      %2090 = vmatpush1.msra.mxu0 %v2075
      %2091 = vmatprep.subr.mxu0 0.0
      %2092 = vmatpush1.msra.mxu0 %v2076
      %2093 = vmatprep.subr.mxu0 0.0
      %2094 = vmatpush1.msra.mxu0 %v2077
      %2095 = vmatprep.subr.mxu0 0.0
      %2096 = vmatpush1.msra.mxu0 %v2078
      %2097 = vmatprep.subr.mxu0 0.0
      %2098 = vmatpush1.msra.mxu0 0.0
      %2099 = vmatprep.subr.mxu0 0.0
      %2100 = vmatpush1.msra.mxu0 0.0
      %2101 = vmatprep.subr.mxu0 0.0
      %2102 = vmatpush1.msra.mxu0 0.0
      %2103 = vmatprep.subr.mxu0 0.0
      %2104 = vmatpush1.msra.mxu0 0.0
      %2105 = vmatprep.subr.mxu0 0.0
      %2106 = vmatpush1.msra.mxu0 0.0
      %2107 = vmatprep.subr.mxu0 0.0
      %2108 = vmatpush1.msra.mxu0 0.0
      %2109 = vmatprep.subr.mxu0 0.0
      %2110 = vmatpush1.msra.mxu0 0.0
      %2111 = vmatprep.subr.mxu0 0.0
      %2112 = vmatpush1.msra.mxu0 0.0
      %2113 = vmatprep.subr.mxu0 0.0
      %2114 = vmatpush1.msra.mxu0 0.0
      %2115 = vmatprep.subr.mxu0 0.0
      %2116 = vmatpush1.msra.mxu0 0.0
      %2117 = vmatprep.subr.mxu0 0.0
      %2118 = vmatpush1.msra.mxu0 0.0
      %2119 = vmatprep.subr.mxu0 0.0
      %2120 = vmatpush1.msra.mxu0 0.0
      %2121 = vmatprep.subr.mxu0 0.0
      %2122 = vmatpush1.msra.mxu0 0.0
      %2123 = vmatprep.subr.mxu0 0.0
      %2124 = vmatpush1.msra.mxu0 0.0
      %2125 = vmatprep.subr.mxu0 0.0
      %2126 = vmatpush1.msra.mxu0 0.0
      %2127 = vmatprep.subr.mxu0 0.0
      %2128 = vmatpush1.msra.mxu0 0.0
      %2129 = vmatprep.subr.mxu0 0.0
      %2130 = vmatpush1.msra.mxu0 0.0
      %2131 = vmatprep.subr.mxu0 0.0
      %2132 = vmatpush1.msra.mxu0 0.0
      %2133 = vmatprep.subr.mxu0 0.0
      %2134 = vmatpush1.msra.mxu0 0.0
      %2135 = vmatprep.subr.mxu0 0.0
      %2136 = vmatpush1.msra.mxu0 0.0
      %2137 = vmatprep.subr.mxu0 0.0
      %2138 = vmatpush1.msra.mxu0 0.0
      %2139 = vmatprep.subr.mxu0 0.0
      %2140 = vmatpush1.msra.mxu0 0.0
      %2141 = vmatprep.subr.mxu0 0.0
      %2142 = vmatpush1.msra.mxu0 0.0
      %2143 = vmatprep.subr.mxu0 0.0
      %2144 = vmatpush1.msra.mxu0 0.0
      %2145 = vmatprep.subr.mxu0 0.0
      %2146 = vmatpush1.msra.mxu0 0.0
      %2147 = vmatprep.subr.mxu0 0.0
      %2148 = vmatpush1.msra.mxu0 0.0
      %2149 = vmatprep.subr.mxu0 0.0
      %2150 = vmatpush1.msra.mxu0 0.0
      %2151 = vmatprep.subr.mxu0 0.0
      %2152 = vmatpush1.msra.mxu0 0.0
      %2153 = vmatprep.mubr.f32.mxu0 0.0
      %2154 = vmatmul.mubr.f32.gmra.mrb[0].mxu0 %v2087
      %v2155 = vpop.f32.mrb[0].mxu0
      %v2156 = vadd.f32 %v2084, %v2155
      %v2157 = vpop.f32.mrb[0].mxu0
      %2158 = vdwg.mxu0
      %v2159 = vadd.f32 %v2156, %v423
      %2160 = vst.msk [vmem:[%s422] sm:$0xff] %vm426, %v2159
      %p2161 = scmp.lt.s32.totalorder %s23, 1
      %s2162 = scalar_select %p2161, %s23, 1
      %s2163 = smul.addr %s2162, 8
      %s2164 = scalar_lea.vmem %s12, %s2163
      // Predicated region
      $region69: #{encoder_block_forward.6} parent=67 // pred_check
        %p2165 = pneg %p303
      $region70: #{encoder_block_forward.6} parent=67 // pred_check_branch
        %2167 = sbr.rel (%p2165) target = $region72
      $region71: #{encoder_block_forward.6} parent=67 // pred_region
        _
      $region72: #{encoder_block_forward.6} parent=67 // pred_fallthru
        _
    $region68: #{encoder_block_forward.6} parent=5 // pred_fallthru
      _
    %p2168 = scmp.le.s32.totalorder 2, %s18
    // Predicated region
    $region73: #{encoder_block_forward.6} parent=5 // pred_check
      %p2169 = pneg %p2168
    $region74: #{encoder_block_forward.6} parent=5 // pred_check_branch
      %2171 = sbr.rel (%p2169) target = $region76
    $region75: #{encoder_block_forward.6} parent=5 // pred_region
      %s2172 = ssub.s32 %s18, 2
      // Predicated region
      $region77: #{encoder_block_forward.6} parent=75 // pred_check
        %p2173 = pneg %p309
      $region78: #{encoder_block_forward.6} parent=75 // pred_check_branch
        %2175 = sbr.rel (%p2173) target = $region80
      $region79: #{encoder_block_forward.6} parent=75 // pred_region
        %p2176 = scmp.lt.s32.totalorder %s24, 1
        %s2177 = scalar_select %p2176, %s24, 1
        %s2178 = smul.addr %s2177, 8
        %s2179 = scalar_lea.vmem %s12, %s2178
      $region80: #{encoder_block_forward.6} parent=75 // pred_fallthru
        _
    $region76: #{encoder_block_forward.6} parent=5 // pred_fallthru
      _
  $region6: #{encoder_block_forward.6} parent=0 // loop_footer
    %s22 = sadd.s32 1, %s18
  $region7: #{encoder_block_forward.6} parent=0 // loop_footer_branch
    %17 = sbr.rel target = $region3
  $region8: #{encoder_block_forward.6} parent=0 // loop_exit
    _

</llo_original>
